<compile_context>
chip_gen: v7x
topology: tpu7x:2x2x1
jax: 0.10.0
libtpu: 0.0.40
codegen_flags: <defaults>
</compile_context>

<pallas_src>
import numpy as np
import jax
import jax.numpy as jnp
from jax.experimental import pallas as pl
from jax.experimental.pallas import tpu as pltpu

IN_MAIN = 4       # monotone / "main" inputs x[:, :4]
HIDDEN = 100      # nn.Linear hidden width in both sub-networks
LANE = 128        # TPU lane width; hidden dims are zero-padded to a multiple of this


def _round_up(n, m):
    return (n + m - 1) // m * m


def _choose_block_b(batch, max_block=512):
    """Largest tile <= max_block (multiple of 128) that still leaves >= 2 grid steps (v7x: 2 TCs)."""
    half = _round_up(max(batch, 2) // 2, LANE)
    return int(max(LANE, min(max_block, half)))


# --------------------------------------------------------------------------------------
# Pallas kernel: fused embedding_net + mlp + sigmoid for one batch tile.
# Everything is computed as (features, batch) so the (1, TB) output row is lane-dense.
# --------------------------------------------------------------------------------------
def _simple_mlp_kernel(x_ref,
                       w1, b1, w2, b2, w3, b3,               # embedding_net (transposed, padded)
                       w4m, w4h, b4, w5, b5, w6, b6,         # mlp (first layer split, transposed, padded)
                       out_ref):
    f32, bf16 = jnp.float32, jnp.bfloat16
    x = x_ref[...]                                            # (D=12, TB) bf16

    def dense_relu(w_ref, a, b_ref):
        y = jnp.dot(w_ref[...], a.astype(bf16),
                    preferred_element_type=f32) + b_ref[...]  # bf16 MXU, f32 accumulate
        return jnp.maximum(y, 0.0)

    # ---- embedding_net: the x[:, :4] columns of w1 are zero, so no input slicing is needed ----
    h = dense_relu(w1, x, b1)                                 # (Hp, TB)
    h = dense_relu(w2, h, b2)                                 # (Hp, TB)
    h = dense_relu(w3, h, b3)                                 # (Ep, TB), padded rows are exactly 0

    # ---- mlp on cat([x[:, :4], h]); the concat is folded into a split first layer ----
    z = (jnp.dot(w4m[...], x, preferred_element_type=f32)            # uses only the x[:, :4] columns
         + jnp.dot(w4h[...], h.astype(bf16), preferred_element_type=f32)
         + b4[...])
    z = jnp.maximum(z, 0.0)
    z = dense_relu(w5, z, b5)                                 # (Hp, TB)

    # Final layer: w6 padded to 8 output rows (rows 1..7 are zero weights) for a clean MXU shape.
    logit8 = jnp.dot(w6[...], z.astype(bf16), preferred_element_type=f32)   # (8, TB)
    logit = logit8[0:1, :] + b6[...]                                        # (1, TB)

    # sigmoid: exp on EUP, divide via approximate reciprocal (EUP slot, effectively free)
    out_ref[...] = pl.reciprocal(1.0 + jnp.exp(-logit), approx=True)


# --------------------------------------------------------------------------------------
# Wrapper
# --------------------------------------------------------------------------------------
def simple_mlp_forward(x, prepared_params, *, block_b=None, max_block=512):
    """x: (B, 4 + in_embedding) float32. Returns (B, 1) float32."""
    B, D = x.shape
    if block_b is None:
        block_b = _choose_block_b(B, max_block)
    Bp = _round_up(B, block_b)

    # One fused pad + transpose + cast pass; the kernel sees a single (D, Bp) bf16 stream.
    xt = jnp.pad(x, ((0, Bp - B), (0, 0))).T.astype(jnp.bfloat16)

    # Constant index_map: each (tiny) weight/bias block is DMA'd once and reused across grid steps.
    param_specs = [pl.BlockSpec(p.shape, lambda i: (0, 0)) for p in prepared_params]

    cp_kwargs = dict(dimension_semantics=("parallel",))   # >=2 grid steps -> both v7x TCs busy
    if block_b > 2048:                                     # v5e scoped-VMEM insurance for huge tiles
        cp_kwargs["vmem_limit_bytes"] = 64 * 1024 * 1024

    y = pl.pallas_call(
        _simple_mlp_kernel,
        out_shape=jax.ShapeDtypeStruct((1, Bp), jnp.float32),     # lane-dense output row
        grid_spec=pltpu.PrefetchScalarGridSpec(
            num_scalar_prefetch=0,
            grid=(Bp // block_b,),
            in_specs=[pl.BlockSpec((D, block_b), lambda i: (0, i))] + param_specs,
            out_specs=pl.BlockSpec((1, block_b), lambda i: (0, i)),
        ),
        compiler_params=pltpu.CompilerParams(**cp_kwargs),
    )(xt, *prepared_params)

    return y[0, :B].reshape(B, 1)


# --------------------------------------------------------------------------------------
# Parameter preparation: transpose to (out, in), pad widths to 128 lanes, fold the input
# split / concat into zero-padded weight columns, cast weights to bf16.
# Zero padding is exact: padded rows stay 0 through bias-0 + ReLU, and padded columns
# multiply those zero rows.
# --------------------------------------------------------------------------------------
def prepare_params(raw_params, in_embedding):
    (we1, be1, we2, be2, we3, be3, wm4, bm4, wm5, bm5, wm6, bm6) = raw_params
    out_emb = we3.shape[1]
    Hp = _round_up(HIDDEN, LANE)     # 100 -> 128
    Ep = _round_up(out_emb, LANE)    # out_embedding -> 128
    D = IN_MAIN + in_embedding       # full input width (12)

    bf, f32 = jnp.bfloat16, jnp.float32

    def w_pad(w, rows, cols):        # (in, out) -> transposed (out, in), zero-padded, bf16
        wt = w.T
        return jnp.pad(wt, ((0, rows - wt.shape[0]), (0, cols - wt.shape[1]))).astype(bf)

    def b_pad(b, rows):              # (1, out) -> (out_padded, 1), f32
        bt = b.T
        return jnp.pad(bt, ((0, rows - bt.shape[0]), (0, 0))).astype(f32)

    # embedding_net layer 1 applied to the FULL input: columns [:4] are zero, so w1 @ x.T == we1.T @ x[:, 4:].T
    w1 = jnp.zeros((Hp, D), f32).at[:we1.shape[1], IN_MAIN:].set(we1.T).astype(bf)
    # mlp layer 1, "main" half, applied to the FULL input: columns [4:] are zero.
    w4m = jnp.zeros((Hp, D), f32).at[:wm4.shape[1], :IN_MAIN].set(wm4[:IN_MAIN].T).astype(bf)
    # final layer padded to 8 output rows (rows 1..7 zero) for a clean (8, Hp) matmul
    w6 = jnp.zeros((8, Hp), f32).at[0, :wm6.shape[0]].set(wm6[:, 0]).astype(bf)

    return (
        w1,                            b_pad(be1, Hp),
        w_pad(we2, Hp, Hp),            b_pad(be2, Hp),
        w_pad(we3, Ep, Hp),            b_pad(be3, Ep),
        w4m,
        w_pad(wm4[IN_MAIN:], Hp, Ep),  b_pad(bm4, Hp),
        w_pad(wm5, Hp, Hp),            b_pad(bm5, Hp),
        w6,                            bm6.astype(f32),        # (8, Hp), (1, 1)
    )


# --------------------------------------------------------------------------------------
# Pure-JAX f32 reference (unpadded params, explicit concat) for the correctness check
# --------------------------------------------------------------------------------------
def reference_forward(x, raw_params):
    (we1, be1, we2, be2, we3, be3, wm4, bm4, wm5, bm5, wm6, bm6) = raw_params
    x_main = x[:, :IN_MAIN]
    x_emb = x[:, IN_MAIN:]

    h = jax.nn.relu(x_emb @ we1 + be1)
    h = jax.nn.relu(h @ we2 + be2)
    h = jax.nn.relu(h @ we3 + be3)

    z = jnp.concatenate([x_main, h], axis=1)
    z = jax.nn.relu(z @ wm4 + bm4)
    z = jax.nn.relu(z @ wm5 + bm5)
    return jax.nn.sigmoid(z @ wm6 + bm6)


# --------------------------------------------------------------------------------------
# Deterministic parameter construction (PyTorch-style uniform(+-1/sqrt(fan_in)))
# --------------------------------------------------------------------------------------
def init_params(key, in_embedding, out_embedding):
    keys = jax.random.split(key, 6)

    def lin(k, fan_in, fan_out):
        kw, kb = jax.random.split(k)
        bound = 1.0 / float(np.sqrt(fan_in))
        w = jax.random.uniform(kw, (fan_in, fan_out), jnp.float32, -bound, bound)
        b = jax.random.uniform(kb, (1, fan_out), jnp.float32, -bound, bound)
        return w, b

    we1, be1 = lin(keys[0], in_embedding, HIDDEN)
    we2, be2 = lin(keys[1], HIDDEN, HIDDEN)
    we3, be3 = lin(keys[2], HIDDEN, out_embedding)
    wm4, bm4 = lin(keys[3], IN_MAIN + out_embedding, HIDDEN)
    wm5, bm5 = lin(keys[4], HIDDEN, HIDDEN)
    wm6, bm6 = lin(keys[5], HIDDEN, 1)
    return (we1, be1, we2, be2, we3, be3, wm4, bm4, wm5, bm5, wm6, bm6)


if __name__ == "__main__":
    B = 1024           # auto tile = 512 -> grid of 2 "parallel" steps (both v7x TCs), MXU-sized batch tiles
    IN_EMBEDDING = 8   # width of x[:, 4:]
    OUT_EMBEDDING = 32

    key = jax.random.PRNGKey(0)
    kx, kp = jax.random.split(key)
    x = jax.random.normal(kx, (B, IN_MAIN + IN_EMBEDDING), jnp.float32)

    raw_params = init_params(kp, IN_EMBEDDING, OUT_EMBEDDING)
    params = prepare_params(raw_params, IN_EMBEDDING)

    y = simple_mlp_forward(x, params)
    y = jax.block_until_ready(y)

    y_ref = jax.block_until_ready(reference_forward(x, raw_params))

    assert y.shape == (B, 1)
    assert np.all(np.isfinite(np.asarray(y)))
    # bf16 weights/inputs with f32 accumulation; sigmoid outputs in (0,1)
    assert np.allclose(np.asarray(y), np.asarray(y_ref), atol=2e-2, rtol=2e-2), \
        "Pallas kernel disagrees with JAX reference"

    print("KERNEL_OK")
</pallas_src>

<mosaic_0001>
module attributes {stable_mosaic.version = 11 : i64} {
  func.func @_simple_mlp_kernel(%arg0: i32, %arg1: memref<12x512xbf16, #tpu.memory_space<vmem>>, %arg2: memref<128x12xbf16, #tpu.memory_space<vmem>>, %arg3: memref<128x1xf32, #tpu.memory_space<vmem>>, %arg4: memref<128x128xbf16, #tpu.memory_space<vmem>>, %arg5: memref<128x1xf32, #tpu.memory_space<vmem>>, %arg6: memref<128x128xbf16, #tpu.memory_space<vmem>>, %arg7: memref<128x1xf32, #tpu.memory_space<vmem>>, %arg8: memref<128x12xbf16, #tpu.memory_space<vmem>>, %arg9: memref<128x128xbf16, #tpu.memory_space<vmem>>, %arg10: memref<128x1xf32, #tpu.memory_space<vmem>>, %arg11: memref<128x128xbf16, #tpu.memory_space<vmem>>, %arg12: memref<128x1xf32, #tpu.memory_space<vmem>>, %arg13: memref<8x128xbf16, #tpu.memory_space<vmem>>, %arg14: memref<1x1xf32, #tpu.memory_space<vmem>>, %arg15: memref<1x512xf32, #tpu.memory_space<vmem>>) attributes {dimension_semantics = [#tpu.dimension_semantics<parallel>], iteration_bounds = array<i64: 2>, scalar_prefetch = 0 : i64, scratch_operands = 0 : i64, tpu.core_type = #tpu.core_type<tc>, window_params = [{transform_indices = @transform_0, window_bounds = array<i64: 12, 512>}, {pipeline_mode = #tpu.pipeline_mode<synchronous>, transform_indices = @transform_1, window_bounds = array<i64: 128, 12>}, {pipeline_mode = #tpu.pipeline_mode<synchronous>, transform_indices = @transform_2, window_bounds = array<i64: 128, 1>}, {pipeline_mode = #tpu.pipeline_mode<synchronous>, transform_indices = @transform_3, window_bounds = array<i64: 128, 128>}, {pipeline_mode = #tpu.pipeline_mode<synchronous>, transform_indices = @transform_4, window_bounds = array<i64: 128, 1>}, {pipeline_mode = #tpu.pipeline_mode<synchronous>, transform_indices = @transform_5, window_bounds = array<i64: 128, 128>}, {pipeline_mode = #tpu.pipeline_mode<synchronous>, transform_indices = @transform_6, window_bounds = array<i64: 128, 1>}, {pipeline_mode = #tpu.pipeline_mode<synchronous>, transform_indices = @transform_7, window_bounds = array<i64: 128, 12>}, {pipeline_mode = #tpu.pipeline_mode<synchronous>, transform_indices = @transform_8, window_bounds = array<i64: 128, 128>}, {pipeline_mode = #tpu.pipeline_mode<synchronous>, transform_indices = @transform_9, window_bounds = array<i64: 128, 1>}, {pipeline_mode = #tpu.pipeline_mode<synchronous>, transform_indices = @transform_10, window_bounds = array<i64: 128, 128>}, {pipeline_mode = #tpu.pipeline_mode<synchronous>, transform_indices = @transform_11, window_bounds = array<i64: 128, 1>}, {pipeline_mode = #tpu.pipeline_mode<synchronous>, transform_indices = @transform_12, window_bounds = array<i64: 8, 128>}, {pipeline_mode = #tpu.pipeline_mode<synchronous>, transform_indices = @transform_13, window_bounds = array<i64: 1, 1>}, {transform_indices = @transform_14, window_bounds = array<i64: 1, 512>}]} {
    %c0 = arith.constant 0 : index
    %c0_0 = arith.constant 0 : index
    %0 = vector.load %arg1[%c0, %c0_0] : memref<12x512xbf16, #tpu.memory_space<vmem>>, vector<12x512xbf16>
    %c0_1 = arith.constant 0 : index
    %c0_2 = arith.constant 0 : index
    %1 = vector.load %arg2[%c0_1, %c0_2] : memref<128x12xbf16, #tpu.memory_space<vmem>>, vector<128x12xbf16>
    %cst = arith.constant dense<0.000000e+00> : vector<128x512xf32>
    %2 = tpu.matmul %1, %0, %cst {dimension_numbers = #tpu.dot_dimension_numbers<[1], [0], [0], [1], [0, 0, 1, 1], [], []>} : vector<128x12xbf16>, vector<12x512xbf16>, vector<128x512xf32> -> vector<128x512xf32>
    %c0_3 = arith.constant 0 : index
    %c0_4 = arith.constant 0 : index
    %3 = vector.load %arg3[%c0_3, %c0_4] : memref<128x1xf32, #tpu.memory_space<vmem>>, vector<128x1xf32>
    %4 = vector.broadcast %3 : vector<128x1xf32> to vector<128x512xf32>
    %5 = arith.addf %2, %4 : vector<128x512xf32>
    %cst_5 = arith.constant 0.000000e+00 : f32
    %6 = vector.broadcast %cst_5 : f32 to vector<128x512xf32>
    %7 = arith.maximumf %5, %6 : vector<128x512xf32>
    %c0_6 = arith.constant 0 : index
    %c0_7 = arith.constant 0 : index
    %8 = vector.load %arg4[%c0_6, %c0_7] : memref<128x128xbf16, #tpu.memory_space<vmem>>, vector<128x128xbf16>
    %9 = arith.truncf %7 : vector<128x512xf32> to vector<128x512xbf16>
    %cst_8 = arith.constant dense<0.000000e+00> : vector<128x512xf32>
    %10 = tpu.matmul %8, %9, %cst_8 {dimension_numbers = #tpu.dot_dimension_numbers<[1], [0], [0], [1], [0, 0, 1, 1], [], []>} : vector<128x128xbf16>, vector<128x512xbf16>, vector<128x512xf32> -> vector<128x512xf32>
    %c0_9 = arith.constant 0 : index
    %c0_10 = arith.constant 0 : index
    %11 = vector.load %arg5[%c0_9, %c0_10] : memref<128x1xf32, #tpu.memory_space<vmem>>, vector<128x1xf32>
    %12 = vector.broadcast %11 : vector<128x1xf32> to vector<128x512xf32>
    %13 = arith.addf %10, %12 : vector<128x512xf32>
    %cst_11 = arith.constant 0.000000e+00 : f32
    %14 = vector.broadcast %cst_11 : f32 to vector<128x512xf32>
    %15 = arith.maximumf %13, %14 : vector<128x512xf32>
    %c0_12 = arith.constant 0 : index
    %c0_13 = arith.constant 0 : index
    %16 = vector.load %arg6[%c0_12, %c0_13] : memref<128x128xbf16, #tpu.memory_space<vmem>>, vector<128x128xbf16>
    %17 = arith.truncf %15 : vector<128x512xf32> to vector<128x512xbf16>
    %cst_14 = arith.constant dense<0.000000e+00> : vector<128x512xf32>
    %18 = tpu.matmul %16, %17, %cst_14 {dimension_numbers = #tpu.dot_dimension_numbers<[1], [0], [0], [1], [0, 0, 1, 1], [], []>} : vector<128x128xbf16>, vector<128x512xbf16>, vector<128x512xf32> -> vector<128x512xf32>
    %c0_15 = arith.constant 0 : index
    %c0_16 = arith.constant 0 : index
    %19 = vector.load %arg7[%c0_15, %c0_16] : memref<128x1xf32, #tpu.memory_space<vmem>>, vector<128x1xf32>
    %20 = vector.broadcast %19 : vector<128x1xf32> to vector<128x512xf32>
    %21 = arith.addf %18, %20 : vector<128x512xf32>
    %cst_17 = arith.constant 0.000000e+00 : f32
    %22 = vector.broadcast %cst_17 : f32 to vector<128x512xf32>
    %23 = arith.maximumf %21, %22 : vector<128x512xf32>
    %c0_18 = arith.constant 0 : index
    %c0_19 = arith.constant 0 : index
    %24 = vector.load %arg8[%c0_18, %c0_19] : memref<128x12xbf16, #tpu.memory_space<vmem>>, vector<128x12xbf16>
    %cst_20 = arith.constant dense<0.000000e+00> : vector<128x512xf32>
    %25 = tpu.matmul %24, %0, %cst_20 {dimension_numbers = #tpu.dot_dimension_numbers<[1], [0], [0], [1], [0, 0, 1, 1], [], []>} : vector<128x12xbf16>, vector<12x512xbf16>, vector<128x512xf32> -> vector<128x512xf32>
    %c0_21 = arith.constant 0 : index
    %c0_22 = arith.constant 0 : index
    %26 = vector.load %arg9[%c0_21, %c0_22] : memref<128x128xbf16, #tpu.memory_space<vmem>>, vector<128x128xbf16>
    %27 = arith.truncf %23 : vector<128x512xf32> to vector<128x512xbf16>
    %cst_23 = arith.constant dense<0.000000e+00> : vector<128x512xf32>
    %28 = tpu.matmul %26, %27, %cst_23 {dimension_numbers = #tpu.dot_dimension_numbers<[1], [0], [0], [1], [0, 0, 1, 1], [], []>} : vector<128x128xbf16>, vector<128x512xbf16>, vector<128x512xf32> -> vector<128x512xf32>
    %29 = arith.addf %25, %28 : vector<128x512xf32>
    %c0_24 = arith.constant 0 : index
    %c0_25 = arith.constant 0 : index
    %30 = vector.load %arg10[%c0_24, %c0_25] : memref<128x1xf32, #tpu.memory_space<vmem>>, vector<128x1xf32>
    %31 = vector.broadcast %30 : vector<128x1xf32> to vector<128x512xf32>
    %32 = arith.addf %29, %31 : vector<128x512xf32>
    %cst_26 = arith.constant 0.000000e+00 : f32
    %33 = vector.broadcast %cst_26 : f32 to vector<128x512xf32>
    %34 = arith.maximumf %32, %33 : vector<128x512xf32>
    %c0_27 = arith.constant 0 : index
    %c0_28 = arith.constant 0 : index
    %35 = vector.load %arg11[%c0_27, %c0_28] : memref<128x128xbf16, #tpu.memory_space<vmem>>, vector<128x128xbf16>
    %36 = arith.truncf %34 : vector<128x512xf32> to vector<128x512xbf16>
    %cst_29 = arith.constant dense<0.000000e+00> : vector<128x512xf32>
    %37 = tpu.matmul %35, %36, %cst_29 {dimension_numbers = #tpu.dot_dimension_numbers<[1], [0], [0], [1], [0, 0, 1, 1], [], []>} : vector<128x128xbf16>, vector<128x512xbf16>, vector<128x512xf32> -> vector<128x512xf32>
    %c0_30 = arith.constant 0 : index
    %c0_31 = arith.constant 0 : index
    %38 = vector.load %arg12[%c0_30, %c0_31] : memref<128x1xf32, #tpu.memory_space<vmem>>, vector<128x1xf32>
    %39 = vector.broadcast %38 : vector<128x1xf32> to vector<128x512xf32>
    %40 = arith.addf %37, %39 : vector<128x512xf32>
    %cst_32 = arith.constant 0.000000e+00 : f32
    %41 = vector.broadcast %cst_32 : f32 to vector<128x512xf32>
    %42 = arith.maximumf %40, %41 : vector<128x512xf32>
    %c0_33 = arith.constant 0 : index
    %c0_34 = arith.constant 0 : index
    %43 = vector.load %arg13[%c0_33, %c0_34] : memref<8x128xbf16, #tpu.memory_space<vmem>>, vector<8x128xbf16>
    %44 = arith.truncf %42 : vector<128x512xf32> to vector<128x512xbf16>
    %cst_35 = arith.constant dense<0.000000e+00> : vector<8x512xf32>
    %45 = tpu.matmul %43, %44, %cst_35 {dimension_numbers = #tpu.dot_dimension_numbers<[1], [0], [0], [1], [0, 0, 1, 1], [], []>} : vector<8x128xbf16>, vector<128x512xbf16>, vector<8x512xf32> -> vector<8x512xf32>
    %46 = vector.extract_strided_slice %45 {offsets = [0, 0], sizes = [1, 512], strides = [1, 1]} : vector<8x512xf32> to vector<1x512xf32>
    %c0_36 = arith.constant 0 : index
    %c0_37 = arith.constant 0 : index
    %47 = vector.load %arg14[%c0_36, %c0_37] : memref<1x1xf32, #tpu.memory_space<vmem>>, vector<1x1xf32>
    %48 = vector.broadcast %47 : vector<1x1xf32> to vector<1x512xf32>
    %49 = arith.addf %46, %48 : vector<1x512xf32>
    %cst_38 = arith.constant 0.000000e+00 : f32
    %50 = vector.broadcast %cst_38 : f32 to vector<1x512xf32>
    %51 = arith.subf %50, %49 : vector<1x512xf32>
    %52 = math.exp %51 : vector<1x512xf32>
    %cst_39 = arith.constant 1.000000e+00 : f32
    %53 = vector.broadcast %cst_39 : f32 to vector<1x512xf32>
    %54 = arith.addf %53, %52 : vector<1x512xf32>
    %55 = tpu.reciprocal %54 {approx = true} : vector<1x512xf32> -> vector<1x512xf32>
    %c0_40 = arith.constant 0 : index
    %c0_41 = arith.constant 0 : index
    %56 = vector.load %arg15[%c0_40, %c0_41] : memref<1x512xf32, #tpu.memory_space<vmem>>, vector<1x512xf32>
    tpu.vector_store %arg15[%c0_40, %c0_41], %55 {strides = array<i32>} : memref<1x512xf32, #tpu.memory_space<vmem>>, vector<1x512xf32>,
    return
  }
  func.func @transform_0(%arg0: i32) -> (i32, i32) {
    %c0_i32 = arith.constant 0 : i32
    %c0_i32_0 = arith.constant 0 : i32
    return %c0_i32, %arg0 : i32, i32
  }
  func.func @transform_1(%arg0: i32) -> (i32, i32) {
    %c0_i32 = arith.constant 0 : i32
    %c0_i32_0 = arith.constant 0 : i32
    %c0_i32_1 = arith.constant 0 : i32
    return %c0_i32, %c0_i32_0 : i32, i32
  }
  func.func @transform_2(%arg0: i32) -> (i32, i32) {
    %c0_i32 = arith.constant 0 : i32
    %c0_i32_0 = arith.constant 0 : i32
    %c0_i32_1 = arith.constant 0 : i32
    return %c0_i32, %c0_i32_0 : i32, i32
  }
  func.func @transform_3(%arg0: i32) -> (i32, i32) {
    %c0_i32 = arith.constant 0 : i32
    %c0_i32_0 = arith.constant 0 : i32
    %c0_i32_1 = arith.constant 0 : i32
    return %c0_i32, %c0_i32_0 : i32, i32
  }
  func.func @transform_4(%arg0: i32) -> (i32, i32) {
    %c0_i32 = arith.constant 0 : i32
    %c0_i32_0 = arith.constant 0 : i32
    %c0_i32_1 = arith.constant 0 : i32
    return %c0_i32, %c0_i32_0 : i32, i32
  }
  func.func @transform_5(%arg0: i32) -> (i32, i32) {
    %c0_i32 = arith.constant 0 : i32
    %c0_i32_0 = arith.constant 0 : i32
    %c0_i32_1 = arith.constant 0 : i32
    return %c0_i32, %c0_i32_0 : i32, i32
  }
  func.func @transform_6(%arg0: i32) -> (i32, i32) {
    %c0_i32 = arith.constant 0 : i32
    %c0_i32_0 = arith.constant 0 : i32
    %c0_i32_1 = arith.constant 0 : i32
    return %c0_i32, %c0_i32_0 : i32, i32
  }
  func.func @transform_7(%arg0: i32) -> (i32, i32) {
    %c0_i32 = arith.constant 0 : i32
    %c0_i32_0 = arith.constant 0 : i32
    %c0_i32_1 = arith.constant 0 : i32
    return %c0_i32, %c0_i32_0 : i32, i32
  }
  func.func @transform_8(%arg0: i32) -> (i32, i32) {
    %c0_i32 = arith.constant 0 : i32
    %c0_i32_0 = arith.constant 0 : i32
    %c0_i32_1 = arith.constant 0 : i32
    return %c0_i32, %c0_i32_0 : i32, i32
  }
  func.func @transform_9(%arg0: i32) -> (i32, i32) {
    %c0_i32 = arith.constant 0 : i32
    %c0_i32_0 = arith.constant 0 : i32
    %c0_i32_1 = arith.constant 0 : i32
    return %c0_i32, %c0_i32_0 : i32, i32
  }
  func.func @transform_10(%arg0: i32) -> (i32, i32) {
    %c0_i32 = arith.constant 0 : i32
    %c0_i32_0 = arith.constant 0 : i32
    %c0_i32_1 = arith.constant 0 : i32
    return %c0_i32, %c0_i32_0 : i32, i32
  }
  func.func @transform_11(%arg0: i32) -> (i32, i32) {
    %c0_i32 = arith.constant 0 : i32
    %c0_i32_0 = arith.constant 0 : i32
    %c0_i32_1 = arith.constant 0 : i32
    return %c0_i32, %c0_i32_0 : i32, i32
  }
  func.func @transform_12(%arg0: i32) -> (i32, i32) {
    %c0_i32 = arith.constant 0 : i32
    %c0_i32_0 = arith.constant 0 : i32
    %c0_i32_1 = arith.constant 0 : i32
    return %c0_i32, %c0_i32_0 : i32, i32
  }
  func.func @transform_13(%arg0: i32) -> (i32, i32) {
    %c0_i32 = arith.constant 0 : i32
    %c0_i32_0 = arith.constant 0 : i32
    %c0_i32_1 = arith.constant 0 : i32
    return %c0_i32, %c0_i32_0 : i32, i32
  }
  func.func @transform_14(%arg0: i32) -> (i32, i32) {
    %c0_i32 = arith.constant 0 : i32
    %c0_i32_0 = arith.constant 0 : i32
    return %c0_i32, %arg0 : i32, i32
  }
}

</mosaic_0001>

<llo_original>
// kernel: tpu_custom_call.1
$region0: #{tpu_custom_call.1}
  #allocation0 [shape = 'u32[]', space=smem, size = 0x4, offset = 0x4, fixed_abs, tag = 'smem constant byte address 0x4 - core index']
  #allocation1 [shape = 'u32[144,128]{1,0:T(1,128)}', space=vmem, size = 0x12000, scoped, tag = 'internal scratch']
  #allocation2 [shape = 'f32[1,1]{1,0:T(1,128)S(1)}', space=vmem, size = 0x200, scoped, tag = 'scoped memory for tpu_custom_call.1']
  %s0 = inlined_call_operand.vmem [shape: bf16[12,1024], index: 0, kind: input, shape index: {}]
  %s1 = inlined_call_operand.vmem [shape: bf16[128,12], index: 1, kind: input, shape index: {}]
  %s2 = inlined_call_operand.vmem [shape: f32[128,1], index: 2, kind: input, shape index: {}]
  %s3 = inlined_call_operand.vmem [shape: bf16[128,128], index: 3, kind: input, shape index: {}]
  %s4 = inlined_call_operand.vmem [shape: f32[128,1], index: 4, kind: input, shape index: {}]
  %s5 = inlined_call_operand.vmem [shape: bf16[128,128], index: 5, kind: input, shape index: {}]
  %s6 = inlined_call_operand.vmem [shape: f32[128,1], index: 6, kind: input, shape index: {}]
  %s7 = inlined_call_operand.vmem [shape: bf16[128,12], index: 7, kind: input, shape index: {}]
  %s8 = inlined_call_operand.vmem [shape: bf16[128,128], index: 8, kind: input, shape index: {}]
  %s9 = inlined_call_operand.vmem [shape: f32[128,1], index: 9, kind: input, shape index: {}]
  %s10 = inlined_call_operand.vmem [shape: bf16[128,128], index: 10, kind: input, shape index: {}]
  %s11 = inlined_call_operand.vmem [shape: f32[128,1], index: 11, kind: input, shape index: {}]
  %s12 = inlined_call_operand.vmem [shape: bf16[8,128], index: 12, kind: input, shape index: {}]
  %s13 = inlined_call_operand.<no memory space> [shape: f32[1,1], index: 13, kind: input, shape index: {}]
  %s14 = inlined_call_operand.hbm [shape: f32[1,1024], index: 14, kind: output, shape index: {}]
  %s15 = sld [smem:[#allocation0]]
  $region112: #{tpu_custom_call.1} parent=0
    _
  %s17 = ssub.s32 1, %s15
  %s18 = scalar_select 0, %s17, %s15
  %v19 = vstv %s13
  %20 = vst [vmem:[#allocation2] sm:$0x1] %v19
  $region1: #{tpu_custom_call.1} parent=0
    #allocation3 [shape = 'u8[32768]{0}', space=vmem, size = 0x8000, scoped, tag = 'input window, operand 0']
    #allocation4 [shape = 'u8[4096]{0}', space=vmem, size = 0x1000, scoped, tag = 'output window, operand 0']
    #allocation5 [shape = 's32[2]{0}', space=sflag, size = 0x8, scoped, tag = 'scoped memory for tpu_custom_call.1']
    %21 = vsyncpa [#allocation5], 0
    %s22 = scalar_lea.sflag [#allocation5], 1
    %23 = vsyncpa %s22, 0
    loop: start=0, step=1, limit=4
    $region2: #{tpu_custom_call.1} parent=1 // loop_pre_header
      _
    $region3: #{tpu_custom_call.1} parent=1 // loop_header
      %s25 = sphi 0, %s29
      %p26 = scmp.ge.s32.totalorder %s25, 4
      %s35 = sphi 0, %s37
      %s38 = sphi 0, %s35
      %s39 = sphi 0, %s38
      %s55 = sphi 0, %s39
      %s59 = sphi 0, %s59
      %s61 = sphi 0, %s59
      %s62 = sphi 0, %s61
      %s76 = sphi 0, %s62
      %s80 = sphi 0, %s80
      %s82 = sphi 0, %s80
      %s83 = sphi 0, %s82
      %s97 = sphi 0, %s83
      %s101 = sphi 0, %s101
      %s103 = sphi 0, %s101
      %s104 = sphi 0, %s103
      %s118 = sphi 0, %s104
      %s122 = sphi 0, %s122
      %s124 = sphi 0, %s122
      %s125 = sphi 0, %s124
      %s139 = sphi 0, %s125
      %s143 = sphi 0, %s143
      %s145 = sphi 0, %s143
      %s146 = sphi 0, %s145
      %s160 = sphi 0, %s146
      %s164 = sphi 0, %s164
      %s166 = sphi 0, %s164
      %s167 = sphi 0, %s166
      %s181 = sphi 0, %s167
      %s185 = sphi 0, %s185
      %s187 = sphi 0, %s185
      %s188 = sphi 0, %s187
      %s202 = sphi 0, %s188
      %s206 = sphi 0, %s206
      %s208 = sphi 0, %s206
      %s209 = sphi 0, %s208
      %s223 = sphi 0, %s209
      %s227 = sphi 0, %s227
      %s229 = sphi 0, %s227
      %s230 = sphi 0, %s229
      %s244 = sphi 0, %s230
      %s248 = sphi 0, %s248
      %s250 = sphi 0, %s248
      %s251 = sphi 0, %s250
      %s265 = sphi 0, %s251
      %s269 = sphi 0, %s269
      %s271 = sphi 0, %s269
      %s272 = sphi 0, %s271
      %s286 = sphi 0, %s272
      %s290 = sphi 0, %s290
      %s292 = sphi 0, %s290
      %s293 = sphi 0, %s292
      %s307 = sphi 0, %s293
      %s311 = sphi 0, %s311
      %s313 = sphi 0, %s311
      %s314 = sphi 0, %s313
      %s328 = sphi 0, %s314
      %s334 = sphi 0, %s336
      %s337 = sphi 0, %s334
      %s338 = sphi 0, %s337
      %s354 = sphi 0, %s338
    $region4: #{tpu_custom_call.1} parent=1 // loop_header_branch
      %28 = sbr.rel (%p26) target = $region8
    $region5: #{tpu_custom_call.1} parent=1 // loop_body
      %s30 = ssub.s32 %s25, 1
      %s31 = ssub.s32 %s25, 2
      %s32 = sadd.s32 %s25, 1
      %s33 = ssub.s32 %s25, %s32
      %p34 = scmp.eq.s32.totalorder %s33, 0
      %s36 = sadd.s32 %s35, 1
      %s37 = scalar_select %p34, %s35, %s36
      %p40 = pneg %p34
      %p41 = scmp.eq.s32.totalorder %s25, 1
      %p42 = por %p40, %p41
      %p43 = scmp.ne.s32.totalorder %s35, %s38
      %p44 = scmp.eq.s32.totalorder %s25, 0
      %p45 = por %p43, %p44
      %p46 = scmp.ne.s32.totalorder %s35, %s38
      %p47 = scmp.eq.s32.totalorder %s30, 1
      %p48 = por %p46, %p47
      %p49 = scmp.ne.s32.totalorder %s38, %s39
      %p50 = scmp.eq.s32.totalorder %s30, 0
      %p51 = por %p49, %p50
      %p52 = scmp.ne.s32.totalorder %s38, %s39
      %p53 = scmp.eq.s32.totalorder %s31, 1
      %p54 = por %p52, %p53
      %p56 = scmp.ne.s32.totalorder %s39, %s55
      %p57 = scmp.eq.s32.totalorder %s31, 0
      %p58 = por %p56, %p57
      %s60 = sadd.s32 %s59, 1
      %p63 = scmp.eq.s32.totalorder %s25, 1
      %p64 = scmp.ne.s32.totalorder %s59, %s61
      %p65 = scmp.eq.s32.totalorder %s25, 0
      %p66 = por %p64, %p65
      %p67 = scmp.ne.s32.totalorder %s59, %s61
      %p68 = scmp.eq.s32.totalorder %s30, 1
      %p69 = por %p67, %p68
      %p70 = scmp.ne.s32.totalorder %s61, %s62
      %p71 = scmp.eq.s32.totalorder %s30, 0
      %p72 = por %p70, %p71
      %p73 = scmp.ne.s32.totalorder %s61, %s62
      %p74 = scmp.eq.s32.totalorder %s31, 1
      %p75 = por %p73, %p74
      %p77 = scmp.ne.s32.totalorder %s62, %s76
      %p78 = scmp.eq.s32.totalorder %s31, 0
      %p79 = por %p77, %p78
      %s81 = sadd.s32 %s80, 1
      %p84 = scmp.eq.s32.totalorder %s25, 1
      %p85 = scmp.ne.s32.totalorder %s80, %s82
      %p86 = scmp.eq.s32.totalorder %s25, 0
      %p87 = por %p85, %p86
      %p88 = scmp.ne.s32.totalorder %s80, %s82
      %p89 = scmp.eq.s32.totalorder %s30, 1
      %p90 = por %p88, %p89
      %p91 = scmp.ne.s32.totalorder %s82, %s83
      %p92 = scmp.eq.s32.totalorder %s30, 0
      %p93 = por %p91, %p92
      %p94 = scmp.ne.s32.totalorder %s82, %s83
      %p95 = scmp.eq.s32.totalorder %s31, 1
      %p96 = por %p94, %p95
      %p98 = scmp.ne.s32.totalorder %s83, %s97
      %p99 = scmp.eq.s32.totalorder %s31, 0
      %p100 = por %p98, %p99
      %s102 = sadd.s32 %s101, 1
      %p105 = scmp.eq.s32.totalorder %s25, 1
      %p106 = scmp.ne.s32.totalorder %s101, %s103
      %p107 = scmp.eq.s32.totalorder %s25, 0
      %p108 = por %p106, %p107
      %p109 = scmp.ne.s32.totalorder %s101, %s103
      %p110 = scmp.eq.s32.totalorder %s30, 1
      %p111 = por %p109, %p110
      %p112 = scmp.ne.s32.totalorder %s103, %s104
      %p113 = scmp.eq.s32.totalorder %s30, 0
      %p114 = por %p112, %p113
      %p115 = scmp.ne.s32.totalorder %s103, %s104
      %p116 = scmp.eq.s32.totalorder %s31, 1
      %p117 = por %p115, %p116
      %p119 = scmp.ne.s32.totalorder %s104, %s118
      %p120 = scmp.eq.s32.totalorder %s31, 0
      %p121 = por %p119, %p120
      %s123 = sadd.s32 %s122, 1
      %p126 = scmp.eq.s32.totalorder %s25, 1
      %p127 = scmp.ne.s32.totalorder %s122, %s124
      %p128 = scmp.eq.s32.totalorder %s25, 0
      %p129 = por %p127, %p128
      %p130 = scmp.ne.s32.totalorder %s122, %s124
      %p131 = scmp.eq.s32.totalorder %s30, 1
      %p132 = por %p130, %p131
      %p133 = scmp.ne.s32.totalorder %s124, %s125
      %p134 = scmp.eq.s32.totalorder %s30, 0
      %p135 = por %p133, %p134
      %p136 = scmp.ne.s32.totalorder %s124, %s125
      %p137 = scmp.eq.s32.totalorder %s31, 1
      %p138 = por %p136, %p137
      %p140 = scmp.ne.s32.totalorder %s125, %s139
      %p141 = scmp.eq.s32.totalorder %s31, 0
      %p142 = por %p140, %p141
      %s144 = sadd.s32 %s143, 1
      %p147 = scmp.eq.s32.totalorder %s25, 1
      %p148 = scmp.ne.s32.totalorder %s143, %s145
      %p149 = scmp.eq.s32.totalorder %s25, 0
      %p150 = por %p148, %p149
      %p151 = scmp.ne.s32.totalorder %s143, %s145
      %p152 = scmp.eq.s32.totalorder %s30, 1
      %p153 = por %p151, %p152
      %p154 = scmp.ne.s32.totalorder %s145, %s146
      %p155 = scmp.eq.s32.totalorder %s30, 0
      %p156 = por %p154, %p155
      %p157 = scmp.ne.s32.totalorder %s145, %s146
      %p158 = scmp.eq.s32.totalorder %s31, 1
      %p159 = por %p157, %p158
      %p161 = scmp.ne.s32.totalorder %s146, %s160
      %p162 = scmp.eq.s32.totalorder %s31, 0
      %p163 = por %p161, %p162
      %s165 = sadd.s32 %s164, 1
      %p168 = scmp.eq.s32.totalorder %s25, 1
      %p169 = scmp.ne.s32.totalorder %s164, %s166
      %p170 = scmp.eq.s32.totalorder %s25, 0
      %p171 = por %p169, %p170
      %p172 = scmp.ne.s32.totalorder %s164, %s166
      %p173 = scmp.eq.s32.totalorder %s30, 1
      %p174 = por %p172, %p173
      %p175 = scmp.ne.s32.totalorder %s166, %s167
      %p176 = scmp.eq.s32.totalorder %s30, 0
      %p177 = por %p175, %p176
      %p178 = scmp.ne.s32.totalorder %s166, %s167
      %p179 = scmp.eq.s32.totalorder %s31, 1
      %p180 = por %p178, %p179
      %p182 = scmp.ne.s32.totalorder %s167, %s181
      %p183 = scmp.eq.s32.totalorder %s31, 0
      %p184 = por %p182, %p183
      %s186 = sadd.s32 %s185, 1
      %p189 = scmp.eq.s32.totalorder %s25, 1
      %p190 = scmp.ne.s32.totalorder %s185, %s187
      %p191 = scmp.eq.s32.totalorder %s25, 0
      %p192 = por %p190, %p191
      %p193 = scmp.ne.s32.totalorder %s185, %s187
      %p194 = scmp.eq.s32.totalorder %s30, 1
      %p195 = por %p193, %p194
      %p196 = scmp.ne.s32.totalorder %s187, %s188
      %p197 = scmp.eq.s32.totalorder %s30, 0
      %p198 = por %p196, %p197
      %p199 = scmp.ne.s32.totalorder %s187, %s188
      %p200 = scmp.eq.s32.totalorder %s31, 1
      %p201 = por %p199, %p200
      %p203 = scmp.ne.s32.totalorder %s188, %s202
      %p204 = scmp.eq.s32.totalorder %s31, 0
      %p205 = por %p203, %p204
      %s207 = sadd.s32 %s206, 1
      %p210 = scmp.eq.s32.totalorder %s25, 1
      %p211 = scmp.ne.s32.totalorder %s206, %s208
      %p212 = scmp.eq.s32.totalorder %s25, 0
      %p213 = por %p211, %p212
      %p214 = scmp.ne.s32.totalorder %s206, %s208
      %p215 = scmp.eq.s32.totalorder %s30, 1
      %p216 = por %p214, %p215
      %p217 = scmp.ne.s32.totalorder %s208, %s209
      %p218 = scmp.eq.s32.totalorder %s30, 0
      %p219 = por %p217, %p218
      %p220 = scmp.ne.s32.totalorder %s208, %s209
      %p221 = scmp.eq.s32.totalorder %s31, 1
      %p222 = por %p220, %p221
      %p224 = scmp.ne.s32.totalorder %s209, %s223
      %p225 = scmp.eq.s32.totalorder %s31, 0
      %p226 = por %p224, %p225
      %s228 = sadd.s32 %s227, 1
      %p231 = scmp.eq.s32.totalorder %s25, 1
      %p232 = scmp.ne.s32.totalorder %s227, %s229
      %p233 = scmp.eq.s32.totalorder %s25, 0
      %p234 = por %p232, %p233
      %p235 = scmp.ne.s32.totalorder %s227, %s229
      %p236 = scmp.eq.s32.totalorder %s30, 1
      %p237 = por %p235, %p236
      %p238 = scmp.ne.s32.totalorder %s229, %s230
      %p239 = scmp.eq.s32.totalorder %s30, 0
      %p240 = por %p238, %p239
      %p241 = scmp.ne.s32.totalorder %s229, %s230
      %p242 = scmp.eq.s32.totalorder %s31, 1
      %p243 = por %p241, %p242
      %p245 = scmp.ne.s32.totalorder %s230, %s244
      %p246 = scmp.eq.s32.totalorder %s31, 0
      %p247 = por %p245, %p246
      %s249 = sadd.s32 %s248, 1
      %p252 = scmp.eq.s32.totalorder %s25, 1
      %p253 = scmp.ne.s32.totalorder %s248, %s250
      %p254 = scmp.eq.s32.totalorder %s25, 0
      %p255 = por %p253, %p254
      %p256 = scmp.ne.s32.totalorder %s248, %s250
      %p257 = scmp.eq.s32.totalorder %s30, 1
      %p258 = por %p256, %p257
      %p259 = scmp.ne.s32.totalorder %s250, %s251
      %p260 = scmp.eq.s32.totalorder %s30, 0
      %p261 = por %p259, %p260
      %p262 = scmp.ne.s32.totalorder %s250, %s251
      %p263 = scmp.eq.s32.totalorder %s31, 1
      %p264 = por %p262, %p263
      %p266 = scmp.ne.s32.totalorder %s251, %s265
      %p267 = scmp.eq.s32.totalorder %s31, 0
      %p268 = por %p266, %p267
      %s270 = sadd.s32 %s269, 1
      %p273 = scmp.eq.s32.totalorder %s25, 1
      %p274 = scmp.ne.s32.totalorder %s269, %s271
      %p275 = scmp.eq.s32.totalorder %s25, 0
      %p276 = por %p274, %p275
      %p277 = scmp.ne.s32.totalorder %s269, %s271
      %p278 = scmp.eq.s32.totalorder %s30, 1
      %p279 = por %p277, %p278
      %p280 = scmp.ne.s32.totalorder %s271, %s272
      %p281 = scmp.eq.s32.totalorder %s30, 0
      %p282 = por %p280, %p281
      %p283 = scmp.ne.s32.totalorder %s271, %s272
      %p284 = scmp.eq.s32.totalorder %s31, 1
      %p285 = por %p283, %p284
      %p287 = scmp.ne.s32.totalorder %s272, %s286
      %p288 = scmp.eq.s32.totalorder %s31, 0
      %p289 = por %p287, %p288
      %s291 = sadd.s32 %s290, 1
      %p294 = scmp.eq.s32.totalorder %s25, 1
      %p295 = scmp.ne.s32.totalorder %s290, %s292
      %p296 = scmp.eq.s32.totalorder %s25, 0
      %p297 = por %p295, %p296
      %p298 = scmp.ne.s32.totalorder %s290, %s292
      %p299 = scmp.eq.s32.totalorder %s30, 1
      %p300 = por %p298, %p299
      %p301 = scmp.ne.s32.totalorder %s292, %s293
      %p302 = scmp.eq.s32.totalorder %s30, 0
      %p303 = por %p301, %p302
      %p304 = scmp.ne.s32.totalorder %s292, %s293
      %p305 = scmp.eq.s32.totalorder %s31, 1
      %p306 = por %p304, %p305
      %p308 = scmp.ne.s32.totalorder %s293, %s307
      %p309 = scmp.eq.s32.totalorder %s31, 0
      %p310 = por %p308, %p309
      %s312 = sadd.s32 %s311, 1
      %p315 = scmp.eq.s32.totalorder %s25, 1
      %p316 = scmp.ne.s32.totalorder %s311, %s313
      %p317 = scmp.eq.s32.totalorder %s25, 0
      %p318 = por %p316, %p317
      %p319 = scmp.ne.s32.totalorder %s311, %s313
      %p320 = scmp.eq.s32.totalorder %s30, 1
      %p321 = por %p319, %p320
      %p322 = scmp.ne.s32.totalorder %s313, %s314
      %p323 = scmp.eq.s32.totalorder %s30, 0
      %p324 = por %p322, %p323
      %p325 = scmp.ne.s32.totalorder %s313, %s314
      %p326 = scmp.eq.s32.totalorder %s31, 1
      %p327 = por %p325, %p326
      %p329 = scmp.ne.s32.totalorder %s314, %s328
      %p330 = scmp.eq.s32.totalorder %s31, 0
      %p331 = por %p329, %p330
      %s332 = ssub.s32 %s25, %s32
      %p333 = scmp.eq.s32.totalorder %s332, 0
      %s335 = sadd.s32 %s334, 1
      %s336 = scalar_select %p333, %s334, %s335
      %p339 = pneg %p333
      %p340 = scmp.eq.s32.totalorder %s25, 1
      %p341 = por %p339, %p340
      %p342 = scmp.ne.s32.totalorder %s334, %s337
      %p343 = scmp.eq.s32.totalorder %s25, 0
      %p344 = por %p342, %p343
      %p345 = scmp.ne.s32.totalorder %s334, %s337
      %p346 = scmp.eq.s32.totalorder %s30, 1
      %p347 = por %p345, %p346
      %p348 = scmp.ne.s32.totalorder %s337, %s338
      %p349 = scmp.eq.s32.totalorder %s30, 0
      %p350 = por %p348, %p349
      %p351 = scmp.ne.s32.totalorder %s337, %s338
      %p352 = scmp.eq.s32.totalorder %s31, 1
      %p353 = por %p351, %p352
      %p355 = scmp.ne.s32.totalorder %s338, %s354
      %p356 = scmp.eq.s32.totalorder %s31, 0
      %p357 = por %p355, %p356
      %p358 = scmp.le.s32.totalorder 1, %s25
      %p359 = scmp.lt.s32.totalorder %s25, 3
      %p360 = pnand %p358, %p359
      %p361 = pneg %p360
      // Predicated region
      $region9: #{tpu_custom_call.1} parent=5 // pred_check
        _
      $region10: #{tpu_custom_call.1} parent=5 // pred_check_branch
        %363 = sbr.rel (%p360) target = $region12
      $region11: #{tpu_custom_call.1} parent=5 // pred_region
        %s364 = ssub.s32 %s25, 1
        // Predicated region
        $region13: #{tpu_custom_call.1} parent=11 // pred_check
          %p365 = pneg %p72
        $region14: #{tpu_custom_call.1} parent=11 // pred_check_branch
          %367 = sbr.rel (%p365) target = $region16
        $region15: #{tpu_custom_call.1} parent=11 // pred_region
          _
        $region16: #{tpu_custom_call.1} parent=11 // pred_fallthru
          _
        // Predicated region
        $region17: #{tpu_custom_call.1} parent=11 // pred_check
          %p368 = pneg %p93
        $region18: #{tpu_custom_call.1} parent=11 // pred_check_branch
          %370 = sbr.rel (%p368) target = $region20
        $region19: #{tpu_custom_call.1} parent=11 // pred_region
          _
        $region20: #{tpu_custom_call.1} parent=11 // pred_fallthru
          _
        // Predicated region
        $region21: #{tpu_custom_call.1} parent=11 // pred_check
          %p371 = pneg %p114
        $region22: #{tpu_custom_call.1} parent=11 // pred_check_branch
          %373 = sbr.rel (%p371) target = $region24
        $region23: #{tpu_custom_call.1} parent=11 // pred_region
          _
        $region24: #{tpu_custom_call.1} parent=11 // pred_fallthru
          _
        // Predicated region
        $region25: #{tpu_custom_call.1} parent=11 // pred_check
          %p374 = pneg %p135
        $region26: #{tpu_custom_call.1} parent=11 // pred_check_branch
          %376 = sbr.rel (%p374) target = $region28
        $region27: #{tpu_custom_call.1} parent=11 // pred_region
          _
        $region28: #{tpu_custom_call.1} parent=11 // pred_fallthru
          _
        // Predicated region
        $region29: #{tpu_custom_call.1} parent=11 // pred_check
          %p377 = pneg %p156
        $region30: #{tpu_custom_call.1} parent=11 // pred_check_branch
          %379 = sbr.rel (%p377) target = $region32
        $region31: #{tpu_custom_call.1} parent=11 // pred_region
          _
        $region32: #{tpu_custom_call.1} parent=11 // pred_fallthru
          _
        // Predicated region
        $region33: #{tpu_custom_call.1} parent=11 // pred_check
          %p380 = pneg %p177
        $region34: #{tpu_custom_call.1} parent=11 // pred_check_branch
          %382 = sbr.rel (%p380) target = $region36
        $region35: #{tpu_custom_call.1} parent=11 // pred_region
          _
        $region36: #{tpu_custom_call.1} parent=11 // pred_fallthru
          _
        // Predicated region
        $region37: #{tpu_custom_call.1} parent=11 // pred_check
          %p383 = pneg %p198
        $region38: #{tpu_custom_call.1} parent=11 // pred_check_branch
          %385 = sbr.rel (%p383) target = $region40
        $region39: #{tpu_custom_call.1} parent=11 // pred_region
          _
        $region40: #{tpu_custom_call.1} parent=11 // pred_fallthru
          _
        // Predicated region
        $region41: #{tpu_custom_call.1} parent=11 // pred_check
          %p386 = pneg %p219
        $region42: #{tpu_custom_call.1} parent=11 // pred_check_branch
          %388 = sbr.rel (%p386) target = $region44
        $region43: #{tpu_custom_call.1} parent=11 // pred_region
          _
        $region44: #{tpu_custom_call.1} parent=11 // pred_fallthru
          _
        // Predicated region
        $region45: #{tpu_custom_call.1} parent=11 // pred_check
          %p389 = pneg %p240
        $region46: #{tpu_custom_call.1} parent=11 // pred_check_branch
          %391 = sbr.rel (%p389) target = $region48
        $region47: #{tpu_custom_call.1} parent=11 // pred_region
          _
        $region48: #{tpu_custom_call.1} parent=11 // pred_fallthru
          _
        // Predicated region
        $region49: #{tpu_custom_call.1} parent=11 // pred_check
          %p392 = pneg %p261
        $region50: #{tpu_custom_call.1} parent=11 // pred_check_branch
          %394 = sbr.rel (%p392) target = $region52
        $region51: #{tpu_custom_call.1} parent=11 // pred_region
          _
        $region52: #{tpu_custom_call.1} parent=11 // pred_fallthru
          _
        // Predicated region
        $region53: #{tpu_custom_call.1} parent=11 // pred_check
          %p395 = pneg %p282
        $region54: #{tpu_custom_call.1} parent=11 // pred_check_branch
          %397 = sbr.rel (%p395) target = $region56
        $region55: #{tpu_custom_call.1} parent=11 // pred_region
          _
        $region56: #{tpu_custom_call.1} parent=11 // pred_fallthru
          _
        // Predicated region
        $region57: #{tpu_custom_call.1} parent=11 // pred_check
          %p398 = pneg %p303
        $region58: #{tpu_custom_call.1} parent=11 // pred_check_branch
          %400 = sbr.rel (%p398) target = $region60
        $region59: #{tpu_custom_call.1} parent=11 // pred_region
          _
        $region60: #{tpu_custom_call.1} parent=11 // pred_fallthru
          _
        // Predicated region
        $region61: #{tpu_custom_call.1} parent=11 // pred_check
          %p401 = pneg %p324
        $region62: #{tpu_custom_call.1} parent=11 // pred_check_branch
          %403 = sbr.rel (%p401) target = $region64
        $region63: #{tpu_custom_call.1} parent=11 // pred_region
          _
        $region64: #{tpu_custom_call.1} parent=11 // pred_fallthru
          _
      $region12: #{tpu_custom_call.1} parent=5 // pred_fallthru
        _
      %p404 = scmp.lt.s32.totalorder %s25, 2
      // Predicated region
      $region65: #{tpu_custom_call.1} parent=5 // pred_check
        %p405 = pneg %p404
      $region66: #{tpu_custom_call.1} parent=5 // pred_check_branch
        %407 = sbr.rel (%p405) target = $region68
      $region67: #{tpu_custom_call.1} parent=5 // pred_region
        // Predicated region
        $region69: #{tpu_custom_call.1} parent=67 // pred_check
          %p408 = pneg %p45
        $region70: #{tpu_custom_call.1} parent=67 // pred_check_branch
          %410 = sbr.rel (%p408) target = $region72
        $region71: #{tpu_custom_call.1} parent=67 // pred_region
          %s411 = sand.u32 %s35, 1
          %s412 = sand.u32 %s35, 1
          %s413 = smul.addr %s412, 32
          %s414 = scalar_lea.vmem [#allocation3], %s413
          %s415 = smul.u32 4, %s25
          %s416 = smul.addr %s415, 4
          %s417 = scalar_lea.vmem %s0, %s416
          // Predicated region
          $region73: #{tpu_custom_call.1} parent=71 // pred_check
            _
          $region74: #{tpu_custom_call.1} parent=71 // pred_check_branch
            %419 = sbr.rel (0) target = $region76
          $region75: #{tpu_custom_call.1} parent=71 // pred_region
            // Predicated region
            $region77: #{tpu_custom_call.1} parent=75 // pred_check
              _
            $region78: #{tpu_custom_call.1} parent=75 // pred_check_branch
              %421 = sbr.rel (0) target = $region80
            $region79: #{tpu_custom_call.1} parent=75 // pred_region
              loop: start=0, step=1, limit=1
              $region81: #{tpu_custom_call.1} parent=79 // loop_pre_header
                _
              $region82: #{tpu_custom_call.1} parent=79 // loop_header
                %s423 = sphi 0, %s427
                %p424 = scmp.ge.s32.totalorder %s423, 1
                %s428 = sphi %s417, %s417
                %s429 = sphi %s414, %s414
              $region83: #{tpu_custom_call.1} parent=79 // loop_header_branch
                %426 = sbr.rel (%p424) target = $region87
              $region84: #{tpu_custom_call.1} parent=79 // loop_body
                %v430 = vld [vmem:[%s428] sm:$0xff]
                %431 = vst [vmem:[%s429] sm:$0xff] %v430
                %v432 = vld [vmem:[%s428 + $0x8] sm:$0xff]
                %433 = vst [vmem:[%s429 + $0x8] sm:$0xff] %v432
                %v434 = vld [vmem:[%s428 + $0x20] sm:$0xff]
                %435 = vst [vmem:[%s429 + $0x10] sm:$0xff] %v434
                %v436 = vld [vmem:[%s428 + $0x28] sm:$0xff]
                %437 = vst [vmem:[%s429 + $0x18] sm:$0xff] %v436
              $region85: #{tpu_custom_call.1} parent=79 // loop_footer
                %s427 = sadd.s32 1, %s423
              $region86: #{tpu_custom_call.1} parent=79 // loop_footer_branch
                %422 = sbr.rel target = $region82
              $region87: #{tpu_custom_call.1} parent=79 // loop_exit
                _
            $region80: #{tpu_custom_call.1} parent=75 // pred_fallthru
              _
            // Predicated region
            $region88: #{tpu_custom_call.1} parent=75 // pred_check
              _
            $region89: #{tpu_custom_call.1} parent=75 // pred_check_branch
              %439 = sbr.rel target = $region91
            $region90: #{tpu_custom_call.1} parent=75 // pred_region
              _
            $region91: #{tpu_custom_call.1} parent=75 // pred_fallthru
              _
          $region76: #{tpu_custom_call.1} parent=71 // pred_fallthru
            _
          %440 = vnop
        $region72: #{tpu_custom_call.1} parent=67 // pred_fallthru
          _
      $region68: #{tpu_custom_call.1} parent=5 // pred_fallthru
        _
      %p441 = scmp.le.s32.totalorder 1, %s25
      %p442 = scmp.lt.s32.totalorder %s25, 3
      %p443 = pnand %p441, %p442
      %p444 = pneg %p443
      // Predicated region
      $region92: #{tpu_custom_call.1} parent=5 // pred_check
        _
      $region93: #{tpu_custom_call.1} parent=5 // pred_check_branch
        %446 = sbr.rel (%p443) target = $region95
      $region94: #{tpu_custom_call.1} parent=5 // pred_region
        %s447 = ssub.s32 %s25, 1
        %s448 = sand.u32 %s38, 1
        %s449 = sand.u32 %s38, 1
        %s450 = smul.addr %s449, 32
        %s451 = scalar_lea.vmem [#allocation3], %s450
        // Predicated region
        $region96: #{tpu_custom_call.1} parent=94 // pred_check
          %p452 = pneg %p51
        $region97: #{tpu_custom_call.1} parent=94 // pred_check_branch
          %454 = sbr.rel (%p452) target = $region99
        $region98: #{tpu_custom_call.1} parent=94 // pred_region
          _
        $region99: #{tpu_custom_call.1} parent=94 // pred_fallthru
          _
        %s455 = sand.u32 %s38, 1
        %s456 = sand.u32 %s38, 1
        %s457 = smul.addr %s456, 32
        %s458 = scalar_lea.vmem [#allocation3], %s457
        %p459 = pneg %p51
        %p460 = pneg %p48
        %p461 = pneg %p72
        %p462 = pneg %p69
        %p463 = pneg %p93
        %p464 = pneg %p90
        %p465 = pneg %p114
        %p466 = pneg %p111
        %p467 = pneg %p135
        %p468 = pneg %p132
        %p469 = pneg %p156
        %p470 = pneg %p153
        %p471 = pneg %p177
        %p472 = pneg %p174
        %p473 = pneg %p198
        %p474 = pneg %p195
        %p475 = pneg %p219
        %p476 = pneg %p216
        %p477 = pneg %p240
        %p478 = pneg %p237
        %p479 = pneg %p261
        %p480 = pneg %p258
        %p481 = pneg %p282
        %p482 = pneg %p279
        %p483 = pneg %p303
        %p484 = pneg %p300
        %p485 = pneg %p324
        %p486 = pneg %p321
        %p487 = pneg %p350
        %p488 = pneg %p347
        %s489 = sand.u32 %s337, 1
        %s490 = scalar_lea.sflag [#allocation5], %s489
        %s491 = sand.u32 %s337, 1
        %s492 = smul.addr %s491, 4
        %s493 = scalar_lea.vmem [#allocation4], %s492
        %s494 = smul.u32 4, %s30
        %s495 = smul.u32 4, %s30
        %v497 = vld [vmem:[%s451] sm:$0xff]
        %v498 = vld [vmem:[%s451 + $0x8] sm:$0xff]
        %v499 = vld [vmem:[%s451 + $0x10] sm:$0x33]
        %v500 = vld [vmem:[%s451 + $0x18] sm:$0x33]
        %v501 = vld [vmem:[%s1] sm:$0xf]
        %v502 = vld [vmem:[%s1 + $0x4] sm:$0xf]
        %v503 = vld [vmem:[%s1 + $0x8] sm:$0xf]
        %v504 = vld [vmem:[%s1 + $0xc] sm:$0xf]
        %v505 = vld [vmem:[%s1 + $0x10] sm:$0xf]
        %v506 = vld [vmem:[%s1 + $0x14] sm:$0xf]
        %v507 = vld [vmem:[%s1 + $0x18] sm:$0xf]
        %v508 = vld [vmem:[%s1 + $0x1c] sm:$0xf]
        %v509 = vld [vmem:[%s1 + $0x20] sm:$0xf]
        %v510 = vld [vmem:[%s1 + $0x24] sm:$0xf]
        %v511 = vld [vmem:[%s1 + $0x28] sm:$0xf]
        %v512 = vld [vmem:[%s1 + $0x2c] sm:$0xf]
        %v513 = vld [vmem:[%s1 + $0x30] sm:$0xf]
        %v514 = vld [vmem:[%s1 + $0x34] sm:$0xf]
        %v515 = vld [vmem:[%s1 + $0x38] sm:$0xf]
        %v516 = vld [vmem:[%s1 + $0x3c] sm:$0xf]
        %v517 = vld [vmem:[%s2] sm:$0xff]
        %v518 = vld [vmem:[%s2 + $0x8] sm:$0xff]
        %v519 = vld [vmem:[%s2 + $0x10] sm:$0xff]
        %v520 = vld [vmem:[%s2 + $0x18] sm:$0xff]
        %v521 = vld [vmem:[%s2 + $0x20] sm:$0xff]
        %v522 = vld [vmem:[%s2 + $0x28] sm:$0xff]
        %v523 = vld [vmem:[%s2 + $0x30] sm:$0xff]
        %v524 = vld [vmem:[%s2 + $0x38] sm:$0xff]
        %v525 = vld [vmem:[%s2 + $0x40] sm:$0xff]
        %v526 = vld [vmem:[%s2 + $0x48] sm:$0xff]
        %v527 = vld [vmem:[%s2 + $0x50] sm:$0xff]
        %v528 = vld [vmem:[%s2 + $0x58] sm:$0xff]
        %v529 = vld [vmem:[%s2 + $0x60] sm:$0xff]
        %v530 = vld [vmem:[%s2 + $0x68] sm:$0xff]
        %v531 = vld [vmem:[%s2 + $0x70] sm:$0xff]
        %v532 = vld [vmem:[%s2 + $0x78] sm:$0xff]
        %534 = vset.pattern.permute.xlu0 0
        %535 = vperm.xlu0 %534, %v517
        %v536 = vpop.permute.xlu0 %535
        %539 = vset.pattern.permute.xlu0 0
        %540 = vperm.xlu0 %539, %v518
        %v541 = vpop.permute.xlu0 %540
        %544 = vset.pattern.permute.xlu0 0
        %545 = vperm.xlu0 %544, %v519
        %v546 = vpop.permute.xlu0 %545
        %549 = vset.pattern.permute.xlu0 0
        %550 = vperm.xlu0 %549, %v520
        %v551 = vpop.permute.xlu0 %550
        %554 = vset.pattern.permute.xlu0 0
        %555 = vperm.xlu0 %554, %v521
        %v556 = vpop.permute.xlu0 %555
        %559 = vset.pattern.permute.xlu0 0
        %560 = vperm.xlu0 %559, %v522
        %v561 = vpop.permute.xlu0 %560
        %564 = vset.pattern.permute.xlu0 0
        %565 = vperm.xlu0 %564, %v523
        %v566 = vpop.permute.xlu0 %565
        %569 = vset.pattern.permute.xlu0 0
        %570 = vperm.xlu0 %569, %v524
        %v571 = vpop.permute.xlu0 %570
        %574 = vset.pattern.permute.xlu0 0
        %575 = vperm.xlu0 %574, %v525
        %v576 = vpop.permute.xlu0 %575
        %579 = vset.pattern.permute.xlu0 0
        %580 = vperm.xlu0 %579, %v526
        %v581 = vpop.permute.xlu0 %580
        %584 = vset.pattern.permute.xlu0 0
        %585 = vperm.xlu0 %584, %v527
        %v586 = vpop.permute.xlu0 %585
        %589 = vset.pattern.permute.xlu0 0
        %590 = vperm.xlu0 %589, %v528
        %v591 = vpop.permute.xlu0 %590
        %594 = vset.pattern.permute.xlu0 0
        %595 = vperm.xlu0 %594, %v529
        %v596 = vpop.permute.xlu0 %595
        %599 = vset.pattern.permute.xlu0 0
        %600 = vperm.xlu0 %599, %v530
        %v601 = vpop.permute.xlu0 %600
        %604 = vset.pattern.permute.xlu0 0
        %605 = vperm.xlu0 %604, %v531
        %v606 = vpop.permute.xlu0 %605
        %609 = vset.pattern.permute.xlu0 0
        %610 = vperm.xlu0 %609, %v532
        %v611 = vpop.permute.xlu0 %610
        %v629 = vunpack.c.l.b16 %v501
        %v630 = vunpack.c.l.b16 %v502
        %v631 = vunpack.c.l.b16 %v503
        %v632 = vunpack.c.l.b16 %v504
        %v633 = vunpack.c.l.b16 %v505
        %v634 = vunpack.c.l.b16 %v506
        %v635 = vunpack.c.l.b16 %v507
        %v636 = vunpack.c.l.b16 %v508
        %v637 = vunpack.c.l.b16 %v509
        %v638 = vunpack.c.l.b16 %v510
        %v639 = vunpack.c.l.b16 %v511
        %v640 = vunpack.c.l.b16 %v512
        %v641 = vunpack.c.l.b16 %v513
        %v642 = vunpack.c.l.b16 %v514
        %v643 = vunpack.c.l.b16 %v515
        %v644 = vunpack.c.l.b16 %v516
        %v645 = vpack.c.b16 %v630, %v629
        %v646 = vpack.c.b16 %v632, %v631
        %v647 = vpack.c.b16 %v634, %v633
        %v648 = vpack.c.b16 %v636, %v635
        %v649 = vpack.c.b16 %v638, %v637
        %v650 = vpack.c.b16 %v640, %v639
        %v651 = vpack.c.b16 %v642, %v641
        %v652 = vpack.c.b16 %v644, %v643
        %v657 = vunpack.c.l.b16 %v497
        %v658 = vunpack.c.h.b16 %v497
        %v659 = vunpack.c.l.b16 %v498
        %v660 = vunpack.c.h.b16 %v498
        %v661 = vunpack.c.l.b16 %v499
        %v662 = vunpack.c.h.b16 %v499
        %v663 = vunpack.c.l.b16 %v500
        %v664 = vunpack.c.h.b16 %v500
        %v665 = vpack.c.b16 %v661, %v657
        %v666 = vpack.c.b16 %v662, %v658
        %v667 = vpack.c.b16 %v663, %v659
        %v668 = vpack.c.b16 %v664, %v660
        %vm669 = vcmask 97280
        %v671 = vsel %vm669, %v645, 0
        %v674 = vsel %vm669, %v646, 0
        %v677 = vsel %vm669, %v647, 0
        %v680 = vsel %vm669, %v648, 0
        %v683 = vsel %vm669, %v649, 0
        %v686 = vsel %vm669, %v650, 0
        %v689 = vsel %vm669, %v651, 0
        %v692 = vsel %vm669, %v652, 0
        %vm694 = vcmask 1045504
        %v696 = vsel %vm694, %v665, 0
        %v699 = vsel %vm694, %v666, 0
        %v702 = vsel %vm694, %v667, 0
        %v705 = vsel %vm694, %v668, 0
        %707 = vmatprep.subr.bf16.mxu0 %v699
        %708 = vmatpush1.bf16.msra.mxu0 %v696
        %709 = vmatprep.subr.bf16.mxu0 0
        %710 = vmatpush1.bf16.msra.mxu0 0
        %711 = vmatprep.subr.bf16.mxu0 0
        %712 = vmatpush1.bf16.msra.mxu0 0
        %713 = vmatprep.subr.bf16.mxu0 0
        %714 = vmatpush1.bf16.msra.mxu0 0
        %715 = vmatprep.subr.bf16.mxu0 0
        %716 = vmatpush1.bf16.msra.mxu0 0
        %717 = vmatprep.subr.bf16.mxu0 0
        %718 = vmatpush1.bf16.msra.mxu0 0
        %719 = vmatprep.subr.bf16.mxu0 0
        %720 = vmatpush1.bf16.msra.mxu0 0
        %721 = vmatprep.subr.bf16.mxu0 0
        %722 = vmatpush1.bf16.msra.mxu0 0
        %723 = vmatprep.subr.bf16.mxu0 0
        %724 = vmatpush1.bf16.msra.mxu0 0
        %725 = vmatprep.subr.bf16.mxu0 0
        %726 = vmatpush1.bf16.msra.mxu0 0
        %727 = vmatprep.subr.bf16.mxu0 0
        %728 = vmatpush1.bf16.msra.mxu0 0
        %729 = vmatprep.subr.bf16.mxu0 0
        %730 = vmatpush1.bf16.msra.mxu0 0
        %731 = vmatprep.subr.bf16.mxu0 0
        %732 = vmatpush1.bf16.msra.mxu0 0
        %733 = vmatprep.subr.bf16.mxu0 0
        %734 = vmatpush1.bf16.msra.mxu0 0
        %735 = vmatprep.subr.bf16.mxu0 0
        %736 = vmatpush1.bf16.msra.mxu0 0
        %737 = vmatprep.subr.bf16.mxu0 0
        %738 = vmatpush1.bf16.msra.mxu0 0
        %739 = vmatprep.mubr.bf16.mxu0 0
        %740 = vmatmul.mubr.bf16.gmra.mrb[0].mxu0 %v671
        %v741 = vpop.f32.mrb[0].mxu0
        %v742 = vadd.f32 %v536, %v741
        %v743 = vpop.f32.mrb[0].mxu0
        %v744 = vadd.f32 %v536, %v743
        %v745 = vpop.f32.mrb[0].mxu0
        %v746 = vadd.f32 %v541, %v745
        %v747 = vpop.f32.mrb[0].mxu0
        %v748 = vadd.f32 %v541, %v747
        %749 = vmatprep.mubr.bf16.mxu0 0
        %750 = vmatmul.mubr.bf16.gmra.mrb[0].mxu0 %v674
        %v751 = vpop.f32.mrb[0].mxu0
        %v752 = vadd.f32 %v546, %v751
        %v753 = vpop.f32.mrb[0].mxu0
        %v754 = vadd.f32 %v546, %v753
        %v755 = vpop.f32.mrb[0].mxu0
        %v756 = vadd.f32 %v551, %v755
        %v757 = vpop.f32.mrb[0].mxu0
        %v758 = vadd.f32 %v551, %v757
        %759 = vmatprep.mubr.bf16.mxu0 0
        %760 = vmatmul.mubr.bf16.gmra.mrb[0].mxu0 %v677
        %v761 = vpop.f32.mrb[0].mxu0
        %v762 = vadd.f32 %v556, %v761
        %v763 = vpop.f32.mrb[0].mxu0
        %v764 = vadd.f32 %v556, %v763
        %v765 = vpop.f32.mrb[0].mxu0
        %v766 = vadd.f32 %v561, %v765
        %v767 = vpop.f32.mrb[0].mxu0
        %v768 = vadd.f32 %v561, %v767
        %769 = vmatprep.mubr.bf16.mxu0 0
        %770 = vmatmul.mubr.bf16.gmra.mrb[0].mxu0 %v680
        %v771 = vpop.f32.mrb[0].mxu0
        %v772 = vadd.f32 %v566, %v771
        %v773 = vpop.f32.mrb[0].mxu0
        %v774 = vadd.f32 %v566, %v773
        %v775 = vpop.f32.mrb[0].mxu0
        %v776 = vadd.f32 %v571, %v775
        %v777 = vpop.f32.mrb[0].mxu0
        %v778 = vadd.f32 %v571, %v777
        %779 = vmatprep.mubr.bf16.mxu0 0
        %780 = vmatmul.mubr.bf16.gmra.mrb[0].mxu0 %v683
        %v781 = vpop.f32.mrb[0].mxu0
        %v782 = vadd.f32 %v576, %v781
        %v783 = vpop.f32.mrb[0].mxu0
        %v784 = vadd.f32 %v576, %v783
        %v785 = vpop.f32.mrb[0].mxu0
        %v786 = vadd.f32 %v581, %v785
        %v787 = vpop.f32.mrb[0].mxu0
        %v788 = vadd.f32 %v581, %v787
        %789 = vmatprep.mubr.bf16.mxu0 0
        %790 = vmatmul.mubr.bf16.gmra.mrb[0].mxu0 %v686
        %v791 = vpop.f32.mrb[0].mxu0
        %v792 = vadd.f32 %v586, %v791
        %v793 = vpop.f32.mrb[0].mxu0
        %v794 = vadd.f32 %v586, %v793
        %v795 = vpop.f32.mrb[0].mxu0
        %v796 = vadd.f32 %v591, %v795
        %v797 = vpop.f32.mrb[0].mxu0
        %v798 = vadd.f32 %v591, %v797
        %799 = vmatprep.mubr.bf16.mxu0 0
        %800 = vmatmul.mubr.bf16.gmra.mrb[0].mxu0 %v689
        %v801 = vpop.f32.mrb[0].mxu0
        %v802 = vadd.f32 %v596, %v801
        %v803 = vpop.f32.mrb[0].mxu0
        %v804 = vadd.f32 %v596, %v803
        %v805 = vpop.f32.mrb[0].mxu0
        %v806 = vadd.f32 %v601, %v805
        %v807 = vpop.f32.mrb[0].mxu0
        %v808 = vadd.f32 %v601, %v807
        %809 = vmatprep.mubr.bf16.mxu0 0
        %810 = vmatmul.mubr.bf16.gmra.mrb[0].mxu0 %v692
        %v811 = vpop.f32.mrb[0].mxu0
        %v812 = vadd.f32 %v606, %v811
        %v813 = vpop.f32.mrb[0].mxu0
        %v814 = vadd.f32 %v606, %v813
        %v815 = vpop.f32.mrb[0].mxu0
        %v816 = vadd.f32 %v611, %v815
        %v817 = vpop.f32.mrb[0].mxu0
        %v818 = vadd.f32 %v611, %v817
        %819 = vdwg.mxu0
        %820 = vmatprep.subr.bf16.mxu0 %v705
        %821 = vmatpush1.bf16.msra.mxu0 %v702
        %822 = vmatprep.subr.bf16.mxu0 0
        %823 = vmatpush1.bf16.msra.mxu0 0
        %824 = vmatprep.subr.bf16.mxu0 0
        %825 = vmatpush1.bf16.msra.mxu0 0
        %826 = vmatprep.subr.bf16.mxu0 0
        %827 = vmatpush1.bf16.msra.mxu0 0
        %828 = vmatprep.subr.bf16.mxu0 0
        %829 = vmatpush1.bf16.msra.mxu0 0
        %830 = vmatprep.subr.bf16.mxu0 0
        %831 = vmatpush1.bf16.msra.mxu0 0
        %832 = vmatprep.subr.bf16.mxu0 0
        %833 = vmatpush1.bf16.msra.mxu0 0
        %834 = vmatprep.subr.bf16.mxu0 0
        %835 = vmatpush1.bf16.msra.mxu0 0
        %836 = vmatprep.subr.bf16.mxu0 0
        %837 = vmatpush1.bf16.msra.mxu0 0
        %838 = vmatprep.subr.bf16.mxu0 0
        %839 = vmatpush1.bf16.msra.mxu0 0
        %840 = vmatprep.subr.bf16.mxu0 0
        %841 = vmatpush1.bf16.msra.mxu0 0
        %842 = vmatprep.subr.bf16.mxu0 0
        %843 = vmatpush1.bf16.msra.mxu0 0
        %844 = vmatprep.subr.bf16.mxu0 0
        %845 = vmatpush1.bf16.msra.mxu0 0
        %846 = vmatprep.subr.bf16.mxu0 0
        %847 = vmatpush1.bf16.msra.mxu0 0
        %848 = vmatprep.subr.bf16.mxu0 0
        %849 = vmatpush1.bf16.msra.mxu0 0
        %850 = vmatprep.subr.bf16.mxu0 0
        %851 = vmatpush1.bf16.msra.mxu0 0
        %852 = vmatprep.mubr.bf16.mxu0 0
        %853 = vmatmul.mubr.bf16.gmra.mrb[0].mxu0 %v671
        %v854 = vpop.f32.mrb[0].mxu0
        %v855 = vadd.f32 %v536, %v854
        %v856 = vpop.f32.mrb[0].mxu0
        %v857 = vadd.f32 %v536, %v856
        %v858 = vpop.f32.mrb[0].mxu0
        %v859 = vadd.f32 %v541, %v858
        %v860 = vpop.f32.mrb[0].mxu0
        %v861 = vadd.f32 %v541, %v860
        %862 = vmatprep.mubr.bf16.mxu0 0
        %863 = vmatmul.mubr.bf16.gmra.mrb[0].mxu0 %v674
        %v864 = vpop.f32.mrb[0].mxu0
        %v865 = vadd.f32 %v546, %v864
        %v866 = vpop.f32.mrb[0].mxu0
        %v867 = vadd.f32 %v546, %v866
        %v868 = vpop.f32.mrb[0].mxu0
        %v869 = vadd.f32 %v551, %v868
        %v870 = vpop.f32.mrb[0].mxu0
        %v871 = vadd.f32 %v551, %v870
        %872 = vmatprep.mubr.bf16.mxu0 0
        %873 = vmatmul.mubr.bf16.gmra.mrb[0].mxu0 %v677
        %v874 = vpop.f32.mrb[0].mxu0
        %v875 = vadd.f32 %v556, %v874
        %v876 = vpop.f32.mrb[0].mxu0
        %v877 = vadd.f32 %v556, %v876
        %v878 = vpop.f32.mrb[0].mxu0
        %v879 = vadd.f32 %v561, %v878
        %v880 = vpop.f32.mrb[0].mxu0
        %v881 = vadd.f32 %v561, %v880
        %882 = vmatprep.mubr.bf16.mxu0 0
        %883 = vmatmul.mubr.bf16.gmra.mrb[0].mxu0 %v680
        %v884 = vpop.f32.mrb[0].mxu0
        %v885 = vadd.f32 %v566, %v884
        %v886 = vpop.f32.mrb[0].mxu0
        %v887 = vadd.f32 %v566, %v886
        %v888 = vpop.f32.mrb[0].mxu0
        %v889 = vadd.f32 %v571, %v888
        %v890 = vpop.f32.mrb[0].mxu0
        %v891 = vadd.f32 %v571, %v890
        %892 = vmatprep.mubr.bf16.mxu0 0
        %893 = vmatmul.mubr.bf16.gmra.mrb[0].mxu0 %v683
        %v894 = vpop.f32.mrb[0].mxu0
        %v895 = vadd.f32 %v576, %v894
        %v896 = vpop.f32.mrb[0].mxu0
        %v897 = vadd.f32 %v576, %v896
        %v898 = vpop.f32.mrb[0].mxu0
        %v899 = vadd.f32 %v581, %v898
        %v900 = vpop.f32.mrb[0].mxu0
        %v901 = vadd.f32 %v581, %v900
        %902 = vmatprep.mubr.bf16.mxu0 0
        %903 = vmatmul.mubr.bf16.gmra.mrb[0].mxu0 %v686
        %v904 = vpop.f32.mrb[0].mxu0
        %v905 = vadd.f32 %v586, %v904
        %v906 = vpop.f32.mrb[0].mxu0
        %v907 = vadd.f32 %v586, %v906
        %v908 = vpop.f32.mrb[0].mxu0
        %v909 = vadd.f32 %v591, %v908
        %v910 = vpop.f32.mrb[0].mxu0
        %v911 = vadd.f32 %v591, %v910
        %912 = vmatprep.mubr.bf16.mxu0 0
        %913 = vmatmul.mubr.bf16.gmra.mrb[0].mxu0 %v689
        %v914 = vpop.f32.mrb[0].mxu0
        %v915 = vadd.f32 %v596, %v914
        %v916 = vpop.f32.mrb[0].mxu0
        %v917 = vadd.f32 %v596, %v916
        %v918 = vpop.f32.mrb[0].mxu0
        %v919 = vadd.f32 %v601, %v918
        %v920 = vpop.f32.mrb[0].mxu0
        %v921 = vadd.f32 %v601, %v920
        %922 = vmatprep.mubr.bf16.mxu0 0
        %923 = vmatmul.mubr.bf16.gmra.mrb[0].mxu0 %v692
        %v924 = vpop.f32.mrb[0].mxu0
        %v925 = vadd.f32 %v606, %v924
        %v926 = vpop.f32.mrb[0].mxu0
        %v927 = vadd.f32 %v606, %v926
        %v928 = vpop.f32.mrb[0].mxu0
        %v929 = vadd.f32 %v611, %v928
        %v930 = vpop.f32.mrb[0].mxu0
        %v931 = vadd.f32 %v611, %v930
        %932 = vdwg.mxu0
        %v933 = vmax.f32 %v742, 0.0
        %v934 = vmax.f32 %v744, 0.0
        %v935 = vmax.f32 %v855, 0.0
        %v936 = vmax.f32 %v857, 0.0
        %v937 = vmax.f32 %v746, 0.0
        %v938 = vmax.f32 %v748, 0.0
        %v939 = vmax.f32 %v859, 0.0
        %v940 = vmax.f32 %v861, 0.0
        %v941 = vmax.f32 %v752, 0.0
        %v942 = vmax.f32 %v754, 0.0
        %v943 = vmax.f32 %v865, 0.0
        %v944 = vmax.f32 %v867, 0.0
        %v945 = vmax.f32 %v756, 0.0
        %v946 = vmax.f32 %v758, 0.0
        %v947 = vmax.f32 %v869, 0.0
        %v948 = vmax.f32 %v871, 0.0
        %v949 = vmax.f32 %v762, 0.0
        %v950 = vmax.f32 %v764, 0.0
        %v951 = vmax.f32 %v875, 0.0
        %v952 = vmax.f32 %v877, 0.0
        %v953 = vmax.f32 %v766, 0.0
        %v954 = vmax.f32 %v768, 0.0
        %v955 = vmax.f32 %v879, 0.0
        %v956 = vmax.f32 %v881, 0.0
        %v957 = vmax.f32 %v772, 0.0
        %v958 = vmax.f32 %v774, 0.0
        %v959 = vmax.f32 %v885, 0.0
        %v960 = vmax.f32 %v887, 0.0
        %v961 = vmax.f32 %v776, 0.0
        %v962 = vmax.f32 %v778, 0.0
        %v963 = vmax.f32 %v889, 0.0
        %v964 = vmax.f32 %v891, 0.0
        %v965 = vmax.f32 %v782, 0.0
        %v966 = vmax.f32 %v784, 0.0
        %v967 = vmax.f32 %v895, 0.0
        %v968 = vmax.f32 %v897, 0.0
        %v969 = vmax.f32 %v786, 0.0
        %v970 = vmax.f32 %v788, 0.0
        %v971 = vmax.f32 %v899, 0.0
        %v972 = vmax.f32 %v901, 0.0
        %v973 = vmax.f32 %v792, 0.0
        %v974 = vmax.f32 %v794, 0.0
        %v975 = vmax.f32 %v905, 0.0
        %v976 = vmax.f32 %v907, 0.0
        %v977 = vmax.f32 %v796, 0.0
        %v978 = vmax.f32 %v798, 0.0
        %v979 = vmax.f32 %v909, 0.0
        %v980 = vmax.f32 %v911, 0.0
        %v981 = vmax.f32 %v802, 0.0
        %v982 = vmax.f32 %v804, 0.0
        %v983 = vmax.f32 %v915, 0.0
        %v984 = vmax.f32 %v917, 0.0
        %v985 = vmax.f32 %v806, 0.0
        %v986 = vmax.f32 %v808, 0.0
        %v987 = vmax.f32 %v919, 0.0
        %v988 = vmax.f32 %v921, 0.0
        %v989 = vmax.f32 %v812, 0.0
        %v990 = vmax.f32 %v814, 0.0
        %v991 = vmax.f32 %v925, 0.0
        %v992 = vmax.f32 %v927, 0.0
        %v993 = vmax.f32 %v816, 0.0
        %v994 = vmax.f32 %v818, 0.0
        %v995 = vmax.f32 %v929, 0.0
        %v996 = vmax.f32 %v931, 0.0
        %v997 = vld [vmem:[%s3] sm:$0xf]
        %v998 = vld [vmem:[%s3 + $0x4] sm:$0xf]
        %v999 = vld [vmem:[%s3 + $0x8] sm:$0xf]
        %v1000 = vld [vmem:[%s3 + $0xc] sm:$0xf]
        %v1001 = vld [vmem:[%s3 + $0x10] sm:$0xf]
        %v1002 = vld [vmem:[%s3 + $0x14] sm:$0xf]
        %v1003 = vld [vmem:[%s3 + $0x18] sm:$0xf]
        %v1004 = vld [vmem:[%s3 + $0x1c] sm:$0xf]
        %v1005 = vld [vmem:[%s3 + $0x20] sm:$0xf]
        %v1006 = vld [vmem:[%s3 + $0x24] sm:$0xf]
        %v1007 = vld [vmem:[%s3 + $0x28] sm:$0xf]
        %v1008 = vld [vmem:[%s3 + $0x2c] sm:$0xf]
        %v1009 = vld [vmem:[%s3 + $0x30] sm:$0xf]
        %v1010 = vld [vmem:[%s3 + $0x34] sm:$0xf]
        %v1011 = vld [vmem:[%s3 + $0x38] sm:$0xf]
        %v1012 = vld [vmem:[%s3 + $0x3c] sm:$0xf]
        %v1013 = vpack.c.bf16 %v937, %v933
        %v1014 = vpack.c.bf16 %v938, %v934
        %v1015 = vpack.c.bf16 %v939, %v935
        %v1016 = vpack.c.bf16 %v940, %v936
        %v1017 = vpack.c.bf16 %v945, %v941
        %v1018 = vpack.c.bf16 %v946, %v942
        %v1019 = vpack.c.bf16 %v947, %v943
        %v1020 = vpack.c.bf16 %v948, %v944
        %v1021 = vpack.c.bf16 %v953, %v949
        %v1022 = vpack.c.bf16 %v954, %v950
        %v1023 = vpack.c.bf16 %v955, %v951
        %v1024 = vpack.c.bf16 %v956, %v952
        %v1025 = vpack.c.bf16 %v961, %v957
        %v1026 = vpack.c.bf16 %v962, %v958
        %v1027 = vpack.c.bf16 %v963, %v959
        %v1028 = vpack.c.bf16 %v964, %v960
        %v1029 = vpack.c.bf16 %v969, %v965
        %v1030 = vpack.c.bf16 %v970, %v966
        %v1031 = vpack.c.bf16 %v971, %v967
        %v1032 = vpack.c.bf16 %v972, %v968
        %v1033 = vpack.c.bf16 %v977, %v973
        %v1034 = vpack.c.bf16 %v978, %v974
        %v1035 = vpack.c.bf16 %v979, %v975
        %v1036 = vpack.c.bf16 %v980, %v976
        %v1037 = vpack.c.bf16 %v985, %v981
        %v1038 = vpack.c.bf16 %v986, %v982
        %v1039 = vpack.c.bf16 %v987, %v983
        %v1040 = vpack.c.bf16 %v988, %v984
        %v1041 = vpack.c.bf16 %v993, %v989
        %v1042 = vpack.c.bf16 %v994, %v990
        %v1043 = vpack.c.bf16 %v995, %v991
        %v1044 = vpack.c.bf16 %v996, %v992
        %v1045 = vld [vmem:[%s4] sm:$0xff]
        %v1046 = vld [vmem:[%s4 + $0x8] sm:$0xff]
        %v1047 = vld [vmem:[%s4 + $0x10] sm:$0xff]
        %v1048 = vld [vmem:[%s4 + $0x18] sm:$0xff]
        %v1049 = vld [vmem:[%s4 + $0x20] sm:$0xff]
        %v1050 = vld [vmem:[%s4 + $0x28] sm:$0xff]
        %v1051 = vld [vmem:[%s4 + $0x30] sm:$0xff]
        %v1052 = vld [vmem:[%s4 + $0x38] sm:$0xff]
        %v1053 = vld [vmem:[%s4 + $0x40] sm:$0xff]
        %v1054 = vld [vmem:[%s4 + $0x48] sm:$0xff]
        %v1055 = vld [vmem:[%s4 + $0x50] sm:$0xff]
        %v1056 = vld [vmem:[%s4 + $0x58] sm:$0xff]
        %v1057 = vld [vmem:[%s4 + $0x60] sm:$0xff]
        %v1058 = vld [vmem:[%s4 + $0x68] sm:$0xff]
        %v1059 = vld [vmem:[%s4 + $0x70] sm:$0xff]
        %v1060 = vld [vmem:[%s4 + $0x78] sm:$0xff]
        %1062 = vset.pattern.permute.xlu0 0
        %1063 = vperm.xlu0 %1062, %v1045
        %v1064 = vpop.permute.xlu0 %1063
        %1067 = vset.pattern.permute.xlu0 0
        %1068 = vperm.xlu0 %1067, %v1046
        %v1069 = vpop.permute.xlu0 %1068
        %1072 = vset.pattern.permute.xlu0 0
        %1073 = vperm.xlu0 %1072, %v1047
        %v1074 = vpop.permute.xlu0 %1073
        %1077 = vset.pattern.permute.xlu0 0
        %1078 = vperm.xlu0 %1077, %v1048
        %v1079 = vpop.permute.xlu0 %1078
        %1082 = vset.pattern.permute.xlu0 0
        %1083 = vperm.xlu0 %1082, %v1049
        %v1084 = vpop.permute.xlu0 %1083
        %1087 = vset.pattern.permute.xlu0 0
        %1088 = vperm.xlu0 %1087, %v1050
        %v1089 = vpop.permute.xlu0 %1088
        %1092 = vset.pattern.permute.xlu0 0
        %1093 = vperm.xlu0 %1092, %v1051
        %v1094 = vpop.permute.xlu0 %1093
        %1097 = vset.pattern.permute.xlu0 0
        %1098 = vperm.xlu0 %1097, %v1052
        %v1099 = vpop.permute.xlu0 %1098
        %1102 = vset.pattern.permute.xlu0 0
        %1103 = vperm.xlu0 %1102, %v1053
        %v1104 = vpop.permute.xlu0 %1103
        %1107 = vset.pattern.permute.xlu0 0
        %1108 = vperm.xlu0 %1107, %v1054
        %v1109 = vpop.permute.xlu0 %1108
        %1112 = vset.pattern.permute.xlu0 0
        %1113 = vperm.xlu0 %1112, %v1055
        %v1114 = vpop.permute.xlu0 %1113
        %1117 = vset.pattern.permute.xlu0 0
        %1118 = vperm.xlu0 %1117, %v1056
        %v1119 = vpop.permute.xlu0 %1118
        %1122 = vset.pattern.permute.xlu0 0
        %1123 = vperm.xlu0 %1122, %v1057
        %v1124 = vpop.permute.xlu0 %1123
        %1127 = vset.pattern.permute.xlu0 0
        %1128 = vperm.xlu0 %1127, %v1058
        %v1129 = vpop.permute.xlu0 %1128
        %1132 = vset.pattern.permute.xlu0 0
        %1133 = vperm.xlu0 %1132, %v1059
        %v1134 = vpop.permute.xlu0 %1133
        %1137 = vset.pattern.permute.xlu0 0
        %1138 = vperm.xlu0 %1137, %v1060
        %v1139 = vpop.permute.xlu0 %1138
        %v1157 = vunpack.c.l.b16 %v997
        %v1158 = vunpack.c.l.b16 %v998
        %v1159 = vunpack.c.l.b16 %v999
        %v1160 = vunpack.c.l.b16 %v1000
        %v1161 = vunpack.c.l.b16 %v1001
        %v1162 = vunpack.c.l.b16 %v1002
        %v1163 = vunpack.c.l.b16 %v1003
        %v1164 = vunpack.c.l.b16 %v1004
        %v1165 = vunpack.c.l.b16 %v1005
        %v1166 = vunpack.c.l.b16 %v1006
        %v1167 = vunpack.c.l.b16 %v1007
        %v1168 = vunpack.c.l.b16 %v1008
        %v1169 = vunpack.c.l.b16 %v1009
        %v1170 = vunpack.c.l.b16 %v1010
        %v1171 = vunpack.c.l.b16 %v1011
        %v1172 = vunpack.c.l.b16 %v1012
        %v1173 = vpack.c.b16 %v1158, %v1157
        %v1174 = vpack.c.b16 %v1160, %v1159
        %v1175 = vpack.c.b16 %v1162, %v1161
        %v1176 = vpack.c.b16 %v1164, %v1163
        %v1177 = vpack.c.b16 %v1166, %v1165
        %v1178 = vpack.c.b16 %v1168, %v1167
        %v1179 = vpack.c.b16 %v1170, %v1169
        %v1180 = vpack.c.b16 %v1172, %v1171
        %1189 = vmatprep.subr.bf16.mxu0 %v1014
        %1190 = vmatpush1.bf16.msra.mxu0 %v1013
        %1191 = vmatprep.subr.bf16.mxu0 %v1018
        %1192 = vmatpush1.bf16.msra.mxu0 %v1017
        %1193 = vmatprep.subr.bf16.mxu0 %v1022
        %1194 = vmatpush1.bf16.msra.mxu0 %v1021
        %1195 = vmatprep.subr.bf16.mxu0 %v1026
        %1196 = vmatpush1.bf16.msra.mxu0 %v1025
        %1197 = vmatprep.subr.bf16.mxu0 %v1030
        %1198 = vmatpush1.bf16.msra.mxu0 %v1029
        %1199 = vmatprep.subr.bf16.mxu0 %v1034
        %1200 = vmatpush1.bf16.msra.mxu0 %v1033
        %1201 = vmatprep.subr.bf16.mxu0 %v1038
        %1202 = vmatpush1.bf16.msra.mxu0 %v1037
        %1203 = vmatprep.subr.bf16.mxu0 %v1042
        %1204 = vmatpush1.bf16.msra.mxu0 %v1041
        %1205 = vmatprep.subr.bf16.mxu0 0
        %1206 = vmatpush1.bf16.msra.mxu0 0
        %1207 = vmatprep.subr.bf16.mxu0 0
        %1208 = vmatpush1.bf16.msra.mxu0 0
        %1209 = vmatprep.subr.bf16.mxu0 0
        %1210 = vmatpush1.bf16.msra.mxu0 0
        %1211 = vmatprep.subr.bf16.mxu0 0
        %1212 = vmatpush1.bf16.msra.mxu0 0
        %1213 = vmatprep.subr.bf16.mxu0 0
        %1214 = vmatpush1.bf16.msra.mxu0 0
        %1215 = vmatprep.subr.bf16.mxu0 0
        %1216 = vmatpush1.bf16.msra.mxu0 0
        %1217 = vmatprep.subr.bf16.mxu0 0
        %1218 = vmatpush1.bf16.msra.mxu0 0
        %1219 = vmatprep.subr.bf16.mxu0 0
        %1220 = vmatpush1.bf16.msra.mxu0 0
        %1221 = vmatprep.mubr.bf16.mxu0 0
        %1222 = vmatmul.mubr.bf16.gmra.mrb[0].mxu0 %v1173
        %v1223 = vpop.f32.mrb[0].mxu0
        %v1224 = vadd.f32 %v1064, %v1223
        %v1225 = vpop.f32.mrb[0].mxu0
        %v1226 = vadd.f32 %v1064, %v1225
        %v1227 = vpop.f32.mrb[0].mxu0
        %v1228 = vadd.f32 %v1069, %v1227
        %v1229 = vpop.f32.mrb[0].mxu0
        %v1230 = vadd.f32 %v1069, %v1229
        %1231 = vmatprep.mubr.bf16.mxu0 0
        %1232 = vmatmul.mubr.bf16.gmra.mrb[0].mxu0 %v1174
        %v1233 = vpop.f32.mrb[0].mxu0
        %v1234 = vadd.f32 %v1074, %v1233
        %v1235 = vpop.f32.mrb[0].mxu0
        %v1236 = vadd.f32 %v1074, %v1235
        %v1237 = vpop.f32.mrb[0].mxu0
        %v1238 = vadd.f32 %v1079, %v1237
        %v1239 = vpop.f32.mrb[0].mxu0
        %v1240 = vadd.f32 %v1079, %v1239
        %1241 = vmatprep.mubr.bf16.mxu0 0
        %1242 = vmatmul.mubr.bf16.gmra.mrb[0].mxu0 %v1175
        %v1243 = vpop.f32.mrb[0].mxu0
        %v1244 = vadd.f32 %v1084, %v1243
        %v1245 = vpop.f32.mrb[0].mxu0
        %v1246 = vadd.f32 %v1084, %v1245
        %v1247 = vpop.f32.mrb[0].mxu0
        %v1248 = vadd.f32 %v1089, %v1247
        %v1249 = vpop.f32.mrb[0].mxu0
        %v1250 = vadd.f32 %v1089, %v1249
        %1251 = vmatprep.mubr.bf16.mxu0 0
        %1252 = vmatmul.mubr.bf16.gmra.mrb[0].mxu0 %v1176
        %v1253 = vpop.f32.mrb[0].mxu0
        %v1254 = vadd.f32 %v1094, %v1253
        %v1255 = vpop.f32.mrb[0].mxu0
        %v1256 = vadd.f32 %v1094, %v1255
        %v1257 = vpop.f32.mrb[0].mxu0
        %v1258 = vadd.f32 %v1099, %v1257
        %v1259 = vpop.f32.mrb[0].mxu0
        %v1260 = vadd.f32 %v1099, %v1259
        %1261 = vmatprep.mubr.bf16.mxu0 0
        %1262 = vmatmul.mubr.bf16.gmra.mrb[0].mxu0 %v1177
        %v1263 = vpop.f32.mrb[0].mxu0
        %v1264 = vadd.f32 %v1104, %v1263
        %v1265 = vpop.f32.mrb[0].mxu0
        %v1266 = vadd.f32 %v1104, %v1265
        %v1267 = vpop.f32.mrb[0].mxu0
        %v1268 = vadd.f32 %v1109, %v1267
        %v1269 = vpop.f32.mrb[0].mxu0
        %v1270 = vadd.f32 %v1109, %v1269
        %1271 = vmatprep.mubr.bf16.mxu0 0
        %1272 = vmatmul.mubr.bf16.gmra.mrb[0].mxu0 %v1178
        %v1273 = vpop.f32.mrb[0].mxu0
        %v1274 = vadd.f32 %v1114, %v1273
        %v1275 = vpop.f32.mrb[0].mxu0
        %v1276 = vadd.f32 %v1114, %v1275
        %v1277 = vpop.f32.mrb[0].mxu0
        %v1278 = vadd.f32 %v1119, %v1277
        %v1279 = vpop.f32.mrb[0].mxu0
        %v1280 = vadd.f32 %v1119, %v1279
        %1281 = vmatprep.mubr.bf16.mxu0 0
        %1282 = vmatmul.mubr.bf16.gmra.mrb[0].mxu0 %v1179
        %v1283 = vpop.f32.mrb[0].mxu0
        %v1284 = vadd.f32 %v1124, %v1283
        %v1285 = vpop.f32.mrb[0].mxu0
        %v1286 = vadd.f32 %v1124, %v1285
        %v1287 = vpop.f32.mrb[0].mxu0
        %v1288 = vadd.f32 %v1129, %v1287
        %v1289 = vpop.f32.mrb[0].mxu0
        %v1290 = vadd.f32 %v1129, %v1289
        %1291 = vmatprep.mubr.bf16.mxu0 0
        %1292 = vmatmul.mubr.bf16.gmra.mrb[0].mxu0 %v1180
        %v1293 = vpop.f32.mrb[0].mxu0
        %v1294 = vadd.f32 %v1134, %v1293
        %v1295 = vpop.f32.mrb[0].mxu0
        %v1296 = vadd.f32 %v1134, %v1295
        %v1297 = vpop.f32.mrb[0].mxu0
        %v1298 = vadd.f32 %v1139, %v1297
        %v1299 = vpop.f32.mrb[0].mxu0
        %v1300 = vadd.f32 %v1139, %v1299
        %1301 = vdwg.mxu0
        %1302 = vmatprep.subr.bf16.mxu0 %v1016
        %1303 = vmatpush1.bf16.msra.mxu0 %v1015
        %1304 = vmatprep.subr.bf16.mxu0 %v1020
        %1305 = vmatpush1.bf16.msra.mxu0 %v1019
        %1306 = vmatprep.subr.bf16.mxu0 %v1024
        %1307 = vmatpush1.bf16.msra.mxu0 %v1023
        %1308 = vmatprep.subr.bf16.mxu0 %v1028
        %1309 = vmatpush1.bf16.msra.mxu0 %v1027
        %1310 = vmatprep.subr.bf16.mxu0 %v1032
        %1311 = vmatpush1.bf16.msra.mxu0 %v1031
        %1312 = vmatprep.subr.bf16.mxu0 %v1036
        %1313 = vmatpush1.bf16.msra.mxu0 %v1035
        %1314 = vmatprep.subr.bf16.mxu0 %v1040
        %1315 = vmatpush1.bf16.msra.mxu0 %v1039
        %1316 = vmatprep.subr.bf16.mxu0 %v1044
        %1317 = vmatpush1.bf16.msra.mxu0 %v1043
        %1318 = vmatprep.subr.bf16.mxu0 0
        %1319 = vmatpush1.bf16.msra.mxu0 0
        %1320 = vmatprep.subr.bf16.mxu0 0
        %1321 = vmatpush1.bf16.msra.mxu0 0
        %1322 = vmatprep.subr.bf16.mxu0 0
        %1323 = vmatpush1.bf16.msra.mxu0 0
        %1324 = vmatprep.subr.bf16.mxu0 0
        %1325 = vmatpush1.bf16.msra.mxu0 0
        %1326 = vmatprep.subr.bf16.mxu0 0
        %1327 = vmatpush1.bf16.msra.mxu0 0
        %1328 = vmatprep.subr.bf16.mxu0 0
        %1329 = vmatpush1.bf16.msra.mxu0 0
        %1330 = vmatprep.subr.bf16.mxu0 0
        %1331 = vmatpush1.bf16.msra.mxu0 0
        %1332 = vmatprep.subr.bf16.mxu0 0
        %1333 = vmatpush1.bf16.msra.mxu0 0
        %1334 = vmatprep.mubr.bf16.mxu0 0
        %1335 = vmatmul.mubr.bf16.gmra.mrb[0].mxu0 %v1173
        %v1336 = vpop.f32.mrb[0].mxu0
        %v1337 = vadd.f32 %v1064, %v1336
        %v1338 = vpop.f32.mrb[0].mxu0
        %v1339 = vadd.f32 %v1064, %v1338
        %v1340 = vpop.f32.mrb[0].mxu0
        %v1341 = vadd.f32 %v1069, %v1340
        %v1342 = vpop.f32.mrb[0].mxu0
        %v1343 = vadd.f32 %v1069, %v1342
        %1344 = vmatprep.mubr.bf16.mxu0 0
        %1345 = vmatmul.mubr.bf16.gmra.mrb[0].mxu0 %v1174
        %v1346 = vpop.f32.mrb[0].mxu0
        %v1347 = vadd.f32 %v1074, %v1346
        %v1348 = vpop.f32.mrb[0].mxu0
        %v1349 = vadd.f32 %v1074, %v1348
        %v1350 = vpop.f32.mrb[0].mxu0
        %v1351 = vadd.f32 %v1079, %v1350
        %v1352 = vpop.f32.mrb[0].mxu0
        %v1353 = vadd.f32 %v1079, %v1352
        %1354 = vmatprep.mubr.bf16.mxu0 0
        %1355 = vmatmul.mubr.bf16.gmra.mrb[0].mxu0 %v1175
        %v1356 = vpop.f32.mrb[0].mxu0
        %v1357 = vadd.f32 %v1084, %v1356
        %v1358 = vpop.f32.mrb[0].mxu0
        %v1359 = vadd.f32 %v1084, %v1358
        %v1360 = vpop.f32.mrb[0].mxu0
        %v1361 = vadd.f32 %v1089, %v1360
        %v1362 = vpop.f32.mrb[0].mxu0
        %v1363 = vadd.f32 %v1089, %v1362
        %1364 = vmatprep.mubr.bf16.mxu0 0
        %1365 = vmatmul.mubr.bf16.gmra.mrb[0].mxu0 %v1176
        %v1366 = vpop.f32.mrb[0].mxu0
        %v1367 = vadd.f32 %v1094, %v1366
        %v1368 = vpop.f32.mrb[0].mxu0
        %v1369 = vadd.f32 %v1094, %v1368
        %v1370 = vpop.f32.mrb[0].mxu0
        %v1371 = vadd.f32 %v1099, %v1370
        %v1372 = vpop.f32.mrb[0].mxu0
        %v1373 = vadd.f32 %v1099, %v1372
        %1374 = vmatprep.mubr.bf16.mxu0 0
        %1375 = vmatmul.mubr.bf16.gmra.mrb[0].mxu0 %v1177
        %v1376 = vpop.f32.mrb[0].mxu0
        %v1377 = vadd.f32 %v1104, %v1376
        %v1378 = vpop.f32.mrb[0].mxu0
        %v1379 = vadd.f32 %v1104, %v1378
        %v1380 = vpop.f32.mrb[0].mxu0
        %v1381 = vadd.f32 %v1109, %v1380
        %v1382 = vpop.f32.mrb[0].mxu0
        %v1383 = vadd.f32 %v1109, %v1382
        %1384 = vmatprep.mubr.bf16.mxu0 0
        %1385 = vmatmul.mubr.bf16.gmra.mrb[0].mxu0 %v1178
        %v1386 = vpop.f32.mrb[0].mxu0
        %v1387 = vadd.f32 %v1114, %v1386
        %v1388 = vpop.f32.mrb[0].mxu0
        %v1389 = vadd.f32 %v1114, %v1388
        %v1390 = vpop.f32.mrb[0].mxu0
        %v1391 = vadd.f32 %v1119, %v1390
        %v1392 = vpop.f32.mrb[0].mxu0
        %v1393 = vadd.f32 %v1119, %v1392
        %1394 = vmatprep.mubr.bf16.mxu0 0
        %1395 = vmatmul.mubr.bf16.gmra.mrb[0].mxu0 %v1179
        %v1396 = vpop.f32.mrb[0].mxu0
        %v1397 = vadd.f32 %v1124, %v1396
        %v1398 = vpop.f32.mrb[0].mxu0
        %v1399 = vadd.f32 %v1124, %v1398
        %v1400 = vpop.f32.mrb[0].mxu0
        %v1401 = vadd.f32 %v1129, %v1400
        %v1402 = vpop.f32.mrb[0].mxu0
        %v1403 = vadd.f32 %v1129, %v1402
        %1404 = vmatprep.mubr.bf16.mxu0 0
        %1405 = vmatmul.mubr.bf16.gmra.mrb[0].mxu0 %v1180
        %v1406 = vpop.f32.mrb[0].mxu0
        %v1407 = vadd.f32 %v1134, %v1406
        %v1408 = vpop.f32.mrb[0].mxu0
        %v1409 = vadd.f32 %v1134, %v1408
        %v1410 = vpop.f32.mrb[0].mxu0
        %v1411 = vadd.f32 %v1139, %v1410
        %v1412 = vpop.f32.mrb[0].mxu0
        %v1413 = vadd.f32 %v1139, %v1412
        %1414 = vdwg.mxu0
        %v1415 = vmax.f32 %v1224, 0.0
        %v1416 = vmax.f32 %v1226, 0.0
        %v1417 = vmax.f32 %v1337, 0.0
        %v1418 = vmax.f32 %v1339, 0.0
        %v1419 = vmax.f32 %v1228, 0.0
        %v1420 = vmax.f32 %v1230, 0.0
        %v1421 = vmax.f32 %v1341, 0.0
        %v1422 = vmax.f32 %v1343, 0.0
        %v1423 = vmax.f32 %v1234, 0.0
        %v1424 = vmax.f32 %v1236, 0.0
        %v1425 = vmax.f32 %v1347, 0.0
        %v1426 = vmax.f32 %v1349, 0.0
        %v1427 = vmax.f32 %v1238, 0.0
        %v1428 = vmax.f32 %v1240, 0.0
        %v1429 = vmax.f32 %v1351, 0.0
        %v1430 = vmax.f32 %v1353, 0.0
        %v1431 = vmax.f32 %v1244, 0.0
        %v1432 = vmax.f32 %v1246, 0.0
        %v1433 = vmax.f32 %v1357, 0.0
        %v1434 = vmax.f32 %v1359, 0.0
        %v1435 = vmax.f32 %v1248, 0.0
        %v1436 = vmax.f32 %v1250, 0.0
        %v1437 = vmax.f32 %v1361, 0.0
        %v1438 = vmax.f32 %v1363, 0.0
        %v1439 = vmax.f32 %v1254, 0.0
        %v1440 = vmax.f32 %v1256, 0.0
        %v1441 = vmax.f32 %v1367, 0.0
        %v1442 = vmax.f32 %v1369, 0.0
        %v1443 = vmax.f32 %v1258, 0.0
        %v1444 = vmax.f32 %v1260, 0.0
        %v1445 = vmax.f32 %v1371, 0.0
        %v1446 = vmax.f32 %v1373, 0.0
        %v1447 = vmax.f32 %v1264, 0.0
        %v1448 = vmax.f32 %v1266, 0.0
        %v1449 = vmax.f32 %v1377, 0.0
        %v1450 = vmax.f32 %v1379, 0.0
        %v1451 = vmax.f32 %v1268, 0.0
        %v1452 = vmax.f32 %v1270, 0.0
        %v1453 = vmax.f32 %v1381, 0.0
        %v1454 = vmax.f32 %v1383, 0.0
        %v1455 = vmax.f32 %v1274, 0.0
        %v1456 = vmax.f32 %v1276, 0.0
        %v1457 = vmax.f32 %v1387, 0.0
        %v1458 = vmax.f32 %v1389, 0.0
        %v1459 = vmax.f32 %v1278, 0.0
        %v1460 = vmax.f32 %v1280, 0.0
        %v1461 = vmax.f32 %v1391, 0.0
        %v1462 = vmax.f32 %v1393, 0.0
        %v1463 = vmax.f32 %v1284, 0.0
        %v1464 = vmax.f32 %v1286, 0.0
        %v1465 = vmax.f32 %v1397, 0.0
        %v1466 = vmax.f32 %v1399, 0.0
        %v1467 = vmax.f32 %v1288, 0.0
        %v1468 = vmax.f32 %v1290, 0.0
        %v1469 = vmax.f32 %v1401, 0.0
        %v1470 = vmax.f32 %v1403, 0.0
        %v1471 = vmax.f32 %v1294, 0.0
        %v1472 = vmax.f32 %v1296, 0.0
        %v1473 = vmax.f32 %v1407, 0.0
        %v1474 = vmax.f32 %v1409, 0.0
        %v1475 = vmax.f32 %v1298, 0.0
        %v1476 = vmax.f32 %v1300, 0.0
        %v1477 = vmax.f32 %v1411, 0.0
        %v1478 = vmax.f32 %v1413, 0.0
        %v1479 = vld [vmem:[%s5] sm:$0xf]
        %v1480 = vld [vmem:[%s5 + $0x4] sm:$0xf]
        %v1481 = vld [vmem:[%s5 + $0x8] sm:$0xf]
        %v1482 = vld [vmem:[%s5 + $0xc] sm:$0xf]
        %v1483 = vld [vmem:[%s5 + $0x10] sm:$0xf]
        %v1484 = vld [vmem:[%s5 + $0x14] sm:$0xf]
        %v1485 = vld [vmem:[%s5 + $0x18] sm:$0xf]
        %v1486 = vld [vmem:[%s5 + $0x1c] sm:$0xf]
        %v1487 = vld [vmem:[%s5 + $0x20] sm:$0xf]
        %v1488 = vld [vmem:[%s5 + $0x24] sm:$0xf]
        %v1489 = vld [vmem:[%s5 + $0x28] sm:$0xf]
        %v1490 = vld [vmem:[%s5 + $0x2c] sm:$0xf]
        %v1491 = vld [vmem:[%s5 + $0x30] sm:$0xf]
        %v1492 = vld [vmem:[%s5 + $0x34] sm:$0xf]
        %v1493 = vld [vmem:[%s5 + $0x38] sm:$0xf]
        %v1494 = vld [vmem:[%s5 + $0x3c] sm:$0xf]
        %v1495 = vpack.c.bf16 %v1419, %v1415
        %v1496 = vpack.c.bf16 %v1420, %v1416
        %v1497 = vpack.c.bf16 %v1421, %v1417
        %v1498 = vpack.c.bf16 %v1422, %v1418
        %v1499 = vpack.c.bf16 %v1427, %v1423
        %v1500 = vpack.c.bf16 %v1428, %v1424
        %v1501 = vpack.c.bf16 %v1429, %v1425
        %v1502 = vpack.c.bf16 %v1430, %v1426
        %v1503 = vpack.c.bf16 %v1435, %v1431
        %v1504 = vpack.c.bf16 %v1436, %v1432
        %v1505 = vpack.c.bf16 %v1437, %v1433
        %v1506 = vpack.c.bf16 %v1438, %v1434
        %v1507 = vpack.c.bf16 %v1443, %v1439
        %v1508 = vpack.c.bf16 %v1444, %v1440
        %v1509 = vpack.c.bf16 %v1445, %v1441
        %v1510 = vpack.c.bf16 %v1446, %v1442
        %v1511 = vpack.c.bf16 %v1451, %v1447
        %v1512 = vpack.c.bf16 %v1452, %v1448
        %v1513 = vpack.c.bf16 %v1453, %v1449
        %v1514 = vpack.c.bf16 %v1454, %v1450
        %v1515 = vpack.c.bf16 %v1459, %v1455
        %v1516 = vpack.c.bf16 %v1460, %v1456
        %v1517 = vpack.c.bf16 %v1461, %v1457
        %v1518 = vpack.c.bf16 %v1462, %v1458
        %v1519 = vpack.c.bf16 %v1467, %v1463
        %v1520 = vpack.c.bf16 %v1468, %v1464
        %v1521 = vpack.c.bf16 %v1469, %v1465
        %v1522 = vpack.c.bf16 %v1470, %v1466
        %v1523 = vpack.c.bf16 %v1475, %v1471
        %v1524 = vpack.c.bf16 %v1476, %v1472
        %v1525 = vpack.c.bf16 %v1477, %v1473
        %v1526 = vpack.c.bf16 %v1478, %v1474
        %v1527 = vld [vmem:[%s6] sm:$0xff]
        %v1528 = vld [vmem:[%s6 + $0x8] sm:$0xff]
        %v1529 = vld [vmem:[%s6 + $0x10] sm:$0xff]
        %v1530 = vld [vmem:[%s6 + $0x18] sm:$0xff]
        %v1531 = vld [vmem:[%s6 + $0x20] sm:$0xff]
        %v1532 = vld [vmem:[%s6 + $0x28] sm:$0xff]
        %v1533 = vld [vmem:[%s6 + $0x30] sm:$0xff]
        %v1534 = vld [vmem:[%s6 + $0x38] sm:$0xff]
        %v1535 = vld [vmem:[%s6 + $0x40] sm:$0xff]
        %v1536 = vld [vmem:[%s6 + $0x48] sm:$0xff]
        %v1537 = vld [vmem:[%s6 + $0x50] sm:$0xff]
        %v1538 = vld [vmem:[%s6 + $0x58] sm:$0xff]
        %v1539 = vld [vmem:[%s6 + $0x60] sm:$0xff]
        %v1540 = vld [vmem:[%s6 + $0x68] sm:$0xff]
        %v1541 = vld [vmem:[%s6 + $0x70] sm:$0xff]
        %v1542 = vld [vmem:[%s6 + $0x78] sm:$0xff]
        %1544 = vset.pattern.permute.xlu0 0
        %1545 = vperm.xlu0 %1544, %v1527
        %v1546 = vpop.permute.xlu0 %1545
        %1549 = vset.pattern.permute.xlu0 0
        %1550 = vperm.xlu0 %1549, %v1528
        %v1551 = vpop.permute.xlu0 %1550
        %1554 = vset.pattern.permute.xlu0 0
        %1555 = vperm.xlu0 %1554, %v1529
        %v1556 = vpop.permute.xlu0 %1555
        %1559 = vset.pattern.permute.xlu0 0
        %1560 = vperm.xlu0 %1559, %v1530
        %v1561 = vpop.permute.xlu0 %1560
        %1564 = vset.pattern.permute.xlu0 0
        %1565 = vperm.xlu0 %1564, %v1531
        %v1566 = vpop.permute.xlu0 %1565
        %1569 = vset.pattern.permute.xlu0 0
        %1570 = vperm.xlu0 %1569, %v1532
        %v1571 = vpop.permute.xlu0 %1570
        %1574 = vset.pattern.permute.xlu0 0
        %1575 = vperm.xlu0 %1574, %v1533
        %v1576 = vpop.permute.xlu0 %1575
        %1579 = vset.pattern.permute.xlu0 0
        %1580 = vperm.xlu0 %1579, %v1534
        %v1581 = vpop.permute.xlu0 %1580
        %1584 = vset.pattern.permute.xlu0 0
        %1585 = vperm.xlu0 %1584, %v1535
        %v1586 = vpop.permute.xlu0 %1585
        %1589 = vset.pattern.permute.xlu0 0
        %1590 = vperm.xlu0 %1589, %v1536
        %v1591 = vpop.permute.xlu0 %1590
        %1594 = vset.pattern.permute.xlu0 0
        %1595 = vperm.xlu0 %1594, %v1537
        %v1596 = vpop.permute.xlu0 %1595
        %1599 = vset.pattern.permute.xlu0 0
        %1600 = vperm.xlu0 %1599, %v1538
        %v1601 = vpop.permute.xlu0 %1600
        %1604 = vset.pattern.permute.xlu0 0
        %1605 = vperm.xlu0 %1604, %v1539
        %v1606 = vpop.permute.xlu0 %1605
        %1609 = vset.pattern.permute.xlu0 0
        %1610 = vperm.xlu0 %1609, %v1540
        %v1611 = vpop.permute.xlu0 %1610
        %1614 = vset.pattern.permute.xlu0 0
        %1615 = vperm.xlu0 %1614, %v1541
        %v1616 = vpop.permute.xlu0 %1615
        %1619 = vset.pattern.permute.xlu0 0
        %1620 = vperm.xlu0 %1619, %v1542
        %v1621 = vpop.permute.xlu0 %1620
        %v1639 = vunpack.c.l.b16 %v1479
        %v1640 = vunpack.c.l.b16 %v1480
        %v1641 = vunpack.c.l.b16 %v1481
        %v1642 = vunpack.c.l.b16 %v1482
        %v1643 = vunpack.c.l.b16 %v1483
        %v1644 = vunpack.c.l.b16 %v1484
        %v1645 = vunpack.c.l.b16 %v1485
        %v1646 = vunpack.c.l.b16 %v1486
        %v1647 = vunpack.c.l.b16 %v1487
        %v1648 = vunpack.c.l.b16 %v1488
        %v1649 = vunpack.c.l.b16 %v1489
        %v1650 = vunpack.c.l.b16 %v1490
        %v1651 = vunpack.c.l.b16 %v1491
        %v1652 = vunpack.c.l.b16 %v1492
        %v1653 = vunpack.c.l.b16 %v1493
        %v1654 = vunpack.c.l.b16 %v1494
        %v1655 = vpack.c.b16 %v1640, %v1639
        %v1656 = vpack.c.b16 %v1642, %v1641
        %v1657 = vpack.c.b16 %v1644, %v1643
        %v1658 = vpack.c.b16 %v1646, %v1645
        %v1659 = vpack.c.b16 %v1648, %v1647
        %v1660 = vpack.c.b16 %v1650, %v1649
        %v1661 = vpack.c.b16 %v1652, %v1651
        %v1662 = vpack.c.b16 %v1654, %v1653
        %1671 = vmatprep.subr.bf16.mxu0 %v1496
        %1672 = vmatpush1.bf16.msra.mxu0 %v1495
        %1673 = vmatprep.subr.bf16.mxu0 %v1500
        %1674 = vmatpush1.bf16.msra.mxu0 %v1499
        %1675 = vmatprep.subr.bf16.mxu0 %v1504
        %1676 = vmatpush1.bf16.msra.mxu0 %v1503
        %1677 = vmatprep.subr.bf16.mxu0 %v1508
        %1678 = vmatpush1.bf16.msra.mxu0 %v1507
        %1679 = vmatprep.subr.bf16.mxu0 %v1512
        %1680 = vmatpush1.bf16.msra.mxu0 %v1511
        %1681 = vmatprep.subr.bf16.mxu0 %v1516
        %1682 = vmatpush1.bf16.msra.mxu0 %v1515
        %1683 = vmatprep.subr.bf16.mxu0 %v1520
        %1684 = vmatpush1.bf16.msra.mxu0 %v1519
        %1685 = vmatprep.subr.bf16.mxu0 %v1524
        %1686 = vmatpush1.bf16.msra.mxu0 %v1523
        %1687 = vmatprep.subr.bf16.mxu0 0
        %1688 = vmatpush1.bf16.msra.mxu0 0
        %1689 = vmatprep.subr.bf16.mxu0 0
        %1690 = vmatpush1.bf16.msra.mxu0 0
        %1691 = vmatprep.subr.bf16.mxu0 0
        %1692 = vmatpush1.bf16.msra.mxu0 0
        %1693 = vmatprep.subr.bf16.mxu0 0
        %1694 = vmatpush1.bf16.msra.mxu0 0
        %1695 = vmatprep.subr.bf16.mxu0 0
        %1696 = vmatpush1.bf16.msra.mxu0 0
        %1697 = vmatprep.subr.bf16.mxu0 0
        %1698 = vmatpush1.bf16.msra.mxu0 0
        %1699 = vmatprep.subr.bf16.mxu0 0
        %1700 = vmatpush1.bf16.msra.mxu0 0
        %1701 = vmatprep.subr.bf16.mxu0 0
        %1702 = vmatpush1.bf16.msra.mxu0 0
        %1703 = vmatprep.mubr.bf16.mxu0 0
        %1704 = vmatmul.mubr.bf16.gmra.mrb[0].mxu0 %v1655
        %v1705 = vpop.f32.mrb[0].mxu0
        %v1706 = vadd.f32 %v1546, %v1705
        %v1707 = vpop.f32.mrb[0].mxu0
        %v1708 = vadd.f32 %v1546, %v1707
        %v1709 = vpop.f32.mrb[0].mxu0
        %v1710 = vadd.f32 %v1551, %v1709
        %v1711 = vpop.f32.mrb[0].mxu0
        %v1712 = vadd.f32 %v1551, %v1711
        %1713 = vmatprep.mubr.bf16.mxu0 0
        %1714 = vmatmul.mubr.bf16.gmra.mrb[0].mxu0 %v1656
        %v1715 = vpop.f32.mrb[0].mxu0
        %v1716 = vadd.f32 %v1556, %v1715
        %v1717 = vpop.f32.mrb[0].mxu0
        %v1718 = vadd.f32 %v1556, %v1717
        %v1719 = vpop.f32.mrb[0].mxu0
        %v1720 = vadd.f32 %v1561, %v1719
        %v1721 = vpop.f32.mrb[0].mxu0
        %v1722 = vadd.f32 %v1561, %v1721
        %1723 = vmatprep.mubr.bf16.mxu0 0
        %1724 = vmatmul.mubr.bf16.gmra.mrb[0].mxu0 %v1657
        %v1725 = vpop.f32.mrb[0].mxu0
        %v1726 = vadd.f32 %v1566, %v1725
        %v1727 = vpop.f32.mrb[0].mxu0
        %v1728 = vadd.f32 %v1566, %v1727
        %v1729 = vpop.f32.mrb[0].mxu0
        %v1730 = vadd.f32 %v1571, %v1729
        %v1731 = vpop.f32.mrb[0].mxu0
        %v1732 = vadd.f32 %v1571, %v1731
        %1733 = vmatprep.mubr.bf16.mxu0 0
        %1734 = vmatmul.mubr.bf16.gmra.mrb[0].mxu0 %v1658
        %v1735 = vpop.f32.mrb[0].mxu0
        %v1736 = vadd.f32 %v1576, %v1735
        %v1737 = vpop.f32.mrb[0].mxu0
        %v1738 = vadd.f32 %v1576, %v1737
        %v1739 = vpop.f32.mrb[0].mxu0
        %v1740 = vadd.f32 %v1581, %v1739
        %v1741 = vpop.f32.mrb[0].mxu0
        %v1742 = vadd.f32 %v1581, %v1741
        %1743 = vmatprep.mubr.bf16.mxu0 0
        %1744 = vmatmul.mubr.bf16.gmra.mrb[0].mxu0 %v1659
        %v1745 = vpop.f32.mrb[0].mxu0
        %v1746 = vadd.f32 %v1586, %v1745
        %v1747 = vpop.f32.mrb[0].mxu0
        %v1748 = vadd.f32 %v1586, %v1747
        %v1749 = vpop.f32.mrb[0].mxu0
        %v1750 = vadd.f32 %v1591, %v1749
        %v1751 = vpop.f32.mrb[0].mxu0
        %v1752 = vadd.f32 %v1591, %v1751
        %1753 = vmatprep.mubr.bf16.mxu0 0
        %1754 = vmatmul.mubr.bf16.gmra.mrb[0].mxu0 %v1660
        %v1755 = vpop.f32.mrb[0].mxu0
        %v1756 = vadd.f32 %v1596, %v1755
        %v1757 = vpop.f32.mrb[0].mxu0
        %v1758 = vadd.f32 %v1596, %v1757
        %v1759 = vpop.f32.mrb[0].mxu0
        %v1760 = vadd.f32 %v1601, %v1759
        %v1761 = vpop.f32.mrb[0].mxu0
        %v1762 = vadd.f32 %v1601, %v1761
        %1763 = vmatprep.mubr.bf16.mxu0 0
        %1764 = vmatmul.mubr.bf16.gmra.mrb[0].mxu0 %v1661
        %v1765 = vpop.f32.mrb[0].mxu0
        %v1766 = vadd.f32 %v1606, %v1765
        %v1767 = vpop.f32.mrb[0].mxu0
        %v1768 = vadd.f32 %v1606, %v1767
        %v1769 = vpop.f32.mrb[0].mxu0
        %v1770 = vadd.f32 %v1611, %v1769
        %v1771 = vpop.f32.mrb[0].mxu0
        %v1772 = vadd.f32 %v1611, %v1771
        %1773 = vmatprep.mubr.bf16.mxu0 0
        %1774 = vmatmul.mubr.bf16.gmra.mrb[0].mxu0 %v1662
        %v1775 = vpop.f32.mrb[0].mxu0
        %v1776 = vadd.f32 %v1616, %v1775
        %v1777 = vpop.f32.mrb[0].mxu0
        %v1778 = vadd.f32 %v1616, %v1777
        %v1779 = vpop.f32.mrb[0].mxu0
        %v1780 = vadd.f32 %v1621, %v1779
        %v1781 = vpop.f32.mrb[0].mxu0
        %v1782 = vadd.f32 %v1621, %v1781
        %1783 = vdwg.mxu0
        %1784 = vmatprep.subr.bf16.mxu0 %v1498
        %1785 = vmatpush1.bf16.msra.mxu0 %v1497
        %1786 = vmatprep.subr.bf16.mxu0 %v1502
        %1787 = vmatpush1.bf16.msra.mxu0 %v1501
        %1788 = vmatprep.subr.bf16.mxu0 %v1506
        %1789 = vmatpush1.bf16.msra.mxu0 %v1505
        %1790 = vmatprep.subr.bf16.mxu0 %v1510
        %1791 = vmatpush1.bf16.msra.mxu0 %v1509
        %1792 = vmatprep.subr.bf16.mxu0 %v1514
        %1793 = vmatpush1.bf16.msra.mxu0 %v1513
        %1794 = vmatprep.subr.bf16.mxu0 %v1518
        %1795 = vmatpush1.bf16.msra.mxu0 %v1517
        %1796 = vmatprep.subr.bf16.mxu0 %v1522
        %1797 = vmatpush1.bf16.msra.mxu0 %v1521
        %1798 = vmatprep.subr.bf16.mxu0 %v1526
        %1799 = vmatpush1.bf16.msra.mxu0 %v1525
        %1800 = vmatprep.subr.bf16.mxu0 0
        %1801 = vmatpush1.bf16.msra.mxu0 0
        %1802 = vmatprep.subr.bf16.mxu0 0
        %1803 = vmatpush1.bf16.msra.mxu0 0
        %1804 = vmatprep.subr.bf16.mxu0 0
        %1805 = vmatpush1.bf16.msra.mxu0 0
        %1806 = vmatprep.subr.bf16.mxu0 0
        %1807 = vmatpush1.bf16.msra.mxu0 0
        %1808 = vmatprep.subr.bf16.mxu0 0
        %1809 = vmatpush1.bf16.msra.mxu0 0
        %1810 = vmatprep.subr.bf16.mxu0 0
        %1811 = vmatpush1.bf16.msra.mxu0 0
        %1812 = vmatprep.subr.bf16.mxu0 0
        %1813 = vmatpush1.bf16.msra.mxu0 0
        %1814 = vmatprep.subr.bf16.mxu0 0
        %1815 = vmatpush1.bf16.msra.mxu0 0
        %1816 = vmatprep.mubr.bf16.mxu0 0
        %1817 = vmatmul.mubr.bf16.gmra.mrb[0].mxu0 %v1655
        %v1818 = vpop.f32.mrb[0].mxu0
        %v1819 = vadd.f32 %v1546, %v1818
        %v1820 = vpop.f32.mrb[0].mxu0
        %v1821 = vadd.f32 %v1546, %v1820
        %v1822 = vpop.f32.mrb[0].mxu0
        %v1823 = vadd.f32 %v1551, %v1822
        %v1824 = vpop.f32.mrb[0].mxu0
        %v1825 = vadd.f32 %v1551, %v1824
        %1826 = vmatprep.mubr.bf16.mxu0 0
        %1827 = vmatmul.mubr.bf16.gmra.mrb[0].mxu0 %v1656
        %v1828 = vpop.f32.mrb[0].mxu0
        %v1829 = vadd.f32 %v1556, %v1828
        %v1830 = vpop.f32.mrb[0].mxu0
        %v1831 = vadd.f32 %v1556, %v1830
        %v1832 = vpop.f32.mrb[0].mxu0
        %v1833 = vadd.f32 %v1561, %v1832
        %v1834 = vpop.f32.mrb[0].mxu0
        %v1835 = vadd.f32 %v1561, %v1834
        %1836 = vmatprep.mubr.bf16.mxu0 0
        %1837 = vmatmul.mubr.bf16.gmra.mrb[0].mxu0 %v1657
        %v1838 = vpop.f32.mrb[0].mxu0
        %v1839 = vadd.f32 %v1566, %v1838
        %v1840 = vpop.f32.mrb[0].mxu0
        %v1841 = vadd.f32 %v1566, %v1840
        %v1842 = vpop.f32.mrb[0].mxu0
        %v1843 = vadd.f32 %v1571, %v1842
        %v1844 = vpop.f32.mrb[0].mxu0
        %v1845 = vadd.f32 %v1571, %v1844
        %1846 = vmatprep.mubr.bf16.mxu0 0
        %1847 = vmatmul.mubr.bf16.gmra.mrb[0].mxu0 %v1658
        %v1848 = vpop.f32.mrb[0].mxu0
        %v1849 = vadd.f32 %v1576, %v1848
        %v1850 = vpop.f32.mrb[0].mxu0
        %v1851 = vadd.f32 %v1576, %v1850
        %v1852 = vpop.f32.mrb[0].mxu0
        %v1853 = vadd.f32 %v1581, %v1852
        %v1854 = vpop.f32.mrb[0].mxu0
        %v1855 = vadd.f32 %v1581, %v1854
        %1856 = vmatprep.mubr.bf16.mxu0 0
        %1857 = vmatmul.mubr.bf16.gmra.mrb[0].mxu0 %v1659
        %v1858 = vpop.f32.mrb[0].mxu0
        %v1859 = vadd.f32 %v1586, %v1858
        %v1860 = vpop.f32.mrb[0].mxu0
        %v1861 = vadd.f32 %v1586, %v1860
        %v1862 = vpop.f32.mrb[0].mxu0
        %v1863 = vadd.f32 %v1591, %v1862
        %v1864 = vpop.f32.mrb[0].mxu0
        %v1865 = vadd.f32 %v1591, %v1864
        %1866 = vmatprep.mubr.bf16.mxu0 0
        %1867 = vmatmul.mubr.bf16.gmra.mrb[0].mxu0 %v1660
        %v1868 = vpop.f32.mrb[0].mxu0
        %v1869 = vadd.f32 %v1596, %v1868
        %v1870 = vpop.f32.mrb[0].mxu0
        %v1871 = vadd.f32 %v1596, %v1870
        %v1872 = vpop.f32.mrb[0].mxu0
        %v1873 = vadd.f32 %v1601, %v1872
        %v1874 = vpop.f32.mrb[0].mxu0
        %v1875 = vadd.f32 %v1601, %v1874
        %1876 = vmatprep.mubr.bf16.mxu0 0
        %1877 = vmatmul.mubr.bf16.gmra.mrb[0].mxu0 %v1661
        %v1878 = vpop.f32.mrb[0].mxu0
        %v1879 = vadd.f32 %v1606, %v1878
        %v1880 = vpop.f32.mrb[0].mxu0
        %v1881 = vadd.f32 %v1606, %v1880
        %v1882 = vpop.f32.mrb[0].mxu0
        %v1883 = vadd.f32 %v1611, %v1882
        %v1884 = vpop.f32.mrb[0].mxu0
        %v1885 = vadd.f32 %v1611, %v1884
        %1886 = vmatprep.mubr.bf16.mxu0 0
        %1887 = vmatmul.mubr.bf16.gmra.mrb[0].mxu0 %v1662
        %v1888 = vpop.f32.mrb[0].mxu0
        %v1889 = vadd.f32 %v1616, %v1888
        %v1890 = vpop.f32.mrb[0].mxu0
        %v1891 = vadd.f32 %v1616, %v1890
        %v1892 = vpop.f32.mrb[0].mxu0
        %v1893 = vadd.f32 %v1621, %v1892
        %v1894 = vpop.f32.mrb[0].mxu0
        %v1895 = vadd.f32 %v1621, %v1894
        %1896 = vdwg.mxu0
        %v1897 = vmax.f32 %v1706, 0.0
        %v1898 = vmax.f32 %v1708, 0.0
        %v1899 = vmax.f32 %v1819, 0.0
        %v1900 = vmax.f32 %v1821, 0.0
        %v1901 = vmax.f32 %v1710, 0.0
        %v1902 = vmax.f32 %v1712, 0.0
        %v1903 = vmax.f32 %v1823, 0.0
        %v1904 = vmax.f32 %v1825, 0.0
        %v1905 = vmax.f32 %v1716, 0.0
        %v1906 = vmax.f32 %v1718, 0.0
        %v1907 = vmax.f32 %v1829, 0.0
        %v1908 = vmax.f32 %v1831, 0.0
        %v1909 = vmax.f32 %v1720, 0.0
        %v1910 = vmax.f32 %v1722, 0.0
        %v1911 = vmax.f32 %v1833, 0.0
        %v1912 = vmax.f32 %v1835, 0.0
        %v1913 = vmax.f32 %v1726, 0.0
        %v1914 = vmax.f32 %v1728, 0.0
        %v1915 = vmax.f32 %v1839, 0.0
        %v1916 = vmax.f32 %v1841, 0.0
        %v1917 = vmax.f32 %v1730, 0.0
        %v1918 = vmax.f32 %v1732, 0.0
        %v1919 = vmax.f32 %v1843, 0.0
        %v1920 = vmax.f32 %v1845, 0.0
        %v1921 = vmax.f32 %v1736, 0.0
        %v1922 = vmax.f32 %v1738, 0.0
        %v1923 = vmax.f32 %v1849, 0.0
        %v1924 = vmax.f32 %v1851, 0.0
        %v1925 = vmax.f32 %v1740, 0.0
        %v1926 = vmax.f32 %v1742, 0.0
        %v1927 = vmax.f32 %v1853, 0.0
        %v1928 = vmax.f32 %v1855, 0.0
        %v1929 = vmax.f32 %v1746, 0.0
        %v1930 = vmax.f32 %v1748, 0.0
        %v1931 = vmax.f32 %v1859, 0.0
        %v1932 = vmax.f32 %v1861, 0.0
        %v1933 = vmax.f32 %v1750, 0.0
        %v1934 = vmax.f32 %v1752, 0.0
        %v1935 = vmax.f32 %v1863, 0.0
        %v1936 = vmax.f32 %v1865, 0.0
        %v1937 = vmax.f32 %v1756, 0.0
        %v1938 = vmax.f32 %v1758, 0.0
        %v1939 = vmax.f32 %v1869, 0.0
        %v1940 = vmax.f32 %v1871, 0.0
        %v1941 = vmax.f32 %v1760, 0.0
        %v1942 = vmax.f32 %v1762, 0.0
        %v1943 = vmax.f32 %v1873, 0.0
        %v1944 = vmax.f32 %v1875, 0.0
        %v1945 = vmax.f32 %v1766, 0.0
        %v1946 = vmax.f32 %v1768, 0.0
        %v1947 = vmax.f32 %v1879, 0.0
        %v1948 = vmax.f32 %v1881, 0.0
        %v1949 = vmax.f32 %v1770, 0.0
        %v1950 = vmax.f32 %v1772, 0.0
        %v1951 = vmax.f32 %v1883, 0.0
        %v1952 = vmax.f32 %v1885, 0.0
        %v1953 = vmax.f32 %v1776, 0.0
        %v1954 = vmax.f32 %v1778, 0.0
        %v1955 = vmax.f32 %v1889, 0.0
        %v1956 = vmax.f32 %v1891, 0.0
        %v1957 = vmax.f32 %v1780, 0.0
        %v1958 = vmax.f32 %v1782, 0.0
        %v1959 = vmax.f32 %v1893, 0.0
        %v1960 = vmax.f32 %v1895, 0.0
        %v1961 = vld [vmem:[%s7] sm:$0xf]
        %v1962 = vld [vmem:[%s7 + $0x4] sm:$0xf]
        %v1963 = vld [vmem:[%s7 + $0x8] sm:$0xf]
        %v1964 = vld [vmem:[%s7 + $0xc] sm:$0xf]
        %v1965 = vld [vmem:[%s7 + $0x10] sm:$0xf]
        %v1966 = vld [vmem:[%s7 + $0x14] sm:$0xf]
        %v1967 = vld [vmem:[%s7 + $0x18] sm:$0xf]
        %v1968 = vld [vmem:[%s7 + $0x1c] sm:$0xf]
        %v1969 = vld [vmem:[%s7 + $0x20] sm:$0xf]
        %v1970 = vld [vmem:[%s7 + $0x24] sm:$0xf]
        %v1971 = vld [vmem:[%s7 + $0x28] sm:$0xf]
        %v1972 = vld [vmem:[%s7 + $0x2c] sm:$0xf]
        %v1973 = vld [vmem:[%s7 + $0x30] sm:$0xf]
        %v1974 = vld [vmem:[%s7 + $0x34] sm:$0xf]
        %v1975 = vld [vmem:[%s7 + $0x38] sm:$0xf]
        %v1976 = vld [vmem:[%s7 + $0x3c] sm:$0xf]
        %v1977 = vld [vmem:[%s8] sm:$0xf]
        %v1978 = vld [vmem:[%s8 + $0x4] sm:$0xf]
        %v1979 = vld [vmem:[%s8 + $0x8] sm:$0xf]
        %v1980 = vld [vmem:[%s8 + $0xc] sm:$0xf]
        %v1981 = vld [vmem:[%s8 + $0x10] sm:$0xf]
        %v1982 = vld [vmem:[%s8 + $0x14] sm:$0xf]
        %v1983 = vld [vmem:[%s8 + $0x18] sm:$0xf]
        %v1984 = vld [vmem:[%s8 + $0x1c] sm:$0xf]
        %v1985 = vld [vmem:[%s8 + $0x20] sm:$0xf]
        %v1986 = vld [vmem:[%s8 + $0x24] sm:$0xf]
        %v1987 = vld [vmem:[%s8 + $0x28] sm:$0xf]
        %v1988 = vld [vmem:[%s8 + $0x2c] sm:$0xf]
        %v1989 = vld [vmem:[%s8 + $0x30] sm:$0xf]
        %v1990 = vld [vmem:[%s8 + $0x34] sm:$0xf]
        %v1991 = vld [vmem:[%s8 + $0x38] sm:$0xf]
        %v1992 = vld [vmem:[%s8 + $0x3c] sm:$0xf]
        %v1993 = vpack.c.bf16 %v1901, %v1897
        %v1994 = vpack.c.bf16 %v1902, %v1898
        %v1995 = vpack.c.bf16 %v1903, %v1899
        %v1996 = vpack.c.bf16 %v1904, %v1900
        %v1997 = vpack.c.bf16 %v1909, %v1905
        %v1998 = vpack.c.bf16 %v1910, %v1906
        %v1999 = vpack.c.bf16 %v1911, %v1907
        %v2000 = vpack.c.bf16 %v1912, %v1908
        %v2001 = vpack.c.bf16 %v1917, %v1913
        %v2002 = vpack.c.bf16 %v1918, %v1914
        %v2003 = vpack.c.bf16 %v1919, %v1915
        %v2004 = vpack.c.bf16 %v1920, %v1916
        %v2005 = vpack.c.bf16 %v1925, %v1921
        %v2006 = vpack.c.bf16 %v1926, %v1922
        %v2007 = vpack.c.bf16 %v1927, %v1923
        %v2008 = vpack.c.bf16 %v1928, %v1924
        %v2009 = vpack.c.bf16 %v1933, %v1929
        %v2010 = vpack.c.bf16 %v1934, %v1930
        %v2011 = vpack.c.bf16 %v1935, %v1931
        %v2012 = vpack.c.bf16 %v1936, %v1932
        %v2013 = vpack.c.bf16 %v1941, %v1937
        %v2014 = vpack.c.bf16 %v1942, %v1938
        %v2015 = vpack.c.bf16 %v1943, %v1939
        %v2016 = vpack.c.bf16 %v1944, %v1940
        %v2017 = vpack.c.bf16 %v1949, %v1945
        %v2018 = vpack.c.bf16 %v1950, %v1946
        %v2019 = vpack.c.bf16 %v1951, %v1947
        %v2020 = vpack.c.bf16 %v1952, %v1948
        %v2021 = vpack.c.bf16 %v1957, %v1953
        %v2022 = vpack.c.bf16 %v1958, %v1954
        %v2023 = vpack.c.bf16 %v1959, %v1955
        %v2024 = vpack.c.bf16 %v1960, %v1956
        %v2041 = vunpack.c.l.b16 %v1977
        %v2042 = vunpack.c.l.b16 %v1978
        %v2043 = vunpack.c.l.b16 %v1979
        %v2044 = vunpack.c.l.b16 %v1980
        %v2045 = vunpack.c.l.b16 %v1981
        %v2046 = vunpack.c.l.b16 %v1982
        %v2047 = vunpack.c.l.b16 %v1983
        %v2048 = vunpack.c.l.b16 %v1984
        %v2049 = vunpack.c.l.b16 %v1985
        %v2050 = vunpack.c.l.b16 %v1986
        %v2051 = vunpack.c.l.b16 %v1987
        %v2052 = vunpack.c.l.b16 %v1988
        %v2053 = vunpack.c.l.b16 %v1989
        %v2054 = vunpack.c.l.b16 %v1990
        %v2055 = vunpack.c.l.b16 %v1991
        %v2056 = vunpack.c.l.b16 %v1992
        %v2057 = vpack.c.b16 %v2042, %v2041
        %v2058 = vpack.c.b16 %v2044, %v2043
        %v2059 = vpack.c.b16 %v2046, %v2045
        %v2060 = vpack.c.b16 %v2048, %v2047
        %v2061 = vpack.c.b16 %v2050, %v2049
        %v2062 = vpack.c.b16 %v2052, %v2051
        %v2063 = vpack.c.b16 %v2054, %v2053
        %v2064 = vpack.c.b16 %v2056, %v2055
        %2073 = vmatprep.subr.bf16.mxu0 %v1994
        %2074 = vmatpush1.bf16.msra.mxu0 %v1993
        %2075 = vmatprep.subr.bf16.mxu0 %v1998
        %2076 = vmatpush1.bf16.msra.mxu0 %v1997
        %2077 = vmatprep.subr.bf16.mxu0 %v2002
        %2078 = vmatpush1.bf16.msra.mxu0 %v2001
        %2079 = vmatprep.subr.bf16.mxu0 %v2006
        %2080 = vmatpush1.bf16.msra.mxu0 %v2005
        %2081 = vmatprep.subr.bf16.mxu0 %v2010
        %2082 = vmatpush1.bf16.msra.mxu0 %v2009
        %2083 = vmatprep.subr.bf16.mxu0 %v2014
        %2084 = vmatpush1.bf16.msra.mxu0 %v2013
        %2085 = vmatprep.subr.bf16.mxu0 %v2018
        %2086 = vmatpush1.bf16.msra.mxu0 %v2017
        %2087 = vmatprep.subr.bf16.mxu0 %v2022
        %2088 = vmatpush1.bf16.msra.mxu0 %v2021
        %2089 = vmatprep.subr.bf16.mxu0 0
        %2090 = vmatpush1.bf16.msra.mxu0 0
        %2091 = vmatprep.subr.bf16.mxu0 0
        %2092 = vmatpush1.bf16.msra.mxu0 0
        %2093 = vmatprep.subr.bf16.mxu0 0
        %2094 = vmatpush1.bf16.msra.mxu0 0
        %2095 = vmatprep.subr.bf16.mxu0 0
        %2096 = vmatpush1.bf16.msra.mxu0 0
        %2097 = vmatprep.subr.bf16.mxu0 0
        %2098 = vmatpush1.bf16.msra.mxu0 0
        %2099 = vmatprep.subr.bf16.mxu0 0
        %2100 = vmatpush1.bf16.msra.mxu0 0
        %2101 = vmatprep.subr.bf16.mxu0 0
        %2102 = vmatpush1.bf16.msra.mxu0 0
        %2103 = vmatprep.subr.bf16.mxu0 0
        %2104 = vmatpush1.bf16.msra.mxu0 0
        %2105 = vmatprep.mubr.bf16.mxu0 0
        %2106 = vmatmul.mubr.bf16.gmra.mrb[0].mxu0 %v2057
        %v2107 = vpop.f32.mrb[0].mxu0
        %v2108 = vadd.f32 0.0, %v2107
        %v2109 = vpop.f32.mrb[0].mxu0
        %v2110 = vadd.f32 0.0, %v2109
        %v2111 = vpop.f32.mrb[0].mxu0
        %v2112 = vadd.f32 0.0, %v2111
        %v2113 = vpop.f32.mrb[0].mxu0
        %v2114 = vadd.f32 0.0, %v2113
        %2115 = vmatprep.mubr.bf16.mxu0 0
        %2116 = vmatmul.mubr.bf16.gmra.mrb[0].mxu0 %v2058
        %v2117 = vpop.f32.mrb[0].mxu0
        %v2118 = vadd.f32 0.0, %v2117
        %v2119 = vpop.f32.mrb[0].mxu0
        %v2120 = vadd.f32 0.0, %v2119
        %v2121 = vpop.f32.mrb[0].mxu0
        %v2122 = vadd.f32 0.0, %v2121
        %v2123 = vpop.f32.mrb[0].mxu0
        %v2124 = vadd.f32 0.0, %v2123
        %2125 = vmatprep.mubr.bf16.mxu0 0
        %2126 = vmatmul.mubr.bf16.gmra.mrb[0].mxu0 %v2059
        %v2127 = vpop.f32.mrb[0].mxu0
        %v2128 = vadd.f32 0.0, %v2127
        %v2129 = vpop.f32.mrb[0].mxu0
        %v2130 = vadd.f32 0.0, %v2129
        %v2131 = vpop.f32.mrb[0].mxu0
        %v2132 = vadd.f32 0.0, %v2131
        %v2133 = vpop.f32.mrb[0].mxu0
        %v2134 = vadd.f32 0.0, %v2133
        %2135 = vmatprep.mubr.bf16.mxu0 0
        %2136 = vmatmul.mubr.bf16.gmra.mrb[0].mxu0 %v2060
        %v2137 = vpop.f32.mrb[0].mxu0
        %v2138 = vadd.f32 0.0, %v2137
        %v2139 = vpop.f32.mrb[0].mxu0
        %v2140 = vadd.f32 0.0, %v2139
        %v2141 = vpop.f32.mrb[0].mxu0
        %v2142 = vadd.f32 0.0, %v2141
        %v2143 = vpop.f32.mrb[0].mxu0
        %v2144 = vadd.f32 0.0, %v2143
        %2145 = vmatprep.mubr.bf16.mxu0 0
        %2146 = vmatmul.mubr.bf16.gmra.mrb[0].mxu0 %v2061
        %v2147 = vpop.f32.mrb[0].mxu0
        %v2148 = vadd.f32 0.0, %v2147
        %v2149 = vpop.f32.mrb[0].mxu0
        %v2150 = vadd.f32 0.0, %v2149
        %v2151 = vpop.f32.mrb[0].mxu0
        %v2152 = vadd.f32 0.0, %v2151
        %v2153 = vpop.f32.mrb[0].mxu0
        %v2154 = vadd.f32 0.0, %v2153
        %2155 = vmatprep.mubr.bf16.mxu0 0
        %2156 = vmatmul.mubr.bf16.gmra.mrb[0].mxu0 %v2062
        %v2157 = vpop.f32.mrb[0].mxu0
        %v2158 = vadd.f32 0.0, %v2157
        %v2159 = vpop.f32.mrb[0].mxu0
        %v2160 = vadd.f32 0.0, %v2159
        %v2161 = vpop.f32.mrb[0].mxu0
        %v2162 = vadd.f32 0.0, %v2161
        %v2163 = vpop.f32.mrb[0].mxu0
        %v2164 = vadd.f32 0.0, %v2163
        %2165 = vmatprep.mubr.bf16.mxu0 0
        %2166 = vmatmul.mubr.bf16.gmra.mrb[0].mxu0 %v2063
        %v2167 = vpop.f32.mrb[0].mxu0
        %v2168 = vadd.f32 0.0, %v2167
        %v2169 = vpop.f32.mrb[0].mxu0
        %v2170 = vadd.f32 0.0, %v2169
        %v2171 = vpop.f32.mrb[0].mxu0
        %v2172 = vadd.f32 0.0, %v2171
        %v2173 = vpop.f32.mrb[0].mxu0
        %v2174 = vadd.f32 0.0, %v2173
        %2175 = vmatprep.mubr.bf16.mxu0 0
        %2176 = vmatmul.mubr.bf16.gmra.mrb[0].mxu0 %v2064
        %v2177 = vpop.f32.mrb[0].mxu0
        %v2178 = vadd.f32 0.0, %v2177
        %v2179 = vpop.f32.mrb[0].mxu0
        %v2180 = vadd.f32 0.0, %v2179
        %v2181 = vpop.f32.mrb[0].mxu0
        %v2182 = vadd.f32 0.0, %v2181
        %v2183 = vpop.f32.mrb[0].mxu0
        %v2184 = vadd.f32 0.0, %v2183
        %2185 = vdwg.mxu0
        %2186 = vmatprep.subr.bf16.mxu0 %v1996
        %2187 = vmatpush1.bf16.msra.mxu0 %v1995
        %2188 = vmatprep.subr.bf16.mxu0 %v2000
        %2189 = vmatpush1.bf16.msra.mxu0 %v1999
        %2190 = vmatprep.subr.bf16.mxu0 %v2004
        %2191 = vmatpush1.bf16.msra.mxu0 %v2003
        %2192 = vmatprep.subr.bf16.mxu0 %v2008
        %2193 = vmatpush1.bf16.msra.mxu0 %v2007
        %2194 = vmatprep.subr.bf16.mxu0 %v2012
        %2195 = vmatpush1.bf16.msra.mxu0 %v2011
        %2196 = vmatprep.subr.bf16.mxu0 %v2016
        %2197 = vmatpush1.bf16.msra.mxu0 %v2015
        %2198 = vmatprep.subr.bf16.mxu0 %v2020
        %2199 = vmatpush1.bf16.msra.mxu0 %v2019
        %2200 = vmatprep.subr.bf16.mxu0 %v2024
        %2201 = vmatpush1.bf16.msra.mxu0 %v2023
        %2202 = vmatprep.subr.bf16.mxu0 0
        %2203 = vmatpush1.bf16.msra.mxu0 0
        %2204 = vmatprep.subr.bf16.mxu0 0
        %2205 = vmatpush1.bf16.msra.mxu0 0
        %2206 = vmatprep.subr.bf16.mxu0 0
        %2207 = vmatpush1.bf16.msra.mxu0 0
        %2208 = vmatprep.subr.bf16.mxu0 0
        %2209 = vmatpush1.bf16.msra.mxu0 0
        %2210 = vmatprep.subr.bf16.mxu0 0
        %2211 = vmatpush1.bf16.msra.mxu0 0
        %2212 = vmatprep.subr.bf16.mxu0 0
        %2213 = vmatpush1.bf16.msra.mxu0 0
        %2214 = vmatprep.subr.bf16.mxu0 0
        %2215 = vmatpush1.bf16.msra.mxu0 0
        %2216 = vmatprep.subr.bf16.mxu0 0
        %2217 = vmatpush1.bf16.msra.mxu0 0
        %2218 = vmatprep.mubr.bf16.mxu0 0
        %2219 = vmatmul.mubr.bf16.gmra.mrb[0].mxu0 %v2057
        %v2220 = vpop.f32.mrb[0].mxu0
        %v2221 = vadd.f32 0.0, %v2220
        %v2222 = vpop.f32.mrb[0].mxu0
        %v2223 = vadd.f32 0.0, %v2222
        %v2224 = vpop.f32.mrb[0].mxu0
        %v2225 = vadd.f32 0.0, %v2224
        %v2226 = vpop.f32.mrb[0].mxu0
        %v2227 = vadd.f32 0.0, %v2226
        %2228 = vmatprep.mubr.bf16.mxu0 0
        %2229 = vmatmul.mubr.bf16.gmra.mrb[0].mxu0 %v2058
        %v2230 = vpop.f32.mrb[0].mxu0
        %v2231 = vadd.f32 0.0, %v2230
        %v2232 = vpop.f32.mrb[0].mxu0
        %v2233 = vadd.f32 0.0, %v2232
        %v2234 = vpop.f32.mrb[0].mxu0
        %v2235 = vadd.f32 0.0, %v2234
        %v2236 = vpop.f32.mrb[0].mxu0
        %v2237 = vadd.f32 0.0, %v2236
        %2238 = vmatprep.mubr.bf16.mxu0 0
        %2239 = vmatmul.mubr.bf16.gmra.mrb[0].mxu0 %v2059
        %v2240 = vpop.f32.mrb[0].mxu0
        %v2241 = vadd.f32 0.0, %v2240
        %v2242 = vpop.f32.mrb[0].mxu0
        %v2243 = vadd.f32 0.0, %v2242
        %v2244 = vpop.f32.mrb[0].mxu0
        %v2245 = vadd.f32 0.0, %v2244
        %v2246 = vpop.f32.mrb[0].mxu0
        %v2247 = vadd.f32 0.0, %v2246
        %2248 = vmatprep.mubr.bf16.mxu0 0
        %2249 = vmatmul.mubr.bf16.gmra.mrb[0].mxu0 %v2060
        %v2250 = vpop.f32.mrb[0].mxu0
        %v2251 = vadd.f32 0.0, %v2250
        %v2252 = vpop.f32.mrb[0].mxu0
        %v2253 = vadd.f32 0.0, %v2252
        %v2254 = vpop.f32.mrb[0].mxu0
        %v2255 = vadd.f32 0.0, %v2254
        %v2256 = vpop.f32.mrb[0].mxu0
        %v2257 = vadd.f32 0.0, %v2256
        %2258 = vmatprep.mubr.bf16.mxu0 0
        %2259 = vmatmul.mubr.bf16.gmra.mrb[0].mxu0 %v2061
        %v2260 = vpop.f32.mrb[0].mxu0
        %v2261 = vadd.f32 0.0, %v2260
        %v2262 = vpop.f32.mrb[0].mxu0
        %v2263 = vadd.f32 0.0, %v2262
        %v2264 = vpop.f32.mrb[0].mxu0
        %v2265 = vadd.f32 0.0, %v2264
        %v2266 = vpop.f32.mrb[0].mxu0
        %v2267 = vadd.f32 0.0, %v2266
        %2268 = vmatprep.mubr.bf16.mxu0 0
        %2269 = vmatmul.mubr.bf16.gmra.mrb[0].mxu0 %v2062
        %v2270 = vpop.f32.mrb[0].mxu0
        %v2271 = vadd.f32 0.0, %v2270
        %v2272 = vpop.f32.mrb[0].mxu0
        %v2273 = vadd.f32 0.0, %v2272
        %v2274 = vpop.f32.mrb[0].mxu0
        %v2275 = vadd.f32 0.0, %v2274
        %v2276 = vpop.f32.mrb[0].mxu0
        %v2277 = vadd.f32 0.0, %v2276
        %2278 = vmatprep.mubr.bf16.mxu0 0
        %2279 = vmatmul.mubr.bf16.gmra.mrb[0].mxu0 %v2063
        %v2280 = vpop.f32.mrb[0].mxu0
        %v2281 = vadd.f32 0.0, %v2280
        %v2282 = vpop.f32.mrb[0].mxu0
        %v2283 = vadd.f32 0.0, %v2282
        %v2284 = vpop.f32.mrb[0].mxu0
        %v2285 = vadd.f32 0.0, %v2284
        %v2286 = vpop.f32.mrb[0].mxu0
        %v2287 = vadd.f32 0.0, %v2286
        %2288 = vmatprep.mubr.bf16.mxu0 0
        %2289 = vmatmul.mubr.bf16.gmra.mrb[0].mxu0 %v2064
        %v2290 = vpop.f32.mrb[0].mxu0
        %v2291 = vadd.f32 0.0, %v2290
        %v2292 = vpop.f32.mrb[0].mxu0
        %v2293 = vadd.f32 0.0, %v2292
        %v2294 = vpop.f32.mrb[0].mxu0
        %v2295 = vadd.f32 0.0, %v2294
        %v2296 = vpop.f32.mrb[0].mxu0
        %v2297 = vadd.f32 0.0, %v2296
        %2298 = vdwg.mxu0
        %v2315 = vunpack.c.l.b16 %v1961
        %v2316 = vunpack.c.l.b16 %v1962
        %v2317 = vunpack.c.l.b16 %v1963
        %v2318 = vunpack.c.l.b16 %v1964
        %v2319 = vunpack.c.l.b16 %v1965
        %v2320 = vunpack.c.l.b16 %v1966
        %v2321 = vunpack.c.l.b16 %v1967
        %v2322 = vunpack.c.l.b16 %v1968
        %v2323 = vunpack.c.l.b16 %v1969
        %v2324 = vunpack.c.l.b16 %v1970
        %v2325 = vunpack.c.l.b16 %v1971
        %v2326 = vunpack.c.l.b16 %v1972
        %v2327 = vunpack.c.l.b16 %v1973
        %v2328 = vunpack.c.l.b16 %v1974
        %v2329 = vunpack.c.l.b16 %v1975
        %v2330 = vunpack.c.l.b16 %v1976
        %v2331 = vpack.c.b16 %v2316, %v2315
        %v2332 = vpack.c.b16 %v2318, %v2317
        %v2333 = vpack.c.b16 %v2320, %v2319
        %v2334 = vpack.c.b16 %v2322, %v2321
        %v2335 = vpack.c.b16 %v2324, %v2323
        %v2336 = vpack.c.b16 %v2326, %v2325
        %v2337 = vpack.c.b16 %v2328, %v2327
        %v2338 = vpack.c.b16 %v2330, %v2329
        %v2340 = vsel %vm669, %v2331, 0
        %v2343 = vsel %vm669, %v2332, 0
        %v2346 = vsel %vm669, %v2333, 0
        %v2349 = vsel %vm669, %v2334, 0
        %v2352 = vsel %vm669, %v2335, 0
        %v2355 = vsel %vm669, %v2336, 0
        %v2358 = vsel %vm669, %v2337, 0
        %v2361 = vsel %vm669, %v2338, 0
        %2363 = vmatprep.subr.bf16.mxu0 %v699
        %2364 = vmatpush1.bf16.msra.mxu0 %v696
        %2365 = vmatprep.subr.bf16.mxu0 0
        %2366 = vmatpush1.bf16.msra.mxu0 0
        %2367 = vmatprep.subr.bf16.mxu0 0
        %2368 = vmatpush1.bf16.msra.mxu0 0
        %2369 = vmatprep.subr.bf16.mxu0 0
        %2370 = vmatpush1.bf16.msra.mxu0 0
        %2371 = vmatprep.subr.bf16.mxu0 0
        %2372 = vmatpush1.bf16.msra.mxu0 0
        %2373 = vmatprep.subr.bf16.mxu0 0
        %2374 = vmatpush1.bf16.msra.mxu0 0
        %2375 = vmatprep.subr.bf16.mxu0 0
        %2376 = vmatpush1.bf16.msra.mxu0 0
        %2377 = vmatprep.subr.bf16.mxu0 0
        %2378 = vmatpush1.bf16.msra.mxu0 0
        %2379 = vmatprep.subr.bf16.mxu0 0
        %2380 = vmatpush1.bf16.msra.mxu0 0
        %2381 = vmatprep.subr.bf16.mxu0 0
        %2382 = vmatpush1.bf16.msra.mxu0 0
        %2383 = vmatprep.subr.bf16.mxu0 0
        %2384 = vmatpush1.bf16.msra.mxu0 0
        %2385 = vmatprep.subr.bf16.mxu0 0
        %2386 = vmatpush1.bf16.msra.mxu0 0
        %2387 = vmatprep.subr.bf16.mxu0 0
        %2388 = vmatpush1.bf16.msra.mxu0 0
        %2389 = vmatprep.subr.bf16.mxu0 0
        %2390 = vmatpush1.bf16.msra.mxu0 0
        %2391 = vmatprep.subr.bf16.mxu0 0
        %2392 = vmatpush1.bf16.msra.mxu0 0
        %2393 = vmatprep.subr.bf16.mxu0 0
        %2394 = vmatpush1.bf16.msra.mxu0 0
        %2395 = vmatprep.mubr.bf16.mxu0 0
        %2396 = vmatmul.mubr.bf16.gmra.mrb[0].mxu0 %v2340
        %v2397 = vpop.f32.mrb[0].mxu0
        %v2398 = vadd.f32 %v2108, %v2397
        %v2399 = vpop.f32.mrb[0].mxu0
        %v2400 = vadd.f32 %v2110, %v2399
        %v2401 = vpop.f32.mrb[0].mxu0
        %v2402 = vadd.f32 %v2112, %v2401
        %v2403 = vpop.f32.mrb[0].mxu0
        %v2404 = vadd.f32 %v2114, %v2403
        %2405 = vmatprep.mubr.bf16.mxu0 0
        %2406 = vmatmul.mubr.bf16.gmra.mrb[0].mxu0 %v2343
        %v2407 = vpop.f32.mrb[0].mxu0
        %v2408 = vadd.f32 %v2118, %v2407
        %v2409 = vpop.f32.mrb[0].mxu0
        %v2410 = vadd.f32 %v2120, %v2409
        %v2411 = vpop.f32.mrb[0].mxu0
        %v2412 = vadd.f32 %v2122, %v2411
        %v2413 = vpop.f32.mrb[0].mxu0
        %v2414 = vadd.f32 %v2124, %v2413
        %2415 = vmatprep.mubr.bf16.mxu0 0
        %2416 = vmatmul.mubr.bf16.gmra.mrb[0].mxu0 %v2346
        %v2417 = vpop.f32.mrb[0].mxu0
        %v2418 = vadd.f32 %v2128, %v2417
        %v2419 = vpop.f32.mrb[0].mxu0
        %v2420 = vadd.f32 %v2130, %v2419
        %v2421 = vpop.f32.mrb[0].mxu0
        %v2422 = vadd.f32 %v2132, %v2421
        %v2423 = vpop.f32.mrb[0].mxu0
        %v2424 = vadd.f32 %v2134, %v2423
        %2425 = vmatprep.mubr.bf16.mxu0 0
        %2426 = vmatmul.mubr.bf16.gmra.mrb[0].mxu0 %v2349
        %v2427 = vpop.f32.mrb[0].mxu0
        %v2428 = vadd.f32 %v2138, %v2427
        %v2429 = vpop.f32.mrb[0].mxu0
        %v2430 = vadd.f32 %v2140, %v2429
        %v2431 = vpop.f32.mrb[0].mxu0
        %v2432 = vadd.f32 %v2142, %v2431
        %v2433 = vpop.f32.mrb[0].mxu0
        %v2434 = vadd.f32 %v2144, %v2433
        %2435 = vmatprep.mubr.bf16.mxu0 0
        %2436 = vmatmul.mubr.bf16.gmra.mrb[0].mxu0 %v2352
        %v2437 = vpop.f32.mrb[0].mxu0
        %v2438 = vadd.f32 %v2148, %v2437
        %v2439 = vpop.f32.mrb[0].mxu0
        %v2440 = vadd.f32 %v2150, %v2439
        %v2441 = vpop.f32.mrb[0].mxu0
        %v2442 = vadd.f32 %v2152, %v2441
        %v2443 = vpop.f32.mrb[0].mxu0
        %v2444 = vadd.f32 %v2154, %v2443
        %2445 = vmatprep.mubr.bf16.mxu0 0
        %2446 = vmatmul.mubr.bf16.gmra.mrb[0].mxu0 %v2355
        %v2447 = vpop.f32.mrb[0].mxu0
        %v2448 = vadd.f32 %v2158, %v2447
        %v2449 = vpop.f32.mrb[0].mxu0
        %v2450 = vadd.f32 %v2160, %v2449
        %v2451 = vpop.f32.mrb[0].mxu0
        %v2452 = vadd.f32 %v2162, %v2451
        %v2453 = vpop.f32.mrb[0].mxu0
        %v2454 = vadd.f32 %v2164, %v2453
        %2455 = vmatprep.mubr.bf16.mxu0 0
        %2456 = vmatmul.mubr.bf16.gmra.mrb[0].mxu0 %v2358
        %v2457 = vpop.f32.mrb[0].mxu0
        %v2458 = vadd.f32 %v2168, %v2457
        %v2459 = vpop.f32.mrb[0].mxu0
        %v2460 = vadd.f32 %v2170, %v2459
        %v2461 = vpop.f32.mrb[0].mxu0
        %v2462 = vadd.f32 %v2172, %v2461
        %v2463 = vpop.f32.mrb[0].mxu0
        %v2464 = vadd.f32 %v2174, %v2463
        %2465 = vmatprep.mubr.bf16.mxu0 0
        %2466 = vmatmul.mubr.bf16.gmra.mrb[0].mxu0 %v2361
        %v2467 = vpop.f32.mrb[0].mxu0
        %v2468 = vadd.f32 %v2178, %v2467
        %v2469 = vpop.f32.mrb[0].mxu0
        %v2470 = vadd.f32 %v2180, %v2469
        %v2471 = vpop.f32.mrb[0].mxu0
        %v2472 = vadd.f32 %v2182, %v2471
        %v2473 = vpop.f32.mrb[0].mxu0
        %v2474 = vadd.f32 %v2184, %v2473
        %2475 = vdwg.mxu0
        %2476 = vmatprep.subr.bf16.mxu0 %v705
        %2477 = vmatpush1.bf16.msra.mxu0 %v702
        %2478 = vmatprep.subr.bf16.mxu0 0
        %2479 = vmatpush1.bf16.msra.mxu0 0
        %2480 = vmatprep.subr.bf16.mxu0 0
        %2481 = vmatpush1.bf16.msra.mxu0 0
        %2482 = vmatprep.subr.bf16.mxu0 0
        %2483 = vmatpush1.bf16.msra.mxu0 0
        %2484 = vmatprep.subr.bf16.mxu0 0
        %2485 = vmatpush1.bf16.msra.mxu0 0
        %2486 = vmatprep.subr.bf16.mxu0 0
        %2487 = vmatpush1.bf16.msra.mxu0 0
        %2488 = vmatprep.subr.bf16.mxu0 0
        %2489 = vmatpush1.bf16.msra.mxu0 0
        %2490 = vmatprep.subr.bf16.mxu0 0
        %2491 = vmatpush1.bf16.msra.mxu0 0
        %2492 = vmatprep.subr.bf16.mxu0 0
        %2493 = vmatpush1.bf16.msra.mxu0 0
        %2494 = vmatprep.subr.bf16.mxu0 0
        %2495 = vmatpush1.bf16.msra.mxu0 0
        %2496 = vmatprep.subr.bf16.mxu0 0
        %2497 = vmatpush1.bf16.msra.mxu0 0
        %2498 = vmatprep.subr.bf16.mxu0 0
        %2499 = vmatpush1.bf16.msra.mxu0 0
        %2500 = vmatprep.subr.bf16.mxu0 0
        %2501 = vmatpush1.bf16.msra.mxu0 0
        %2502 = vmatprep.subr.bf16.mxu0 0
        %2503 = vmatpush1.bf16.msra.mxu0 0
        %2504 = vmatprep.subr.bf16.mxu0 0
        %2505 = vmatpush1.bf16.msra.mxu0 0
        %2506 = vmatprep.subr.bf16.mxu0 0
        %2507 = vmatpush1.bf16.msra.mxu0 0
        %2508 = vmatprep.mubr.bf16.mxu0 0
        %2509 = vmatmul.mubr.bf16.gmra.mrb[0].mxu0 %v2340
        %v2510 = vpop.f32.mrb[0].mxu0
        %v2511 = vadd.f32 %v2221, %v2510
        %v2512 = vpop.f32.mrb[0].mxu0
        %v2513 = vadd.f32 %v2223, %v2512
        %v2514 = vpop.f32.mrb[0].mxu0
        %v2515 = vadd.f32 %v2225, %v2514
        %v2516 = vpop.f32.mrb[0].mxu0
        %v2517 = vadd.f32 %v2227, %v2516
        %2518 = vmatprep.mubr.bf16.mxu0 0
        %2519 = vmatmul.mubr.bf16.gmra.mrb[0].mxu0 %v2343
        %v2520 = vpop.f32.mrb[0].mxu0
        %v2521 = vadd.f32 %v2231, %v2520
        %v2522 = vpop.f32.mrb[0].mxu0
        %v2523 = vadd.f32 %v2233, %v2522
        %v2524 = vpop.f32.mrb[0].mxu0
        %v2525 = vadd.f32 %v2235, %v2524
        %v2526 = vpop.f32.mrb[0].mxu0
        %v2527 = vadd.f32 %v2237, %v2526
        %2528 = vmatprep.mubr.bf16.mxu0 0
        %2529 = vmatmul.mubr.bf16.gmra.mrb[0].mxu0 %v2346
        %v2530 = vpop.f32.mrb[0].mxu0
        %v2531 = vadd.f32 %v2241, %v2530
        %v2532 = vpop.f32.mrb[0].mxu0
        %v2533 = vadd.f32 %v2243, %v2532
        %v2534 = vpop.f32.mrb[0].mxu0
        %v2535 = vadd.f32 %v2245, %v2534
        %v2536 = vpop.f32.mrb[0].mxu0
        %v2537 = vadd.f32 %v2247, %v2536
        %2538 = vmatprep.mubr.bf16.mxu0 0
        %2539 = vmatmul.mubr.bf16.gmra.mrb[0].mxu0 %v2349
        %v2540 = vpop.f32.mrb[0].mxu0
        %v2541 = vadd.f32 %v2251, %v2540
        %v2542 = vpop.f32.mrb[0].mxu0
        %v2543 = vadd.f32 %v2253, %v2542
        %v2544 = vpop.f32.mrb[0].mxu0
        %v2545 = vadd.f32 %v2255, %v2544
        %v2546 = vpop.f32.mrb[0].mxu0
        %v2547 = vadd.f32 %v2257, %v2546
        %2548 = vmatprep.mubr.bf16.mxu0 0
        %2549 = vmatmul.mubr.bf16.gmra.mrb[0].mxu0 %v2352
        %v2550 = vpop.f32.mrb[0].mxu0
        %v2551 = vadd.f32 %v2261, %v2550
        %v2552 = vpop.f32.mrb[0].mxu0
        %v2553 = vadd.f32 %v2263, %v2552
        %v2554 = vpop.f32.mrb[0].mxu0
        %v2555 = vadd.f32 %v2265, %v2554
        %v2556 = vpop.f32.mrb[0].mxu0
        %v2557 = vadd.f32 %v2267, %v2556
        %2558 = vmatprep.mubr.bf16.mxu0 0
        %2559 = vmatmul.mubr.bf16.gmra.mrb[0].mxu0 %v2355
        %v2560 = vpop.f32.mrb[0].mxu0
        %v2561 = vadd.f32 %v2271, %v2560
        %v2562 = vpop.f32.mrb[0].mxu0
        %v2563 = vadd.f32 %v2273, %v2562
        %v2564 = vpop.f32.mrb[0].mxu0
        %v2565 = vadd.f32 %v2275, %v2564
        %v2566 = vpop.f32.mrb[0].mxu0
        %v2567 = vadd.f32 %v2277, %v2566
        %2568 = vmatprep.mubr.bf16.mxu0 0
        %2569 = vmatmul.mubr.bf16.gmra.mrb[0].mxu0 %v2358
        %v2570 = vpop.f32.mrb[0].mxu0
        %v2571 = vadd.f32 %v2281, %v2570
        %v2572 = vpop.f32.mrb[0].mxu0
        %v2573 = vadd.f32 %v2283, %v2572
        %v2574 = vpop.f32.mrb[0].mxu0
        %v2575 = vadd.f32 %v2285, %v2574
        %v2576 = vpop.f32.mrb[0].mxu0
        %v2577 = vadd.f32 %v2287, %v2576
        %2578 = vmatprep.mubr.bf16.mxu0 0
        %2579 = vmatmul.mubr.bf16.gmra.mrb[0].mxu0 %v2361
        %v2580 = vpop.f32.mrb[0].mxu0
        %v2581 = vadd.f32 %v2291, %v2580
        %v2582 = vpop.f32.mrb[0].mxu0
        %v2583 = vadd.f32 %v2293, %v2582
        %v2584 = vpop.f32.mrb[0].mxu0
        %v2585 = vadd.f32 %v2295, %v2584
        %v2586 = vpop.f32.mrb[0].mxu0
        %v2587 = vadd.f32 %v2297, %v2586
        %2588 = vdwg.mxu0
        %v2589 = vld [vmem:[%s9] sm:$0xff]
        %v2590 = vld [vmem:[%s9 + $0x8] sm:$0xff]
        %v2591 = vld [vmem:[%s9 + $0x10] sm:$0xff]
        %v2592 = vld [vmem:[%s9 + $0x18] sm:$0xff]
        %v2593 = vld [vmem:[%s9 + $0x20] sm:$0xff]
        %v2594 = vld [vmem:[%s9 + $0x28] sm:$0xff]
        %v2595 = vld [vmem:[%s9 + $0x30] sm:$0xff]
        %v2596 = vld [vmem:[%s9 + $0x38] sm:$0xff]
        %v2597 = vld [vmem:[%s9 + $0x40] sm:$0xff]
        %v2598 = vld [vmem:[%s9 + $0x48] sm:$0xff]
        %v2599 = vld [vmem:[%s9 + $0x50] sm:$0xff]
        %v2600 = vld [vmem:[%s9 + $0x58] sm:$0xff]
        %v2601 = vld [vmem:[%s9 + $0x60] sm:$0xff]
        %v2602 = vld [vmem:[%s9 + $0x68] sm:$0xff]
        %v2603 = vld [vmem:[%s9 + $0x70] sm:$0xff]
        %v2604 = vld [vmem:[%s9 + $0x78] sm:$0xff]
        %2606 = vset.pattern.permute.xlu0 0
        %2607 = vperm.xlu0 %2606, %v2589
        %v2608 = vpop.permute.xlu0 %2607
        %2611 = vset.pattern.permute.xlu0 0
        %2612 = vperm.xlu0 %2611, %v2590
        %v2613 = vpop.permute.xlu0 %2612
        %2616 = vset.pattern.permute.xlu0 0
        %2617 = vperm.xlu0 %2616, %v2591
        %v2618 = vpop.permute.xlu0 %2617
        %2621 = vset.pattern.permute.xlu0 0
        %2622 = vperm.xlu0 %2621, %v2592
        %v2623 = vpop.permute.xlu0 %2622
        %2626 = vset.pattern.permute.xlu0 0
        %2627 = vperm.xlu0 %2626, %v2593
        %v2628 = vpop.permute.xlu0 %2627
        %2631 = vset.pattern.permute.xlu0 0
        %2632 = vperm.xlu0 %2631, %v2594
        %v2633 = vpop.permute.xlu0 %2632
        %2636 = vset.pattern.permute.xlu0 0
        %2637 = vperm.xlu0 %2636, %v2595
        %v2638 = vpop.permute.xlu0 %2637
        %2641 = vset.pattern.permute.xlu0 0
        %2642 = vperm.xlu0 %2641, %v2596
        %v2643 = vpop.permute.xlu0 %2642
        %2646 = vset.pattern.permute.xlu0 0
        %2647 = vperm.xlu0 %2646, %v2597
        %v2648 = vpop.permute.xlu0 %2647
        %2651 = vset.pattern.permute.xlu0 0
        %2652 = vperm.xlu0 %2651, %v2598
        %v2653 = vpop.permute.xlu0 %2652
        %2656 = vset.pattern.permute.xlu0 0
        %2657 = vperm.xlu0 %2656, %v2599
        %v2658 = vpop.permute.xlu0 %2657
        %2661 = vset.pattern.permute.xlu0 0
        %2662 = vperm.xlu0 %2661, %v2600
        %v2663 = vpop.permute.xlu0 %2662
        %2666 = vset.pattern.permute.xlu0 0
        %2667 = vperm.xlu0 %2666, %v2601
        %v2668 = vpop.permute.xlu0 %2667
        %2671 = vset.pattern.permute.xlu0 0
        %2672 = vperm.xlu0 %2671, %v2602
        %v2673 = vpop.permute.xlu0 %2672
        %2676 = vset.pattern.permute.xlu0 0
        %2677 = vperm.xlu0 %2676, %v2603
        %v2678 = vpop.permute.xlu0 %2677
        %2681 = vset.pattern.permute.xlu0 0
        %2682 = vperm.xlu0 %2681, %v2604
        %v2683 = vpop.permute.xlu0 %2682
        %v2685 = vadd.f32 %v2398, %v2608
        %v2686 = vadd.f32 %v2400, %v2608
        %v2687 = vadd.f32 %v2511, %v2608
        %v2688 = vadd.f32 %v2513, %v2608
        %v2689 = vadd.f32 %v2402, %v2613
        %v2690 = vadd.f32 %v2404, %v2613
        %v2691 = vadd.f32 %v2515, %v2613
        %v2692 = vadd.f32 %v2517, %v2613
        %v2693 = vadd.f32 %v2408, %v2618
        %v2694 = vadd.f32 %v2410, %v2618
        %v2695 = vadd.f32 %v2521, %v2618
        %v2696 = vadd.f32 %v2523, %v2618
        %v2697 = vadd.f32 %v2412, %v2623
        %v2698 = vadd.f32 %v2414, %v2623
        %v2699 = vadd.f32 %v2525, %v2623
        %v2700 = vadd.f32 %v2527, %v2623
        %v2701 = vadd.f32 %v2418, %v2628
        %v2702 = vadd.f32 %v2420, %v2628
        %v2703 = vadd.f32 %v2531, %v2628
        %v2704 = vadd.f32 %v2533, %v2628
        %v2705 = vadd.f32 %v2422, %v2633
        %v2706 = vadd.f32 %v2424, %v2633
        %v2707 = vadd.f32 %v2535, %v2633
        %v2708 = vadd.f32 %v2537, %v2633
        %v2709 = vadd.f32 %v2428, %v2638
        %v2710 = vadd.f32 %v2430, %v2638
        %v2711 = vadd.f32 %v2541, %v2638
        %v2712 = vadd.f32 %v2543, %v2638
        %v2713 = vadd.f32 %v2432, %v2643
        %v2714 = vadd.f32 %v2434, %v2643
        %v2715 = vadd.f32 %v2545, %v2643
        %v2716 = vadd.f32 %v2547, %v2643
        %v2717 = vadd.f32 %v2438, %v2648
        %v2718 = vadd.f32 %v2440, %v2648
        %v2719 = vadd.f32 %v2551, %v2648
        %v2720 = vadd.f32 %v2553, %v2648
        %v2721 = vadd.f32 %v2442, %v2653
        %v2722 = vadd.f32 %v2444, %v2653
        %v2723 = vadd.f32 %v2555, %v2653
        %v2724 = vadd.f32 %v2557, %v2653
        %v2725 = vadd.f32 %v2448, %v2658
        %v2726 = vadd.f32 %v2450, %v2658
        %v2727 = vadd.f32 %v2561, %v2658
        %v2728 = vadd.f32 %v2563, %v2658
        %v2729 = vadd.f32 %v2452, %v2663
        %v2730 = vadd.f32 %v2454, %v2663
        %v2731 = vadd.f32 %v2565, %v2663
        %v2732 = vadd.f32 %v2567, %v2663
        %v2733 = vadd.f32 %v2458, %v2668
        %v2734 = vadd.f32 %v2460, %v2668
        %v2735 = vadd.f32 %v2571, %v2668
        %v2736 = vadd.f32 %v2573, %v2668
        %v2737 = vadd.f32 %v2462, %v2673
        %v2738 = vadd.f32 %v2464, %v2673
        %v2739 = vadd.f32 %v2575, %v2673
        %v2740 = vadd.f32 %v2577, %v2673
        %v2741 = vadd.f32 %v2468, %v2678
        %v2742 = vadd.f32 %v2470, %v2678
        %v2743 = vadd.f32 %v2581, %v2678
        %v2744 = vadd.f32 %v2583, %v2678
        %v2745 = vadd.f32 %v2472, %v2683
        %v2746 = vadd.f32 %v2474, %v2683
        %v2747 = vadd.f32 %v2585, %v2683
        %v2748 = vadd.f32 %v2587, %v2683
        %v2749 = vmax.f32 %v2685, 0.0
        %v2750 = vmax.f32 %v2686, 0.0
        %v2751 = vmax.f32 %v2687, 0.0
        %v2752 = vmax.f32 %v2688, 0.0
        %v2753 = vmax.f32 %v2689, 0.0
        %v2754 = vmax.f32 %v2690, 0.0
        %v2755 = vmax.f32 %v2691, 0.0
        %v2756 = vmax.f32 %v2692, 0.0
        %v2757 = vmax.f32 %v2693, 0.0
        %v2758 = vmax.f32 %v2694, 0.0
        %v2759 = vmax.f32 %v2695, 0.0
        %v2760 = vmax.f32 %v2696, 0.0
        %v2761 = vmax.f32 %v2697, 0.0
        %v2762 = vmax.f32 %v2698, 0.0
        %v2763 = vmax.f32 %v2699, 0.0
        %v2764 = vmax.f32 %v2700, 0.0
        %v2765 = vmax.f32 %v2701, 0.0
        %v2766 = vmax.f32 %v2702, 0.0
        %v2767 = vmax.f32 %v2703, 0.0
        %v2768 = vmax.f32 %v2704, 0.0
        %v2769 = vmax.f32 %v2705, 0.0
        %v2770 = vmax.f32 %v2706, 0.0
        %v2771 = vmax.f32 %v2707, 0.0
        %v2772 = vmax.f32 %v2708, 0.0
        %v2773 = vmax.f32 %v2709, 0.0
        %v2774 = vmax.f32 %v2710, 0.0
        %v2775 = vmax.f32 %v2711, 0.0
        %v2776 = vmax.f32 %v2712, 0.0
        %v2777 = vmax.f32 %v2713, 0.0
        %v2778 = vmax.f32 %v2714, 0.0
        %v2779 = vmax.f32 %v2715, 0.0
        %v2780 = vmax.f32 %v2716, 0.0
        %v2781 = vmax.f32 %v2717, 0.0
        %v2782 = vmax.f32 %v2718, 0.0
        %v2783 = vmax.f32 %v2719, 0.0
        %v2784 = vmax.f32 %v2720, 0.0
        %v2785 = vmax.f32 %v2721, 0.0
        %v2786 = vmax.f32 %v2722, 0.0
        %v2787 = vmax.f32 %v2723, 0.0
        %v2788 = vmax.f32 %v2724, 0.0
        %v2789 = vmax.f32 %v2725, 0.0
        %v2790 = vmax.f32 %v2726, 0.0
        %v2791 = vmax.f32 %v2727, 0.0
        %v2792 = vmax.f32 %v2728, 0.0
        %v2793 = vmax.f32 %v2729, 0.0
        %v2794 = vmax.f32 %v2730, 0.0
        %v2795 = vmax.f32 %v2731, 0.0
        %v2796 = vmax.f32 %v2732, 0.0
        %v2797 = vmax.f32 %v2733, 0.0
        %v2798 = vmax.f32 %v2734, 0.0
        %v2799 = vmax.f32 %v2735, 0.0
        %v2800 = vmax.f32 %v2736, 0.0
        %v2801 = vmax.f32 %v2737, 0.0
        %v2802 = vmax.f32 %v2738, 0.0
        %v2803 = vmax.f32 %v2739, 0.0
        %v2804 = vmax.f32 %v2740, 0.0
        %v2805 = vmax.f32 %v2741, 0.0
        %v2806 = vmax.f32 %v2742, 0.0
        %v2807 = vmax.f32 %v2743, 0.0
        %v2808 = vmax.f32 %v2744, 0.0
        %v2809 = vmax.f32 %v2745, 0.0
        %v2810 = vmax.f32 %v2746, 0.0
        %v2811 = vmax.f32 %v2747, 0.0
        %v2812 = vmax.f32 %v2748, 0.0
        %v2813 = vld [vmem:[%s10] sm:$0xf]
        %v2814 = vld [vmem:[%s10 + $0x4] sm:$0xf]
        %v2815 = vld [vmem:[%s10 + $0x8] sm:$0xf]
        %v2816 = vld [vmem:[%s10 + $0xc] sm:$0xf]
        %v2817 = vld [vmem:[%s10 + $0x10] sm:$0xf]
        %v2818 = vld [vmem:[%s10 + $0x14] sm:$0xf]
        %v2819 = vld [vmem:[%s10 + $0x18] sm:$0xf]
        %v2820 = vld [vmem:[%s10 + $0x1c] sm:$0xf]
        %v2821 = vld [vmem:[%s10 + $0x20] sm:$0xf]
        %v2822 = vld [vmem:[%s10 + $0x24] sm:$0xf]
        %v2823 = vld [vmem:[%s10 + $0x28] sm:$0xf]
        %v2824 = vld [vmem:[%s10 + $0x2c] sm:$0xf]
        %v2825 = vld [vmem:[%s10 + $0x30] sm:$0xf]
        %v2826 = vld [vmem:[%s10 + $0x34] sm:$0xf]
        %v2827 = vld [vmem:[%s10 + $0x38] sm:$0xf]
        %v2828 = vld [vmem:[%s10 + $0x3c] sm:$0xf]
        %v2829 = vpack.c.bf16 %v2753, %v2749
        %v2830 = vpack.c.bf16 %v2754, %v2750
        %v2831 = vpack.c.bf16 %v2755, %v2751
        %v2832 = vpack.c.bf16 %v2756, %v2752
        %v2833 = vpack.c.bf16 %v2761, %v2757
        %v2834 = vpack.c.bf16 %v2762, %v2758
        %v2835 = vpack.c.bf16 %v2763, %v2759
        %v2836 = vpack.c.bf16 %v2764, %v2760
        %v2837 = vpack.c.bf16 %v2769, %v2765
        %v2838 = vpack.c.bf16 %v2770, %v2766
        %v2839 = vpack.c.bf16 %v2771, %v2767
        %v2840 = vpack.c.bf16 %v2772, %v2768
        %v2841 = vpack.c.bf16 %v2777, %v2773
        %v2842 = vpack.c.bf16 %v2778, %v2774
        %v2843 = vpack.c.bf16 %v2779, %v2775
        %v2844 = vpack.c.bf16 %v2780, %v2776
        %v2845 = vpack.c.bf16 %v2785, %v2781
        %v2846 = vpack.c.bf16 %v2786, %v2782
        %v2847 = vpack.c.bf16 %v2787, %v2783
        %v2848 = vpack.c.bf16 %v2788, %v2784
        %v2849 = vpack.c.bf16 %v2793, %v2789
        %v2850 = vpack.c.bf16 %v2794, %v2790
        %v2851 = vpack.c.bf16 %v2795, %v2791
        %v2852 = vpack.c.bf16 %v2796, %v2792
        %v2853 = vpack.c.bf16 %v2801, %v2797
        %v2854 = vpack.c.bf16 %v2802, %v2798
        %v2855 = vpack.c.bf16 %v2803, %v2799
        %v2856 = vpack.c.bf16 %v2804, %v2800
        %v2857 = vpack.c.bf16 %v2809, %v2805
        %v2858 = vpack.c.bf16 %v2810, %v2806
        %v2859 = vpack.c.bf16 %v2811, %v2807
        %v2860 = vpack.c.bf16 %v2812, %v2808
        %v2861 = vld [vmem:[%s11] sm:$0xff]
        %v2862 = vld [vmem:[%s11 + $0x8] sm:$0xff]
        %v2863 = vld [vmem:[%s11 + $0x10] sm:$0xff]
        %v2864 = vld [vmem:[%s11 + $0x18] sm:$0xff]
        %v2865 = vld [vmem:[%s11 + $0x20] sm:$0xff]
        %v2866 = vld [vmem:[%s11 + $0x28] sm:$0xff]
        %v2867 = vld [vmem:[%s11 + $0x30] sm:$0xff]
        %v2868 = vld [vmem:[%s11 + $0x38] sm:$0xff]
        %v2869 = vld [vmem:[%s11 + $0x40] sm:$0xff]
        %v2870 = vld [vmem:[%s11 + $0x48] sm:$0xff]
        %v2871 = vld [vmem:[%s11 + $0x50] sm:$0xff]
        %v2872 = vld [vmem:[%s11 + $0x58] sm:$0xff]
        %v2873 = vld [vmem:[%s11 + $0x60] sm:$0xff]
        %v2874 = vld [vmem:[%s11 + $0x68] sm:$0xff]
        %v2875 = vld [vmem:[%s11 + $0x70] sm:$0xff]
        %v2876 = vld [vmem:[%s11 + $0x78] sm:$0xff]
        %2878 = vset.pattern.permute.xlu0 0
        %2879 = vperm.xlu0 %2878, %v2861
        %v2880 = vpop.permute.xlu0 %2879
        %2883 = vset.pattern.permute.xlu0 0
        %2884 = vperm.xlu0 %2883, %v2862
        %v2885 = vpop.permute.xlu0 %2884
        %2888 = vset.pattern.permute.xlu0 0
        %2889 = vperm.xlu0 %2888, %v2863
        %v2890 = vpop.permute.xlu0 %2889
        %2893 = vset.pattern.permute.xlu0 0
        %2894 = vperm.xlu0 %2893, %v2864
        %v2895 = vpop.permute.xlu0 %2894
        %2898 = vset.pattern.permute.xlu0 0
        %2899 = vperm.xlu0 %2898, %v2865
        %v2900 = vpop.permute.xlu0 %2899
        %2903 = vset.pattern.permute.xlu0 0
        %2904 = vperm.xlu0 %2903, %v2866
        %v2905 = vpop.permute.xlu0 %2904
        %2908 = vset.pattern.permute.xlu0 0
        %2909 = vperm.xlu0 %2908, %v2867
        %v2910 = vpop.permute.xlu0 %2909
        %2913 = vset.pattern.permute.xlu0 0
        %2914 = vperm.xlu0 %2913, %v2868
        %v2915 = vpop.permute.xlu0 %2914
        %2918 = vset.pattern.permute.xlu0 0
        %2919 = vperm.xlu0 %2918, %v2869
        %v2920 = vpop.permute.xlu0 %2919
        %2923 = vset.pattern.permute.xlu0 0
        %2924 = vperm.xlu0 %2923, %v2870
        %v2925 = vpop.permute.xlu0 %2924
        %2928 = vset.pattern.permute.xlu0 0
        %2929 = vperm.xlu0 %2928, %v2871
        %v2930 = vpop.permute.xlu0 %2929
        %2933 = vset.pattern.permute.xlu0 0
        %2934 = vperm.xlu0 %2933, %v2872
        %v2935 = vpop.permute.xlu0 %2934
        %2938 = vset.pattern.permute.xlu0 0
        %2939 = vperm.xlu0 %2938, %v2873
        %v2940 = vpop.permute.xlu0 %2939
        %2943 = vset.pattern.permute.xlu0 0
        %2944 = vperm.xlu0 %2943, %v2874
        %v2945 = vpop.permute.xlu0 %2944
        %2948 = vset.pattern.permute.xlu0 0
        %2949 = vperm.xlu0 %2948, %v2875
        %v2950 = vpop.permute.xlu0 %2949
        %2953 = vset.pattern.permute.xlu0 0
        %2954 = vperm.xlu0 %2953, %v2876
        %v2955 = vpop.permute.xlu0 %2954
        %v2973 = vunpack.c.l.b16 %v2813
        %v2974 = vunpack.c.l.b16 %v2814
        %v2975 = vunpack.c.l.b16 %v2815
        %v2976 = vunpack.c.l.b16 %v2816
        %v2977 = vunpack.c.l.b16 %v2817
        %v2978 = vunpack.c.l.b16 %v2818
        %v2979 = vunpack.c.l.b16 %v2819
        %v2980 = vunpack.c.l.b16 %v2820
        %v2981 = vunpack.c.l.b16 %v2821
        %v2982 = vunpack.c.l.b16 %v2822
        %v2983 = vunpack.c.l.b16 %v2823
        %v2984 = vunpack.c.l.b16 %v2824
        %v2985 = vunpack.c.l.b16 %v2825
        %v2986 = vunpack.c.l.b16 %v2826
        %v2987 = vunpack.c.l.b16 %v2827
        %v2988 = vunpack.c.l.b16 %v2828
        %v2989 = vpack.c.b16 %v2974, %v2973
        %v2990 = vpack.c.b16 %v2976, %v2975
        %v2991 = vpack.c.b16 %v2978, %v2977
        %v2992 = vpack.c.b16 %v2980, %v2979
        %v2993 = vpack.c.b16 %v2982, %v2981
        %v2994 = vpack.c.b16 %v2984, %v2983
        %v2995 = vpack.c.b16 %v2986, %v2985
        %v2996 = vpack.c.b16 %v2988, %v2987
        %3005 = vmatprep.subr.bf16.mxu0 %v2830
        %3006 = vmatpush1.bf16.msra.mxu0 %v2829
        %3007 = vmatprep.subr.bf16.mxu0 %v2834
        %3008 = vmatpush1.bf16.msra.mxu0 %v2833
        %3009 = vmatprep.subr.bf16.mxu0 %v2838
        %3010 = vmatpush1.bf16.msra.mxu0 %v2837
        %3011 = vmatprep.subr.bf16.mxu0 %v2842
        %3012 = vmatpush1.bf16.msra.mxu0 %v2841
        %3013 = vmatprep.subr.bf16.mxu0 %v2846
        %3014 = vmatpush1.bf16.msra.mxu0 %v2845
        %3015 = vmatprep.subr.bf16.mxu0 %v2850
        %3016 = vmatpush1.bf16.msra.mxu0 %v2849
        %3017 = vmatprep.subr.bf16.mxu0 %v2854
        %3018 = vmatpush1.bf16.msra.mxu0 %v2853
        %3019 = vmatprep.subr.bf16.mxu0 %v2858
        %3020 = vmatpush1.bf16.msra.mxu0 %v2857
        %3021 = vmatprep.subr.bf16.mxu0 0
        %3022 = vmatpush1.bf16.msra.mxu0 0
        %3023 = vmatprep.subr.bf16.mxu0 0
        %3024 = vmatpush1.bf16.msra.mxu0 0
        %3025 = vmatprep.subr.bf16.mxu0 0
        %3026 = vmatpush1.bf16.msra.mxu0 0
        %3027 = vmatprep.subr.bf16.mxu0 0
        %3028 = vmatpush1.bf16.msra.mxu0 0
        %3029 = vmatprep.subr.bf16.mxu0 0
        %3030 = vmatpush1.bf16.msra.mxu0 0
        %3031 = vmatprep.subr.bf16.mxu0 0
        %3032 = vmatpush1.bf16.msra.mxu0 0
        %3033 = vmatprep.subr.bf16.mxu0 0
        %3034 = vmatpush1.bf16.msra.mxu0 0
        %3035 = vmatprep.subr.bf16.mxu0 0
        %3036 = vmatpush1.bf16.msra.mxu0 0
        %3037 = vmatprep.mubr.bf16.mxu0 0
        %3038 = vmatmul.mubr.bf16.gmra.mrb[0].mxu0 %v2989
        %v3039 = vpop.f32.mrb[0].mxu0
        %v3040 = vadd.f32 %v2880, %v3039
        %v3041 = vpop.f32.mrb[0].mxu0
        %v3042 = vadd.f32 %v2880, %v3041
        %v3043 = vpop.f32.mrb[0].mxu0
        %v3044 = vadd.f32 %v2885, %v3043
        %v3045 = vpop.f32.mrb[0].mxu0
        %v3046 = vadd.f32 %v2885, %v3045
        %3047 = vmatprep.mubr.bf16.mxu0 0
        %3048 = vmatmul.mubr.bf16.gmra.mrb[0].mxu0 %v2990
        %v3049 = vpop.f32.mrb[0].mxu0
        %v3050 = vadd.f32 %v2890, %v3049
        %v3051 = vpop.f32.mrb[0].mxu0
        %v3052 = vadd.f32 %v2890, %v3051
        %v3053 = vpop.f32.mrb[0].mxu0
        %v3054 = vadd.f32 %v2895, %v3053
        %v3055 = vpop.f32.mrb[0].mxu0
        %v3056 = vadd.f32 %v2895, %v3055
        %3057 = vmatprep.mubr.bf16.mxu0 0
        %3058 = vmatmul.mubr.bf16.gmra.mrb[0].mxu0 %v2991
        %v3059 = vpop.f32.mrb[0].mxu0
        %v3060 = vadd.f32 %v2900, %v3059
        %v3061 = vpop.f32.mrb[0].mxu0
        %v3062 = vadd.f32 %v2900, %v3061
        %v3063 = vpop.f32.mrb[0].mxu0
        %v3064 = vadd.f32 %v2905, %v3063
        %v3065 = vpop.f32.mrb[0].mxu0
        %v3066 = vadd.f32 %v2905, %v3065
        %3067 = vmatprep.mubr.bf16.mxu0 0
        %3068 = vmatmul.mubr.bf16.gmra.mrb[0].mxu0 %v2992
        %v3069 = vpop.f32.mrb[0].mxu0
        %v3070 = vadd.f32 %v2910, %v3069
        %v3071 = vpop.f32.mrb[0].mxu0
        %v3072 = vadd.f32 %v2910, %v3071
        %v3073 = vpop.f32.mrb[0].mxu0
        %v3074 = vadd.f32 %v2915, %v3073
        %v3075 = vpop.f32.mrb[0].mxu0
        %v3076 = vadd.f32 %v2915, %v3075
        %3077 = vmatprep.mubr.bf16.mxu0 0
        %3078 = vmatmul.mubr.bf16.gmra.mrb[0].mxu0 %v2993
        %v3079 = vpop.f32.mrb[0].mxu0
        %v3080 = vadd.f32 %v2920, %v3079
        %v3081 = vpop.f32.mrb[0].mxu0
        %v3082 = vadd.f32 %v2920, %v3081
        %v3083 = vpop.f32.mrb[0].mxu0
        %v3084 = vadd.f32 %v2925, %v3083
        %v3085 = vpop.f32.mrb[0].mxu0
        %v3086 = vadd.f32 %v2925, %v3085
        %3087 = vmatprep.mubr.bf16.mxu0 0
        %3088 = vmatmul.mubr.bf16.gmra.mrb[0].mxu0 %v2994
        %v3089 = vpop.f32.mrb[0].mxu0
        %v3090 = vadd.f32 %v2930, %v3089
        %v3091 = vpop.f32.mrb[0].mxu0
        %v3092 = vadd.f32 %v2930, %v3091
        %v3093 = vpop.f32.mrb[0].mxu0
        %v3094 = vadd.f32 %v2935, %v3093
        %v3095 = vpop.f32.mrb[0].mxu0
        %v3096 = vadd.f32 %v2935, %v3095
        %3097 = vmatprep.mubr.bf16.mxu0 0
        %3098 = vmatmul.mubr.bf16.gmra.mrb[0].mxu0 %v2995
        %v3099 = vpop.f32.mrb[0].mxu0
        %v3100 = vadd.f32 %v2940, %v3099
        %v3101 = vpop.f32.mrb[0].mxu0
        %v3102 = vadd.f32 %v2940, %v3101
        %v3103 = vpop.f32.mrb[0].mxu0
        %v3104 = vadd.f32 %v2945, %v3103
        %v3105 = vpop.f32.mrb[0].mxu0
        %v3106 = vadd.f32 %v2945, %v3105
        %3107 = vmatprep.mubr.bf16.mxu0 0
        %3108 = vmatmul.mubr.bf16.gmra.mrb[0].mxu0 %v2996
        %v3109 = vpop.f32.mrb[0].mxu0
        %v3110 = vadd.f32 %v2950, %v3109
        %v3111 = vpop.f32.mrb[0].mxu0
        %v3112 = vadd.f32 %v2950, %v3111
        %v3113 = vpop.f32.mrb[0].mxu0
        %v3114 = vadd.f32 %v2955, %v3113
        %v3115 = vpop.f32.mrb[0].mxu0
        %v3116 = vadd.f32 %v2955, %v3115
        %3117 = vdwg.mxu0
        %3118 = vmatprep.subr.bf16.mxu0 %v2832
        %3119 = vmatpush1.bf16.msra.mxu0 %v2831
        %3120 = vmatprep.subr.bf16.mxu0 %v2836
        %3121 = vmatpush1.bf16.msra.mxu0 %v2835
        %3122 = vmatprep.subr.bf16.mxu0 %v2840
        %3123 = vmatpush1.bf16.msra.mxu0 %v2839
        %3124 = vmatprep.subr.bf16.mxu0 %v2844
        %3125 = vmatpush1.bf16.msra.mxu0 %v2843
        %3126 = vmatprep.subr.bf16.mxu0 %v2848
        %3127 = vmatpush1.bf16.msra.mxu0 %v2847
        %3128 = vmatprep.subr.bf16.mxu0 %v2852
        %3129 = vmatpush1.bf16.msra.mxu0 %v2851
        %3130 = vmatprep.subr.bf16.mxu0 %v2856
        %3131 = vmatpush1.bf16.msra.mxu0 %v2855
        %3132 = vmatprep.subr.bf16.mxu0 %v2860
        %3133 = vmatpush1.bf16.msra.mxu0 %v2859
        %3134 = vmatprep.subr.bf16.mxu0 0
        %3135 = vmatpush1.bf16.msra.mxu0 0
        %3136 = vmatprep.subr.bf16.mxu0 0
        %3137 = vmatpush1.bf16.msra.mxu0 0
        %3138 = vmatprep.subr.bf16.mxu0 0
        %3139 = vmatpush1.bf16.msra.mxu0 0
        %3140 = vmatprep.subr.bf16.mxu0 0
        %3141 = vmatpush1.bf16.msra.mxu0 0
        %3142 = vmatprep.subr.bf16.mxu0 0
        %3143 = vmatpush1.bf16.msra.mxu0 0
        %3144 = vmatprep.subr.bf16.mxu0 0
        %3145 = vmatpush1.bf16.msra.mxu0 0
        %3146 = vmatprep.subr.bf16.mxu0 0
        %3147 = vmatpush1.bf16.msra.mxu0 0
        %3148 = vmatprep.subr.bf16.mxu0 0
        %3149 = vmatpush1.bf16.msra.mxu0 0
        %3150 = vmatprep.mubr.bf16.mxu0 0
        %3151 = vmatmul.mubr.bf16.gmra.mrb[0].mxu0 %v2989
        %v3152 = vpop.f32.mrb[0].mxu0
        %v3153 = vadd.f32 %v2880, %v3152
        %v3154 = vpop.f32.mrb[0].mxu0
        %v3155 = vadd.f32 %v2880, %v3154
        %v3156 = vpop.f32.mrb[0].mxu0
        %v3157 = vadd.f32 %v2885, %v3156
        %v3158 = vpop.f32.mrb[0].mxu0
        %v3159 = vadd.f32 %v2885, %v3158
        %3160 = vmatprep.mubr.bf16.mxu0 0
        %3161 = vmatmul.mubr.bf16.gmra.mrb[0].mxu0 %v2990
        %v3162 = vpop.f32.mrb[0].mxu0
        %v3163 = vadd.f32 %v2890, %v3162
        %v3164 = vpop.f32.mrb[0].mxu0
        %v3165 = vadd.f32 %v2890, %v3164
        %v3166 = vpop.f32.mrb[0].mxu0
        %v3167 = vadd.f32 %v2895, %v3166
        %v3168 = vpop.f32.mrb[0].mxu0
        %v3169 = vadd.f32 %v2895, %v3168
        %3170 = vmatprep.mubr.bf16.mxu0 0
        %3171 = vmatmul.mubr.bf16.gmra.mrb[0].mxu0 %v2991
        %v3172 = vpop.f32.mrb[0].mxu0
        %v3173 = vadd.f32 %v2900, %v3172
        %v3174 = vpop.f32.mrb[0].mxu0
        %v3175 = vadd.f32 %v2900, %v3174
        %v3176 = vpop.f32.mrb[0].mxu0
        %v3177 = vadd.f32 %v2905, %v3176
        %v3178 = vpop.f32.mrb[0].mxu0
        %v3179 = vadd.f32 %v2905, %v3178
        %3180 = vmatprep.mubr.bf16.mxu0 0
        %3181 = vmatmul.mubr.bf16.gmra.mrb[0].mxu0 %v2992
        %v3182 = vpop.f32.mrb[0].mxu0
        %v3183 = vadd.f32 %v2910, %v3182
        %v3184 = vpop.f32.mrb[0].mxu0
        %v3185 = vadd.f32 %v2910, %v3184
        %v3186 = vpop.f32.mrb[0].mxu0
        %v3187 = vadd.f32 %v2915, %v3186
        %v3188 = vpop.f32.mrb[0].mxu0
        %v3189 = vadd.f32 %v2915, %v3188
        %3190 = vmatprep.mubr.bf16.mxu0 0
        %3191 = vmatmul.mubr.bf16.gmra.mrb[0].mxu0 %v2993
        %v3192 = vpop.f32.mrb[0].mxu0
        %v3193 = vadd.f32 %v2920, %v3192
        %v3194 = vpop.f32.mrb[0].mxu0
        %v3195 = vadd.f32 %v2920, %v3194
        %v3196 = vpop.f32.mrb[0].mxu0
        %v3197 = vadd.f32 %v2925, %v3196
        %v3198 = vpop.f32.mrb[0].mxu0
        %v3199 = vadd.f32 %v2925, %v3198
        %3200 = vmatprep.mubr.bf16.mxu0 0
        %3201 = vmatmul.mubr.bf16.gmra.mrb[0].mxu0 %v2994
        %v3202 = vpop.f32.mrb[0].mxu0
        %v3203 = vadd.f32 %v2930, %v3202
        %v3204 = vpop.f32.mrb[0].mxu0
        %v3205 = vadd.f32 %v2930, %v3204
        %v3206 = vpop.f32.mrb[0].mxu0
        %v3207 = vadd.f32 %v2935, %v3206
        %v3208 = vpop.f32.mrb[0].mxu0
        %v3209 = vadd.f32 %v2935, %v3208
        %3210 = vmatprep.mubr.bf16.mxu0 0
        %3211 = vmatmul.mubr.bf16.gmra.mrb[0].mxu0 %v2995
        %v3212 = vpop.f32.mrb[0].mxu0
        %v3213 = vadd.f32 %v2940, %v3212
        %v3214 = vpop.f32.mrb[0].mxu0
        %v3215 = vadd.f32 %v2940, %v3214
        %v3216 = vpop.f32.mrb[0].mxu0
        %v3217 = vadd.f32 %v2945, %v3216
        %v3218 = vpop.f32.mrb[0].mxu0
        %v3219 = vadd.f32 %v2945, %v3218
        %3220 = vmatprep.mubr.bf16.mxu0 0
        %3221 = vmatmul.mubr.bf16.gmra.mrb[0].mxu0 %v2996
        %v3222 = vpop.f32.mrb[0].mxu0
        %v3223 = vadd.f32 %v2950, %v3222
        %v3224 = vpop.f32.mrb[0].mxu0
        %v3225 = vadd.f32 %v2950, %v3224
        %v3226 = vpop.f32.mrb[0].mxu0
        %v3227 = vadd.f32 %v2955, %v3226
        %v3228 = vpop.f32.mrb[0].mxu0
        %v3229 = vadd.f32 %v2955, %v3228
        %3230 = vdwg.mxu0
        %v3231 = vmax.f32 %v3040, 0.0
        %v3232 = vmax.f32 %v3042, 0.0
        %v3233 = vmax.f32 %v3153, 0.0
        %v3234 = vmax.f32 %v3155, 0.0
        %v3235 = vmax.f32 %v3044, 0.0
        %v3236 = vmax.f32 %v3046, 0.0
        %v3237 = vmax.f32 %v3157, 0.0
        %v3238 = vmax.f32 %v3159, 0.0
        %v3239 = vmax.f32 %v3050, 0.0
        %v3240 = vmax.f32 %v3052, 0.0
        %v3241 = vmax.f32 %v3163, 0.0
        %v3242 = vmax.f32 %v3165, 0.0
        %v3243 = vmax.f32 %v3054, 0.0
        %v3244 = vmax.f32 %v3056, 0.0
        %v3245 = vmax.f32 %v3167, 0.0
        %v3246 = vmax.f32 %v3169, 0.0
        %v3247 = vmax.f32 %v3060, 0.0
        %v3248 = vmax.f32 %v3062, 0.0
        %v3249 = vmax.f32 %v3173, 0.0
        %v3250 = vmax.f32 %v3175, 0.0
        %v3251 = vmax.f32 %v3064, 0.0
        %v3252 = vmax.f32 %v3066, 0.0
        %v3253 = vmax.f32 %v3177, 0.0
        %v3254 = vmax.f32 %v3179, 0.0
        %v3255 = vmax.f32 %v3070, 0.0
        %v3256 = vmax.f32 %v3072, 0.0
        %v3257 = vmax.f32 %v3183, 0.0
        %v3258 = vmax.f32 %v3185, 0.0
        %v3259 = vmax.f32 %v3074, 0.0
        %v3260 = vmax.f32 %v3076, 0.0
        %v3261 = vmax.f32 %v3187, 0.0
        %v3262 = vmax.f32 %v3189, 0.0
        %v3263 = vmax.f32 %v3080, 0.0
        %v3264 = vmax.f32 %v3082, 0.0
        %v3265 = vmax.f32 %v3193, 0.0
        %v3266 = vmax.f32 %v3195, 0.0
        %v3267 = vmax.f32 %v3084, 0.0
        %v3268 = vmax.f32 %v3086, 0.0
        %v3269 = vmax.f32 %v3197, 0.0
        %v3270 = vmax.f32 %v3199, 0.0
        %v3271 = vmax.f32 %v3090, 0.0
        %v3272 = vmax.f32 %v3092, 0.0
        %v3273 = vmax.f32 %v3203, 0.0
        %v3274 = vmax.f32 %v3205, 0.0
        %v3275 = vmax.f32 %v3094, 0.0
        %v3276 = vmax.f32 %v3096, 0.0
        %v3277 = vmax.f32 %v3207, 0.0
        %v3278 = vmax.f32 %v3209, 0.0
        %v3279 = vmax.f32 %v3100, 0.0
        %v3280 = vmax.f32 %v3102, 0.0
        %v3281 = vmax.f32 %v3213, 0.0
        %v3282 = vmax.f32 %v3215, 0.0
        %v3283 = vmax.f32 %v3104, 0.0
        %v3284 = vmax.f32 %v3106, 0.0
        %v3285 = vmax.f32 %v3217, 0.0
        %v3286 = vmax.f32 %v3219, 0.0
        %v3287 = vmax.f32 %v3110, 0.0
        %v3288 = vmax.f32 %v3112, 0.0
        %v3289 = vmax.f32 %v3223, 0.0
        %v3290 = vmax.f32 %v3225, 0.0
        %v3291 = vmax.f32 %v3114, 0.0
        %v3292 = vmax.f32 %v3116, 0.0
        %v3293 = vmax.f32 %v3227, 0.0
        %v3294 = vmax.f32 %v3229, 0.0
        %v3295 = vld [vmem:[%s12] sm:$0xf]
        %v3296 = vpack.c.bf16 %v3235, %v3231
        %v3297 = vpack.c.bf16 %v3236, %v3232
        %v3298 = vpack.c.bf16 %v3237, %v3233
        %v3299 = vpack.c.bf16 %v3238, %v3234
        %v3300 = vpack.c.bf16 %v3243, %v3239
        %v3301 = vpack.c.bf16 %v3244, %v3240
        %v3302 = vpack.c.bf16 %v3245, %v3241
        %v3303 = vpack.c.bf16 %v3246, %v3242
        %v3304 = vpack.c.bf16 %v3251, %v3247
        %v3305 = vpack.c.bf16 %v3252, %v3248
        %v3306 = vpack.c.bf16 %v3253, %v3249
        %v3307 = vpack.c.bf16 %v3254, %v3250
        %v3308 = vpack.c.bf16 %v3259, %v3255
        %v3309 = vpack.c.bf16 %v3260, %v3256
        %v3310 = vpack.c.bf16 %v3261, %v3257
        %v3311 = vpack.c.bf16 %v3262, %v3258
        %v3312 = vpack.c.bf16 %v3267, %v3263
        %v3313 = vpack.c.bf16 %v3268, %v3264
        %v3314 = vpack.c.bf16 %v3269, %v3265
        %v3315 = vpack.c.bf16 %v3270, %v3266
        %v3316 = vpack.c.bf16 %v3275, %v3271
        %v3317 = vpack.c.bf16 %v3276, %v3272
        %v3318 = vpack.c.bf16 %v3277, %v3273
        %v3319 = vpack.c.bf16 %v3278, %v3274
        %v3320 = vpack.c.bf16 %v3283, %v3279
        %v3321 = vpack.c.bf16 %v3284, %v3280
        %v3322 = vpack.c.bf16 %v3285, %v3281
        %v3323 = vpack.c.bf16 %v3286, %v3282
        %v3324 = vpack.c.bf16 %v3291, %v3287
        %v3325 = vpack.c.bf16 %v3292, %v3288
        %v3326 = vpack.c.bf16 %v3293, %v3289
        %v3327 = vpack.c.bf16 %v3294, %v3290
        %3328 = vmatprep.subr.bf16.mxu0 %v3297
        %3329 = vmatpush1.bf16.msra.mxu0 %v3296
        %3330 = vmatprep.subr.bf16.mxu0 %v3301
        %3331 = vmatpush1.bf16.msra.mxu0 %v3300
        %3332 = vmatprep.subr.bf16.mxu0 %v3305
        %3333 = vmatpush1.bf16.msra.mxu0 %v3304
        %3334 = vmatprep.subr.bf16.mxu0 %v3309
        %3335 = vmatpush1.bf16.msra.mxu0 %v3308
        %3336 = vmatprep.subr.bf16.mxu0 %v3313
        %3337 = vmatpush1.bf16.msra.mxu0 %v3312
        %3338 = vmatprep.subr.bf16.mxu0 %v3317
        %3339 = vmatpush1.bf16.msra.mxu0 %v3316
        %3340 = vmatprep.subr.bf16.mxu0 %v3321
        %3341 = vmatpush1.bf16.msra.mxu0 %v3320
        %3342 = vmatprep.subr.bf16.mxu0 %v3325
        %3343 = vmatpush1.bf16.msra.mxu0 %v3324
        %3344 = vmatprep.subr.bf16.mxu0 0
        %3345 = vmatpush1.bf16.msra.mxu0 0
        %3346 = vmatprep.subr.bf16.mxu0 0
        %3347 = vmatpush1.bf16.msra.mxu0 0
        %3348 = vmatprep.subr.bf16.mxu0 0
        %3349 = vmatpush1.bf16.msra.mxu0 0
        %3350 = vmatprep.subr.bf16.mxu0 0
        %3351 = vmatpush1.bf16.msra.mxu0 0
        %3352 = vmatprep.subr.bf16.mxu0 0
        %3353 = vmatpush1.bf16.msra.mxu0 0
        %3354 = vmatprep.subr.bf16.mxu0 0
        %3355 = vmatpush1.bf16.msra.mxu0 0
        %3356 = vmatprep.subr.bf16.mxu0 0
        %3357 = vmatpush1.bf16.msra.mxu0 0
        %3358 = vmatprep.subr.bf16.mxu0 0
        %3359 = vmatpush1.bf16.msra.mxu0 0
        %3360 = vmatprep.mubr.bf16.mxu0 0
        %3361 = vmatmul.mubr.bf16.gmra.mrb[0].mxu0 %v3295
        %v3362 = vpop.f32.mrb[0].mxu0
        %v3363 = vadd.f32 0.0, %v3362
        %v3364 = vpop.f32.mrb[0].mxu0
        %v3365 = vadd.f32 0.0, %v3364
        %v3366 = vpop.f32.mrb[0].mxu0
        %v3367 = vpop.f32.mrb[0].mxu0
        %3368 = vdwg.mxu0
        %3369 = vmatprep.subr.bf16.mxu0 %v3299
        %3370 = vmatpush1.bf16.msra.mxu0 %v3298
        %3371 = vmatprep.subr.bf16.mxu0 %v3303
        %3372 = vmatpush1.bf16.msra.mxu0 %v3302
        %3373 = vmatprep.subr.bf16.mxu0 %v3307
        %3374 = vmatpush1.bf16.msra.mxu0 %v3306
        %3375 = vmatprep.subr.bf16.mxu0 %v3311
        %3376 = vmatpush1.bf16.msra.mxu0 %v3310
        %3377 = vmatprep.subr.bf16.mxu0 %v3315
        %3378 = vmatpush1.bf16.msra.mxu0 %v3314
        %3379 = vmatprep.subr.bf16.mxu0 %v3319
        %3380 = vmatpush1.bf16.msra.mxu0 %v3318
        %3381 = vmatprep.subr.bf16.mxu0 %v3323
        %3382 = vmatpush1.bf16.msra.mxu0 %v3322
        %3383 = vmatprep.subr.bf16.mxu0 %v3327
        %3384 = vmatpush1.bf16.msra.mxu0 %v3326
        %3385 = vmatprep.subr.bf16.mxu0 0
        %3386 = vmatpush1.bf16.msra.mxu0 0
        %3387 = vmatprep.subr.bf16.mxu0 0
        %3388 = vmatpush1.bf16.msra.mxu0 0
        %3389 = vmatprep.subr.bf16.mxu0 0
        %3390 = vmatpush1.bf16.msra.mxu0 0
        %3391 = vmatprep.subr.bf16.mxu0 0
        %3392 = vmatpush1.bf16.msra.mxu0 0
        %3393 = vmatprep.subr.bf16.mxu0 0
        %3394 = vmatpush1.bf16.msra.mxu0 0
        %3395 = vmatprep.subr.bf16.mxu0 0
        %3396 = vmatpush1.bf16.msra.mxu0 0
        %3397 = vmatprep.subr.bf16.mxu0 0
        %3398 = vmatpush1.bf16.msra.mxu0 0
        %3399 = vmatprep.subr.bf16.mxu0 0
        %3400 = vmatpush1.bf16.msra.mxu0 0
        %3401 = vmatprep.mubr.bf16.mxu0 0
        %3402 = vmatmul.mubr.bf16.gmra.mrb[0].mxu0 %v3295
        %v3403 = vpop.f32.mrb[0].mxu0
        %v3404 = vadd.f32 0.0, %v3403
        %v3405 = vpop.f32.mrb[0].mxu0
        %v3406 = vadd.f32 0.0, %v3405
        %v3407 = vpop.f32.mrb[0].mxu0
        %v3408 = vpop.f32.mrb[0].mxu0
        %3409 = vdwg.mxu0
        %v3410 = vld [vmem:[#allocation2] sm:$0x1]
        %3412 = vset.pattern.permute.xlu0 0
        %3413 = vperm.xlu0 %3412, %v3410
        %v3414 = vpop.permute.xlu0 %3413
        %v3416 = vlaneseq
        %v3417 = vshrl.u32 %v3416, 7
        %v3418 = vsub.s32 0, %v3417
        %v3419 = vrot.slane %v3414, %v3418
        %v3420 = vadd.f32 %v3363, %v3419
        %v3421 = vadd.f32 %v3365, %v3419
        %v3422 = vadd.f32 %v3404, %v3419
        %v3423 = vadd.f32 %v3406, %v3419
        %v3424 = vsub.f32 0.0, %v3420
        %v3425 = vsub.f32 0.0, %v3421
        %v3426 = vsub.f32 0.0, %v3422
        %v3427 = vsub.f32 0.0, %v3423
        %v3428 = vmul.f32 %v3424, 1.442695
        %v3429 = vpow.pop %v3428
        %v3430 = vmul.f32 %v3425, 1.442695
        %v3431 = vpow.pop %v3430
        %v3432 = vmul.f32 %v3426, 1.442695
        %v3433 = vpow.pop %v3432
        %v3434 = vmul.f32 %v3427, 1.442695
        %v3435 = vpow.pop %v3434
        %v3436 = vadd.f32 %v3429, 1.0
        %v3437 = vadd.f32 %v3431, 1.0
        %v3438 = vadd.f32 %v3433, 1.0
        %v3439 = vadd.f32 %v3435, 1.0
        %v3440 = vrcp.pop %v3436
        %v3441 = vrcp.pop %v3437
        %v3442 = vrcp.pop %v3438
        %v3443 = vrcp.pop %v3439
        %v3448 = vcombine.low %v3440, %v3441
        %v3449 = vcombine.low %v3442, %v3443
        %v3451 = vunpack.c.l.s4 1966171168
        %v3452 = vunpack.c.0.s8 %v3451
        %v3453 = vlaneseq
        %v3454 = vshrl.u32 %v3453, 7
        %v3455 = vsub.s32 %v3452, %v3454
        %v3456 = vrot.slane %v3448, %v3455
        %v3458 = vunpack.c.l.s4 1966171168
        %v3459 = vunpack.c.0.s8 %v3458
        %v3460 = vlaneseq
        %v3461 = vshrl.u32 %v3460, 7
        %v3462 = vsub.s32 %v3459, %v3461
        %v3463 = vrot.slane %v3449, %v3462
        %v3464 = vcombine.low %v3456, %v3463
        %v3466 = vunpack.c.l.s4 1966171168
        %v3467 = vunpack.c.0.s8 %v3466
        %v3468 = vlaneseq
        %v3469 = vshrl.u32 %v3468, 7
        %v3470 = vsub.s32 %v3467, %v3469
        %v3471 = vrot.slane %v3464, %v3470
        %v3473 = vlaneseq
        %vm3474 = vcmp.ge.s32.totalorder %v3473, 0
        %vm3475 = vcmp.lt.s32.totalorder %v3473, 512
        %vm3476 = vmand %vm3474, %vm3475
        %3477 = vst.msk [vmem:[%s493] sm:$0xf] %vm3476, %v3471
        %s3478 = sand.u32 %s337, 1
        %s3479 = scalar_lea.sflag [#allocation5], %s3478
        %s3480 = sand.u32 %s337, 1
        %s3481 = smul.addr %s3480, 4
        %s3482 = scalar_lea.vmem [#allocation4], %s3481
        // Predicated region
        $region100: #{tpu_custom_call.1} parent=94 // pred_check
          %p3483 = pneg %p347
        $region101: #{tpu_custom_call.1} parent=94 // pred_check_branch
          %3485 = sbr.rel (%p3483) target = $region103
        $region102: #{tpu_custom_call.1} parent=94 // pred_region
          %s3486 = smul.u32 4, %s30
          %s3488 = ssub.s32 64, 64
          %3489 = vsyncadd %s3479, %s3488
          %s3490 = smul.addr %s3486, 16
          %s3491 = scalar_lea.hbm %s14, %s3490
          %s3493 = sshll.u32 %s3482, 4
          %s3494 = int_to_ptr.vmem [resolvable:$true] %s3493
          %3496 = dma.vmem_to_hbm [thread:$0]  %s3494, 64, %s3491, %s3479
        $region103: #{tpu_custom_call.1} parent=94 // pred_fallthru
          _
      $region95: #{tpu_custom_call.1} parent=5 // pred_fallthru
        _
      %p3497 = scmp.le.s32.totalorder 2, %s25
      // Predicated region
      $region104: #{tpu_custom_call.1} parent=5 // pred_check
        %p3498 = pneg %p3497
      $region105: #{tpu_custom_call.1} parent=5 // pred_check_branch
        %3500 = sbr.rel (%p3498) target = $region107
      $region106: #{tpu_custom_call.1} parent=5 // pred_region
        %s3501 = ssub.s32 %s25, 2
        // Predicated region
        $region108: #{tpu_custom_call.1} parent=106 // pred_check
          %p3502 = pneg %p353
        $region109: #{tpu_custom_call.1} parent=106 // pred_check_branch
          %3504 = sbr.rel (%p3502) target = $region111
        $region110: #{tpu_custom_call.1} parent=106 // pred_region
          %s3505 = sand.u32 %s338, 1
          %s3506 = scalar_lea.sflag [#allocation5], %s3505
          %s3507 = sand.u32 %s338, 1
          %s3508 = smul.addr %s3507, 4
          %s3509 = scalar_lea.vmem [#allocation4], %s3508
          %3510 = dma.done %s3506, 64
        $region111: #{tpu_custom_call.1} parent=106 // pred_fallthru
          _
      $region107: #{tpu_custom_call.1} parent=5 // pred_fallthru
        _
    $region6: #{tpu_custom_call.1} parent=1 // loop_footer
      %s29 = sadd.s32 1, %s25
    $region7: #{tpu_custom_call.1} parent=1 // loop_footer_branch
      %24 = sbr.rel target = $region3
    $region8: #{tpu_custom_call.1} parent=1 // loop_exit
      _
    %3511 = vsyncpa [#allocation5], 1
    %s3512 = scalar_lea.sflag [#allocation5], 1
    %3513 = vsyncpa %s3512, 1

</llo_original>
